<compile_context>
chip_gen: v5e
topology: v5e:2x2
jax: 0.10.0
libtpu: 0.0.40
codegen_flags: <defaults>
</compile_context>

<pallas_src>
import math

import jax
import jax.numpy as jnp
import numpy as np
from jax.experimental import pallas as pl
from jax.experimental.pallas import tpu as pltpu


# ---------------------------------------------------------------------------
# Pass 1: per-channel sum / sum-of-squares over HW (channels-first stream)
# ---------------------------------------------------------------------------
def gn_stats_kernel(x_ref, sum_ref, sqsum_ref, sum_sc, sqsum_sc):
    ti = pl.program_id(1)

    @pl.when(ti == 0)
    def _():
        sum_sc[...] = jnp.zeros_like(sum_sc)
        sqsum_sc[...] = jnp.zeros_like(sqsum_sc)

    x = x_ref[0]                                           # (C, ts) f32
    sum_sc[...] += jnp.sum(x, axis=-1, keepdims=True)      # (C, 1)
    sqsum_sc[...] += jnp.sum(x * x, axis=-1, keepdims=True)

    @pl.when(ti == pl.num_programs(1) - 1)
    def _():
        sum_ref[0] = sum_sc[...]
        sqsum_ref[0] = sqsum_sc[...]


# ---------------------------------------------------------------------------
# Pass 2: normalize (folded per-channel FMA) + fused q/k/v 1x1 projection
# ---------------------------------------------------------------------------
def qkv_proj_kernel(x_ref, s_ref, t_ref, w_ref, b_ref, q_ref, k_ref, v_ref):
    C = x_ref.shape[1]
    h = (x_ref[0] * s_ref[0] + t_ref[0]).astype(jnp.bfloat16)        # (C, ts)
    qkv = jnp.dot(w_ref[...], h, preferred_element_type=jnp.float32) + b_ref[...]
    # (3C, ts) f32.  q is stored token-major so pass 3's q @ k is a plain NN MXU
    # matmul; the f32 transpose rides the otherwise-idle XLU slot under this
    # MXU-bound step.  k/v stay channels-first (C, tk) chunks.
    q_ref[0] = jnp.transpose(qkv[:C, :]).astype(jnp.bfloat16)        # (ts, C)
    k_ref[0, 0] = qkv[C:2 * C, :].astype(jnp.bfloat16)               # (C, ts)
    v_ref[0, 0] = qkv[2 * C:, :].astype(jnp.bfloat16)                # (C, ts)


# ---------------------------------------------------------------------------
# Pass 3: flash attention (K/V resident in VMEM) + out proj + residual (NCHW)
# ---------------------------------------------------------------------------
def attn_kernel(x_ref, q_ref, k_ref, v_ref, wp_ref, bp_ref, o_ref,
                m_sc, l_sc, acc_sc):
    kj = pl.program_id(2)

    @pl.when(kj == 0)
    def _():
        m_sc[...] = jnp.full_like(m_sc, -jnp.inf)
        l_sc[...] = jnp.zeros_like(l_sc)
        acc_sc[...] = jnp.zeros_like(acc_sc)

    q = q_ref[0]                                           # (tq, C) bf16, scale folded
    n_chunks = k_ref.shape[1]                              # kv chunks resident this step

    @pl.loop(0, n_chunks)
    def _(i):
        k = k_ref[0, i]                                    # (C, tk) bf16
        v = v_ref[0, i]                                    # (C, tk) bf16
        s = jax.lax.dot_general(q, k, (((1,), (0,)), ((), ())),
                                preferred_element_type=jnp.float32)   # (tq, tk)
        m_prev = m_sc[...]
        m_new = jnp.maximum(m_prev, jnp.max(s, axis=-1, keepdims=True))
        alpha = jnp.exp(m_prev - m_new)                    # f32 softmax math
        p = jnp.exp(s - m_new)
        l_sc[...] = alpha * l_sc[...] + jnp.sum(p, axis=-1, keepdims=True)
        acc_sc[...] = alpha * acc_sc[...] + jax.lax.dot_general(
            p.astype(jnp.bfloat16), v, (((1,), (1,)), ((), ())),      # NT -> (tq, C)
            preferred_element_type=jnp.float32)
        m_sc[...] = m_new

    @pl.when(kj == pl.num_programs(2) - 1)
    def _():
        attn = (acc_sc[...] * pl.reciprocal(l_sc[...], approx=False)
                ).astype(jnp.bfloat16)                     # (tq, C), exact reciprocal
        # Output projection straight into channels-first (C, tq) via an NT matmul,
        # so the residual add and store stay in the NCHW layout (no transpose).
        out_cf = jax.lax.dot_general(wp_ref[...], attn, (((1,), (1,)), ((), ())),
                                     preferred_element_type=jnp.float32) + bp_ref[...]
        o_ref[0] = x_ref[0] + out_cf


# ---------------------------------------------------------------------------
# Wrapper
# ---------------------------------------------------------------------------
def _pick_tile(n, pref):
    """Largest multiple of 128 <= pref dividing n; n itself if small/unaligned
    (full-extent blocks are always legal)."""
    if n <= pref or n % 128 != 0:
        return n
    t = max(128, (pref // 128) * 128)
    while t > 128 and n % t != 0:
        t -= 128
    return t


def attn_block(x, params, *, q_tile=256, kv_tile=256, stats_tile=1024,
               kv_resident_budget=24 * 1024 * 1024):
    """AttnBlock forward. x: (B, C, H, W) float32, kept NCHW throughout."""
    gamma, beta, wq, bq, wk, bk, wv, bv, wp, bp = params
    B, C, H, W = x.shape
    HW = H * W
    eps = 1e-5
    groups = 32
    gs = C // groups
    scale = float(C) ** (-0.5)

    x_flat = x.reshape(B, C, HW).astype(jnp.float32)       # free reshape, no transpose

    # Fold the attention scale into the q weight AND bias (exact for any bias) and
    # stack the three 1x1 convs into one channels-first (3C, C) weight.
    wqkv = jnp.concatenate([wq * scale, wk, wv], axis=0).astype(jnp.bfloat16)
    bqkv = jnp.concatenate([bq * scale, bk, bv], axis=0).astype(jnp.float32)[:, None]
    wp_bf = wp.astype(jnp.bfloat16)
    bp_col = bp.astype(jnp.float32)[:, None]

    ts1 = _pick_tile(HW, stats_tile)        # streaming stats tile
    tk = _pick_tile(HW, kv_tile)            # kv chunk == qkv projection tile
    tq = _pick_tile(HW, q_tile)
    nkc = HW // tk                          # number of kv chunks per batch

    def cparams(sem):
        # 56 MiB fits inside v7x's 64 MiB physical VMEM; ample headroom on v5e/v6e.
        return pltpu.CompilerParams(dimension_semantics=sem,
                                    vmem_limit_bytes=56 * 1024 * 1024)

    # --- pass 1: per-channel sum / sumsq ------------------------------------
    sums, sqsums = pl.pallas_call(
        gn_stats_kernel,
        out_shape=(jax.ShapeDtypeStruct((B, C, 1), jnp.float32),) * 2,
        grid_spec=pltpu.PrefetchScalarGridSpec(
            num_scalar_prefetch=0,
            grid=(B, HW // ts1),
            in_specs=[pl.BlockSpec((1, C, ts1), lambda b, t: (b, 0, t))],
            out_specs=(pl.BlockSpec((1, C, 1), lambda b, t: (b, 0, 0)),
                       pl.BlockSpec((1, C, 1), lambda b, t: (b, 0, 0))),
            scratch_shapes=[pltpu.VMEM((C, 1), jnp.float32),
                            pltpu.VMEM((C, 1), jnp.float32)]),
        compiler_params=cparams(("parallel", "arbitrary")),
    )(x_flat)

    # Tiny (B, C) GroupNorm finalize in plain XLA (no in-kernel (C, C) mask build).
    # NOTE: variance via E[x^2] - E[x]^2 in f32 (single streaming pass); matches
    # PyTorch's biased variance but can lose precision for large offsets.
    inv_n = 1.0 / float(HW * gs)
    gsum = jnp.sum(sums[..., 0].reshape(B, groups, gs), axis=-1)
    gsq = jnp.sum(sqsums[..., 0].reshape(B, groups, gs), axis=-1)
    mean_g = gsum * inv_n
    var_g = gsq * inv_n - mean_g * mean_g
    inv_std_g = jax.lax.rsqrt(var_g + eps)
    mean_c = jnp.repeat(mean_g, gs, axis=1)                # (B, C)
    inv_c = jnp.repeat(inv_std_g, gs, axis=1)
    s_col = (gamma[None, :] * inv_c)[:, :, None]           # h = x * s + t
    t_col = (beta[None, :] - mean_c * gamma[None, :] * inv_c)[:, :, None]

    # --- pass 2: normalize + fused q/k/v projection ---------------------------
    q_tok, k_ch, v_ch = pl.pallas_call(
        qkv_proj_kernel,
        out_shape=(jax.ShapeDtypeStruct((B, HW, C), jnp.bfloat16),
                   jax.ShapeDtypeStruct((B, nkc, C, tk), jnp.bfloat16),
                   jax.ShapeDtypeStruct((B, nkc, C, tk), jnp.bfloat16)),
        grid_spec=pltpu.PrefetchScalarGridSpec(
            num_scalar_prefetch=0,
            grid=(B, nkc),
            in_specs=[pl.BlockSpec((1, C, tk), lambda b, t: (b, 0, t)),
                      pl.BlockSpec((1, C, 1), lambda b, t: (b, 0, 0)),
                      pl.BlockSpec((1, C, 1), lambda b, t: (b, 0, 0)),
                      pl.BlockSpec((3 * C, C), lambda b, t: (0, 0)),
                      pl.BlockSpec((3 * C, 1), lambda b, t: (0, 0))],
            out_specs=(pl.BlockSpec((1, tk, C), lambda b, t: (b, t, 0)),
                       pl.BlockSpec((1, 1, C, tk), lambda b, t: (b, t, 0, 0)),
                       pl.BlockSpec((1, 1, C, tk), lambda b, t: (b, t, 0, 0)))),
        compiler_params=cparams(("parallel", "parallel")),
    )(x_flat, s_col, t_col, wqkv, bqkv)

    # --- pass 3: flash attention + out proj + residual ------------------------
    # Resident-K/V budget (per-core VMEM; v7x only has 64 MiB): hold the whole
    # batch's K+V if it fits, otherwise the largest chunk-multiple that does.
    kv_chunk_bytes = 2 * 2 * C * tk * 2        # K+V bf16, double-buffered, per chunk
    nb = max(1, min(nkc, kv_resident_budget // kv_chunk_bytes))
    while nkc % nb != 0:
        nb -= 1
    nkj = nkc // nb

    y_flat = pl.pallas_call(
        attn_kernel,
        out_shape=jax.ShapeDtypeStruct((B, C, HW), jnp.float32),
        grid_spec=pltpu.PrefetchScalarGridSpec(
            num_scalar_prefetch=0,
            grid=(B, HW // tq, nkj),
            in_specs=[pl.BlockSpec((1, C, tq), lambda b, qi, kj: (b, 0, qi)),
                      pl.BlockSpec((1, tq, C), lambda b, qi, kj: (b, qi, 0)),
                      pl.BlockSpec((1, nb, C, tk), lambda b, qi, kj: (b, kj, 0, 0)),
                      pl.BlockSpec((1, nb, C, tk), lambda b, qi, kj: (b, kj, 0, 0)),
                      pl.BlockSpec((C, C), lambda b, qi, kj: (0, 0)),
                      pl.BlockSpec((C, 1), lambda b, qi, kj: (0, 0))],
            out_specs=pl.BlockSpec((1, C, tq), lambda b, qi, kj: (b, 0, qi)),
            scratch_shapes=[pltpu.VMEM((tq, 1), jnp.float32),
                            pltpu.VMEM((tq, 1), jnp.float32),
                            pltpu.VMEM((tq, C), jnp.float32)]),
        compiler_params=cparams(("parallel", "parallel", "arbitrary")),
    )(x_flat, q_tok, k_ch, v_ch, wp_bf, bp_col)

    return y_flat.reshape(B, C, H, W)


# ---------------------------------------------------------------------------
# Parameters (mirror AttnBlock.initialize, native PyTorch layouts) + reference
# ---------------------------------------------------------------------------
def make_params(key, C):
    def xavier(k, out_ch, in_ch, gain=1.0):
        bound = gain * math.sqrt(6.0 / (in_ch + out_ch))
        return jax.random.uniform(k, (out_ch, in_ch), jnp.float32, -bound, bound)

    kq, kk, kv, kp = jax.random.split(key, 4)
    zeros = jnp.zeros((C,), jnp.float32)
    return (jnp.ones((C,), jnp.float32), zeros,            # GroupNorm gamma, beta
            xavier(kq, C, C), zeros,                       # proj_q  (out, in), bias
            xavier(kk, C, C), zeros,                       # proj_k
            xavier(kv, C, C), zeros,                       # proj_v
            xavier(kp, C, C, gain=1e-5), zeros)            # proj


def attn_block_reference(x, params):
    """Pure-JAX f32 reference of the PyTorch forward."""
    gamma, beta, wq, bq, wk, bk, wv, bv, wp, bp = params
    B, C, H, W = x.shape
    HW = H * W
    groups, eps = 32, 1e-5
    gs = C // groups

    xg = x.reshape(B, groups, gs, H, W)
    mean = jnp.mean(xg, axis=(2, 3, 4), keepdims=True)
    var = jnp.mean((xg - mean) ** 2, axis=(2, 3, 4), keepdims=True)
    h = ((xg - mean) / jnp.sqrt(var + eps)).reshape(B, C, H, W)
    h = h * gamma[None, :, None, None] + beta[None, :, None, None]
    hf = h.reshape(B, C, HW)

    q = jnp.einsum("oc,bcp->bpo", wq, hf) + bq[None, None, :]        # (B, HW, C)
    k = jnp.einsum("oc,bcp->bop", wk, hf) + bk[None, :, None]        # (B, C, HW)
    v = jnp.einsum("oc,bcp->bpo", wv, hf) + bv[None, None, :]        # (B, HW, C)
    att = jnp.einsum("bpc,bcr->bpr", q, k) * (float(C) ** (-0.5))
    att = jax.nn.softmax(att, axis=-1)
    h2 = jnp.einsum("bpr,bro->bpo", att, v)                          # (B, HW, C)
    out = jnp.einsum("oc,bpc->bop", wp, h2) + bp[None, :, None]      # (B, C, HW)
    return x + out.reshape(B, C, H, W)


if __name__ == "__main__":
    # GroupNorm(32, C) requires C % 32 == 0; C=128 keeps every (., C) block
    # 128-lane aligned (per perf review: do not benchmark/tune at C=64).
    B, C, H, W = 2, 128, 16, 16          # HW = 256
    key = jax.random.PRNGKey(0)
    kx, kp = jax.random.split(key)
    x = jax.random.normal(kx, (B, C, H, W), jnp.float32)
    params = make_params(kp, C)

    fwd = jax.jit(attn_block)

    y = jax.block_until_ready(fwd(x, params))
    y_ref = attn_block_reference(x, params)
    np.testing.assert_allclose(np.asarray(y), np.asarray(y_ref), atol=1e-4, rtol=1e-4)

    # Stronger numerics check: the spec's gain=1e-5 out-proj makes the attention
    # branch nearly invisible in the residual, so also validate with a unit-gain
    # out projection (bf16 MXU tolerances).
    params_big = params[:8] + (params[8] * 1e5, params[9])
    y2 = jax.block_until_ready(fwd(x, params_big))
    y2_ref = attn_block_reference(x, params_big)
    np.testing.assert_allclose(np.asarray(y2), np.asarray(y2_ref), atol=3e-2, rtol=3e-2)

    print("KERNEL_OK")
</pallas_src>

<mosaic_0001>
module attributes {stable_mosaic.version = 11 : i64} {
  func.func @gn_stats_kernel(%arg0: i32, %arg1: i32, %arg2: memref<1x128x256xf32, #tpu.memory_space<vmem>>, %arg3: memref<1x128x1xf32, #tpu.memory_space<vmem>>, %arg4: memref<1x128x1xf32, #tpu.memory_space<vmem>>, %arg5: memref<128x1xf32, #tpu.memory_space<vmem>>, %arg6: memref<128x1xf32, #tpu.memory_space<vmem>>) attributes {dimension_semantics = [#tpu.dimension_semantics<parallel>, #tpu.dimension_semantics<arbitrary>], iteration_bounds = array<i64: 2, 1>, scalar_prefetch = 0 : i64, scratch_operands = 2 : i64, tpu.core_type = #tpu.core_type<tc>, window_params = [{transform_indices = @transform_0, window_bounds = array<i64: 1, 128, 256>}, {transform_indices = @transform_1, window_bounds = array<i64: 1, 128, 1>}, {transform_indices = @transform_2, window_bounds = array<i64: 1, 128, 1>}]} {
    %c0_i32 = arith.constant 0 : i32
    %0 = arith.cmpi eq, %arg1, %c0_i32 : i32
    %1 = arith.extui %0 : i1 to i32
    %c0_i32_0 = arith.constant 0 : i32
    %2 = arith.cmpi ne, %1, %c0_i32_0 : i32
    scf.if %2 {
      %cst_14 = arith.constant 0.000000e+00 : f32
      %19 = vector.broadcast %cst_14 : f32 to vector<128x1xf32>
      %c0_15 = arith.constant 0 : index
      %c0_16 = arith.constant 0 : index
      %20 = vector.load %arg5[%c0_15, %c0_16] : memref<128x1xf32, #tpu.memory_space<vmem>>, vector<128x1xf32>
      tpu.vector_store %arg5[%c0_15, %c0_16], %19 {strides = array<i32>} : memref<128x1xf32, #tpu.memory_space<vmem>>, vector<128x1xf32>,
      %cst_17 = arith.constant 0.000000e+00 : f32
      %21 = vector.broadcast %cst_17 : f32 to vector<128x1xf32>
      %c0_18 = arith.constant 0 : index
      %c0_19 = arith.constant 0 : index
      %22 = vector.load %arg6[%c0_18, %c0_19] : memref<128x1xf32, #tpu.memory_space<vmem>>, vector<128x1xf32>
      tpu.vector_store %arg6[%c0_18, %c0_19], %21 {strides = array<i32>} : memref<128x1xf32, #tpu.memory_space<vmem>>, vector<128x1xf32>,
    } else {
    }
    %c0 = arith.constant 0 : index
    %c0_1 = arith.constant 0 : index
    %c0_2 = arith.constant 0 : index
    %3 = vector.load %arg2[%c0, %c0_1, %c0_2] : memref<1x128x256xf32, #tpu.memory_space<vmem>>, vector<1x128x256xf32>
    %4 = vector.shape_cast %3 : vector<1x128x256xf32> to vector<128x256xf32>
    %c0_3 = arith.constant 0 : index
    %c0_4 = arith.constant 0 : index
    %5 = vector.load %arg5[%c0_3, %c0_4] : memref<128x1xf32, #tpu.memory_space<vmem>>, vector<128x1xf32>
    %cst = arith.constant dense<0.000000e+00> : vector<128xf32>
    %6 = vector.multi_reduction <add>, %4, %cst [1] : vector<128x256xf32> to vector<128xf32>
    %7 = vector.shape_cast %6 : vector<128xf32> to vector<128x1xf32>
    %8 = arith.addf %5, %7 : vector<128x1xf32>
    %c0_5 = arith.constant 0 : index
    %c0_6 = arith.constant 0 : index
    %9 = vector.load %arg5[%c0_5, %c0_6] : memref<128x1xf32, #tpu.memory_space<vmem>>, vector<128x1xf32>
    tpu.vector_store %arg5[%c0_5, %c0_6], %8 {strides = array<i32>} : memref<128x1xf32, #tpu.memory_space<vmem>>, vector<128x1xf32>,
    %c0_7 = arith.constant 0 : index
    %c0_8 = arith.constant 0 : index
    %10 = vector.load %arg6[%c0_7, %c0_8] : memref<128x1xf32, #tpu.memory_space<vmem>>, vector<128x1xf32>
    %11 = arith.mulf %4, %4 : vector<128x256xf32>
    %cst_9 = arith.constant dense<0.000000e+00> : vector<128xf32>
    %12 = vector.multi_reduction <add>, %11, %cst_9 [1] : vector<128x256xf32> to vector<128xf32>
    %13 = vector.shape_cast %12 : vector<128xf32> to vector<128x1xf32>
    %14 = arith.addf %10, %13 : vector<128x1xf32>
    %c0_10 = arith.constant 0 : index
    %c0_11 = arith.constant 0 : index
    %15 = vector.load %arg6[%c0_10, %c0_11] : memref<128x1xf32, #tpu.memory_space<vmem>>, vector<128x1xf32>
    tpu.vector_store %arg6[%c0_10, %c0_11], %14 {strides = array<i32>} : memref<128x1xf32, #tpu.memory_space<vmem>>, vector<128x1xf32>,
    %c0_i32_12 = arith.constant 0 : i32
    %16 = arith.cmpi eq, %arg1, %c0_i32_12 : i32
    %17 = arith.extui %16 : i1 to i32
    %c0_i32_13 = arith.constant 0 : i32
    %18 = arith.cmpi ne, %17, %c0_i32_13 : i32
    scf.if %18 {
      %c0_14 = arith.constant 0 : index
      %c0_15 = arith.constant 0 : index
      %19 = vector.load %arg5[%c0_14, %c0_15] : memref<128x1xf32, #tpu.memory_space<vmem>>, vector<128x1xf32>
      %c0_16 = arith.constant 0 : index
      %c0_17 = arith.constant 0 : index
      %c0_18 = arith.constant 0 : index
      %20 = vector.load %arg3[%c0_16, %c0_17, %c0_18] : memref<1x128x1xf32, #tpu.memory_space<vmem>>, vector<1x128x1xf32>
      %21 = vector.shape_cast %20 : vector<1x128x1xf32> to vector<128x1xf32>
      %22 = vector.shape_cast %19 : vector<128x1xf32> to vector<1x128x1xf32>
      tpu.vector_store %arg3[%c0_16, %c0_17, %c0_18], %22 {strides = array<i32>} : memref<1x128x1xf32, #tpu.memory_space<vmem>>, vector<1x128x1xf32>,
      %c0_19 = arith.constant 0 : index
      %c0_20 = arith.constant 0 : index
      %23 = vector.load %arg6[%c0_19, %c0_20] : memref<128x1xf32, #tpu.memory_space<vmem>>, vector<128x1xf32>
      %c0_21 = arith.constant 0 : index
      %c0_22 = arith.constant 0 : index
      %c0_23 = arith.constant 0 : index
      %24 = vector.load %arg4[%c0_21, %c0_22, %c0_23] : memref<1x128x1xf32, #tpu.memory_space<vmem>>, vector<1x128x1xf32>
      %25 = vector.shape_cast %24 : vector<1x128x1xf32> to vector<128x1xf32>
      %26 = vector.shape_cast %23 : vector<128x1xf32> to vector<1x128x1xf32>
      tpu.vector_store %arg4[%c0_21, %c0_22, %c0_23], %26 {strides = array<i32>} : memref<1x128x1xf32, #tpu.memory_space<vmem>>, vector<1x128x1xf32>,
    } else {
    }
    return
  }
  func.func @transform_0(%arg0: i32, %arg1: i32) -> (i32, i32, i32) {
    %c0_i32 = arith.constant 0 : i32
    %c0_i32_0 = arith.constant 0 : i32
    return %arg0, %c0_i32, %arg1 : i32, i32, i32
  }
  func.func @transform_1(%arg0: i32, %arg1: i32) -> (i32, i32, i32) {
    %c0_i32 = arith.constant 0 : i32
    %c0_i32_0 = arith.constant 0 : i32
    %c0_i32_1 = arith.constant 0 : i32
    return %arg0, %c0_i32, %c0_i32_0 : i32, i32, i32
  }
  func.func @transform_2(%arg0: i32, %arg1: i32) -> (i32, i32, i32) {
    %c0_i32 = arith.constant 0 : i32
    %c0_i32_0 = arith.constant 0 : i32
    %c0_i32_1 = arith.constant 0 : i32
    return %arg0, %c0_i32, %c0_i32_0 : i32, i32, i32
  }
}

module attributes {stable_mosaic.version = 11 : i64} {
  func.func @qkv_proj_kernel(%arg0: i32, %arg1: i32, %arg2: memref<1x128x256xf32, #tpu.memory_space<vmem>>, %arg3: memref<1x128x1xf32, #tpu.memory_space<vmem>>, %arg4: memref<1x128x1xf32, #tpu.memory_space<vmem>>, %arg5: memref<384x128xbf16, #tpu.memory_space<vmem>>, %arg6: memref<384x1xf32, #tpu.memory_space<vmem>>, %arg7: memref<1x256x128xbf16, #tpu.memory_space<vmem>>, %arg8: memref<1x1x128x256xbf16, #tpu.memory_space<vmem>>, %arg9: memref<1x1x128x256xbf16, #tpu.memory_space<vmem>>) attributes {dimension_semantics = [#tpu.dimension_semantics<parallel>, #tpu.dimension_semantics<parallel>], iteration_bounds = array<i64: 2, 1>, scalar_prefetch = 0 : i64, scratch_operands = 0 : i64, tpu.core_type = #tpu.core_type<tc>, window_params = [{transform_indices = @transform_0, window_bounds = array<i64: 1, 128, 256>}, {transform_indices = @transform_1, window_bounds = array<i64: 1, 128, 1>}, {transform_indices = @transform_2, window_bounds = array<i64: 1, 128, 1>}, {pipeline_mode = #tpu.pipeline_mode<synchronous>, transform_indices = @transform_3, window_bounds = array<i64: 384, 128>}, {pipeline_mode = #tpu.pipeline_mode<synchronous>, transform_indices = @transform_4, window_bounds = array<i64: 384, 1>}, {transform_indices = @transform_5, window_bounds = array<i64: 1, 256, 128>}, {transform_indices = @transform_6, window_bounds = array<i64: 1, 1, 128, 256>}, {transform_indices = @transform_7, window_bounds = array<i64: 1, 1, 128, 256>}]} {
    %c0 = arith.constant 0 : index
    %c0_0 = arith.constant 0 : index
    %c0_1 = arith.constant 0 : index
    %0 = vector.load %arg2[%c0, %c0_0, %c0_1] : memref<1x128x256xf32, #tpu.memory_space<vmem>>, vector<1x128x256xf32>
    %1 = vector.shape_cast %0 : vector<1x128x256xf32> to vector<128x256xf32>
    %c0_2 = arith.constant 0 : index
    %c0_3 = arith.constant 0 : index
    %c0_4 = arith.constant 0 : index
    %2 = vector.load %arg3[%c0_2, %c0_3, %c0_4] : memref<1x128x1xf32, #tpu.memory_space<vmem>>, vector<1x128x1xf32>
    %3 = vector.shape_cast %2 : vector<1x128x1xf32> to vector<128x1xf32>
    %4 = vector.broadcast %3 : vector<128x1xf32> to vector<128x256xf32>
    %5 = arith.mulf %1, %4 : vector<128x256xf32>
    %c0_5 = arith.constant 0 : index
    %c0_6 = arith.constant 0 : index
    %c0_7 = arith.constant 0 : index
    %6 = vector.load %arg4[%c0_5, %c0_6, %c0_7] : memref<1x128x1xf32, #tpu.memory_space<vmem>>, vector<1x128x1xf32>
    %7 = vector.shape_cast %6 : vector<1x128x1xf32> to vector<128x1xf32>
    %8 = vector.broadcast %7 : vector<128x1xf32> to vector<128x256xf32>
    %9 = arith.addf %5, %8 : vector<128x256xf32>
    %10 = arith.truncf %9 : vector<128x256xf32> to vector<128x256xbf16>
    %c0_8 = arith.constant 0 : index
    %c0_9 = arith.constant 0 : index
    %11 = vector.load %arg5[%c0_8, %c0_9] : memref<384x128xbf16, #tpu.memory_space<vmem>>, vector<384x128xbf16>
    %cst = arith.constant dense<0.000000e+00> : vector<384x256xf32>
    %12 = tpu.matmul %11, %10, %cst {dimension_numbers = #tpu.dot_dimension_numbers<[1], [0], [0], [1], [0, 0, 1, 1], [], []>} : vector<384x128xbf16>, vector<128x256xbf16>, vector<384x256xf32> -> vector<384x256xf32>
    %c0_10 = arith.constant 0 : index
    %c0_11 = arith.constant 0 : index
    %13 = vector.load %arg6[%c0_10, %c0_11] : memref<384x1xf32, #tpu.memory_space<vmem>>, vector<384x1xf32>
    %14 = vector.broadcast %13 : vector<384x1xf32> to vector<384x256xf32>
    %15 = arith.addf %12, %14 : vector<384x256xf32>
    %16 = vector.extract_strided_slice %15 {offsets = [0, 0], sizes = [128, 256], strides = [1, 1]} : vector<384x256xf32> to vector<128x256xf32>
    %17 = tpu.transpose %16, [1, 0] : vector<128x256xf32> -> vector<256x128xf32>
    %18 = arith.truncf %17 : vector<256x128xf32> to vector<256x128xbf16>
    %c0_12 = arith.constant 0 : index
    %c0_13 = arith.constant 0 : index
    %c0_14 = arith.constant 0 : index
    %19 = vector.load %arg7[%c0_12, %c0_13, %c0_14] : memref<1x256x128xbf16, #tpu.memory_space<vmem>>, vector<1x256x128xbf16>
    %20 = vector.shape_cast %19 : vector<1x256x128xbf16> to vector<256x128xbf16>
    %21 = vector.shape_cast %18 : vector<256x128xbf16> to vector<1x256x128xbf16>
    tpu.vector_store %arg7[%c0_12, %c0_13, %c0_14], %21 {strides = array<i32>} : memref<1x256x128xbf16, #tpu.memory_space<vmem>>, vector<1x256x128xbf16>,
    %22 = vector.extract_strided_slice %15 {offsets = [128, 0], sizes = [128, 256], strides = [1, 1]} : vector<384x256xf32> to vector<128x256xf32>
    %23 = arith.truncf %22 : vector<128x256xf32> to vector<128x256xbf16>
    %c0_15 = arith.constant 0 : index
    %c0_16 = arith.constant 0 : index
    %c0_17 = arith.constant 0 : index
    %c0_18 = arith.constant 0 : index
    %24 = vector.load %arg8[%c0_15, %c0_16, %c0_17, %c0_18] : memref<1x1x128x256xbf16, #tpu.memory_space<vmem>>, vector<1x1x128x256xbf16>
    %25 = vector.shape_cast %24 : vector<1x1x128x256xbf16> to vector<128x256xbf16>
    %26 = vector.shape_cast %23 : vector<128x256xbf16> to vector<1x1x128x256xbf16>
    tpu.vector_store %arg8[%c0_15, %c0_16, %c0_17, %c0_18], %26 {strides = array<i32>} : memref<1x1x128x256xbf16, #tpu.memory_space<vmem>>, vector<1x1x128x256xbf16>,
    %27 = vector.extract_strided_slice %15 {offsets = [256, 0], sizes = [128, 256], strides = [1, 1]} : vector<384x256xf32> to vector<128x256xf32>
    %28 = arith.truncf %27 : vector<128x256xf32> to vector<128x256xbf16>
    %c0_19 = arith.constant 0 : index
    %c0_20 = arith.constant 0 : index
    %c0_21 = arith.constant 0 : index
    %c0_22 = arith.constant 0 : index
    %29 = vector.load %arg9[%c0_19, %c0_20, %c0_21, %c0_22] : memref<1x1x128x256xbf16, #tpu.memory_space<vmem>>, vector<1x1x128x256xbf16>
    %30 = vector.shape_cast %29 : vector<1x1x128x256xbf16> to vector<128x256xbf16>
    %31 = vector.shape_cast %28 : vector<128x256xbf16> to vector<1x1x128x256xbf16>
    tpu.vector_store %arg9[%c0_19, %c0_20, %c0_21, %c0_22], %31 {strides = array<i32>} : memref<1x1x128x256xbf16, #tpu.memory_space<vmem>>, vector<1x1x128x256xbf16>,
    return
  }
  func.func @transform_0(%arg0: i32, %arg1: i32) -> (i32, i32, i32) {
    %c0_i32 = arith.constant 0 : i32
    %c0_i32_0 = arith.constant 0 : i32
    return %arg0, %c0_i32, %arg1 : i32, i32, i32
  }
  func.func @transform_1(%arg0: i32, %arg1: i32) -> (i32, i32, i32) {
    %c0_i32 = arith.constant 0 : i32
    %c0_i32_0 = arith.constant 0 : i32
    %c0_i32_1 = arith.constant 0 : i32
    return %arg0, %c0_i32, %c0_i32_0 : i32, i32, i32
  }
  func.func @transform_2(%arg0: i32, %arg1: i32) -> (i32, i32, i32) {
    %c0_i32 = arith.constant 0 : i32
    %c0_i32_0 = arith.constant 0 : i32
    %c0_i32_1 = arith.constant 0 : i32
    return %arg0, %c0_i32, %c0_i32_0 : i32, i32, i32
  }
  func.func @transform_3(%arg0: i32, %arg1: i32) -> (i32, i32) {
    %c0_i32 = arith.constant 0 : i32
    %c0_i32_0 = arith.constant 0 : i32
    %c0_i32_1 = arith.constant 0 : i32
    return %c0_i32, %c0_i32_0 : i32, i32
  }
  func.func @transform_4(%arg0: i32, %arg1: i32) -> (i32, i32) {
    %c0_i32 = arith.constant 0 : i32
    %c0_i32_0 = arith.constant 0 : i32
    %c0_i32_1 = arith.constant 0 : i32
    return %c0_i32, %c0_i32_0 : i32, i32
  }
  func.func @transform_5(%arg0: i32, %arg1: i32) -> (i32, i32, i32) {
    %c0_i32 = arith.constant 0 : i32
    %c0_i32_0 = arith.constant 0 : i32
    return %arg0, %arg1, %c0_i32 : i32, i32, i32
  }
  func.func @transform_6(%arg0: i32, %arg1: i32) -> (i32, i32, i32, i32) {
    %c0_i32 = arith.constant 0 : i32
    %c0_i32_0 = arith.constant 0 : i32
    %c0_i32_1 = arith.constant 0 : i32
    return %arg0, %arg1, %c0_i32, %c0_i32_0 : i32, i32, i32, i32
  }
  func.func @transform_7(%arg0: i32, %arg1: i32) -> (i32, i32, i32, i32) {
    %c0_i32 = arith.constant 0 : i32
    %c0_i32_0 = arith.constant 0 : i32
    %c0_i32_1 = arith.constant 0 : i32
    return %arg0, %arg1, %c0_i32, %c0_i32_0 : i32, i32, i32, i32
  }
}

module attributes {stable_mosaic.version = 11 : i64} {
  func.func @attn_kernel(%arg0: i32, %arg1: i32, %arg2: i32, %arg3: memref<1x128x256xf32, #tpu.memory_space<vmem>>, %arg4: memref<1x256x128xbf16, #tpu.memory_space<vmem>>, %arg5: memref<1x1x128x256xbf16, #tpu.memory_space<vmem>>, %arg6: memref<1x1x128x256xbf16, #tpu.memory_space<vmem>>, %arg7: memref<128x128xbf16, #tpu.memory_space<vmem>>, %arg8: memref<128x1xf32, #tpu.memory_space<vmem>>, %arg9: memref<1x128x256xf32, #tpu.memory_space<vmem>>, %arg10: memref<256x1xf32, #tpu.memory_space<vmem>>, %arg11: memref<256x1xf32, #tpu.memory_space<vmem>>, %arg12: memref<256x128xf32, #tpu.memory_space<vmem>>) attributes {dimension_semantics = [#tpu.dimension_semantics<parallel>, #tpu.dimension_semantics<parallel>, #tpu.dimension_semantics<arbitrary>], iteration_bounds = array<i64: 2, 1, 1>, scalar_prefetch = 0 : i64, scratch_operands = 3 : i64, tpu.core_type = #tpu.core_type<tc>, window_params = [{transform_indices = @transform_0, window_bounds = array<i64: 1, 128, 256>}, {transform_indices = @transform_1, window_bounds = array<i64: 1, 256, 128>}, {transform_indices = @transform_2, window_bounds = array<i64: 1, 1, 128, 256>}, {transform_indices = @transform_3, window_bounds = array<i64: 1, 1, 128, 256>}, {pipeline_mode = #tpu.pipeline_mode<synchronous>, transform_indices = @transform_4, window_bounds = array<i64: 128, 128>}, {pipeline_mode = #tpu.pipeline_mode<synchronous>, transform_indices = @transform_5, window_bounds = array<i64: 128, 1>}, {transform_indices = @transform_6, window_bounds = array<i64: 1, 128, 256>}]} {
    %c0_i32 = arith.constant 0 : i32
    %0 = arith.cmpi eq, %arg2, %c0_i32 : i32
    %1 = arith.extui %0 : i1 to i32
    %c0_i32_0 = arith.constant 0 : i32
    %2 = arith.cmpi ne, %1, %c0_i32_0 : i32
    scf.if %2 {
      %cst_29 = arith.constant 0xFF800000 : f32
      %40 = vector.broadcast %cst_29 : f32 to vector<256x1xf32>
      %c0_30 = arith.constant 0 : index
      %c0_31 = arith.constant 0 : index
      %41 = vector.load %arg10[%c0_30, %c0_31] : memref<256x1xf32, #tpu.memory_space<vmem>>, vector<256x1xf32>
      tpu.vector_store %arg10[%c0_30, %c0_31], %40 {strides = array<i32>} : memref<256x1xf32, #tpu.memory_space<vmem>>, vector<256x1xf32>,
      %cst_32 = arith.constant 0.000000e+00 : f32
      %42 = vector.broadcast %cst_32 : f32 to vector<256x1xf32>
      %c0_33 = arith.constant 0 : index
      %c0_34 = arith.constant 0 : index
      %43 = vector.load %arg11[%c0_33, %c0_34] : memref<256x1xf32, #tpu.memory_space<vmem>>, vector<256x1xf32>
      tpu.vector_store %arg11[%c0_33, %c0_34], %42 {strides = array<i32>} : memref<256x1xf32, #tpu.memory_space<vmem>>, vector<256x1xf32>,
      %cst_35 = arith.constant 0.000000e+00 : f32
      %44 = vector.broadcast %cst_35 : f32 to vector<256x128xf32>
      %c0_36 = arith.constant 0 : index
      %c0_37 = arith.constant 0 : index
      %45 = vector.load %arg12[%c0_36, %c0_37] : memref<256x128xf32, #tpu.memory_space<vmem>>, vector<256x128xf32>
      tpu.vector_store %arg12[%c0_36, %c0_37], %44 {strides = array<i32>} : memref<256x128xf32, #tpu.memory_space<vmem>>, vector<256x128xf32>,
    } else {
    }
    %c0 = arith.constant 0 : index
    %c0_1 = arith.constant 0 : index
    %c0_2 = arith.constant 0 : index
    %3 = vector.load %arg4[%c0, %c0_1, %c0_2] : memref<1x256x128xbf16, #tpu.memory_space<vmem>>, vector<1x256x128xbf16>
    %4 = vector.shape_cast %3 : vector<1x256x128xbf16> to vector<256x128xbf16>
    %c0_i32_3 = arith.constant 0 : i32
    %c1_i32 = arith.constant 1 : i32
    %5 = arith.muli %c0_i32_3, %c1_i32 : i32
    %c0_i32_4 = arith.constant 0 : i32
    %6 = arith.addi %c0_i32_4, %5 : i32
    %c0_5 = arith.constant 0 : index
    %7 = arith.index_cast %6 : i32 to index
    %c0_6 = arith.constant 0 : index
    %c0_7 = arith.constant 0 : index
    %8 = vector.load %arg5[%c0_5, %7, %c0_6, %c0_7] : memref<1x1x128x256xbf16, #tpu.memory_space<vmem>>, vector<1x1x128x256xbf16>
    %9 = vector.shape_cast %8 : vector<1x1x128x256xbf16> to vector<128x256xbf16>
    %c0_8 = arith.constant 0 : index
    %10 = arith.index_cast %6 : i32 to index
    %c0_9 = arith.constant 0 : index
    %c0_10 = arith.constant 0 : index
    %11 = vector.load %arg6[%c0_8, %10, %c0_9, %c0_10] : memref<1x1x128x256xbf16, #tpu.memory_space<vmem>>, vector<1x1x128x256xbf16>
    %12 = vector.shape_cast %11 : vector<1x1x128x256xbf16> to vector<128x256xbf16>
    %cst = arith.constant dense<0.000000e+00> : vector<256x256xf32>
    %13 = tpu.matmul %4, %9, %cst {dimension_numbers = #tpu.dot_dimension_numbers<[1], [0], [0], [1], [0, 0, 1, 1], [], []>} : vector<256x128xbf16>, vector<128x256xbf16>, vector<256x256xf32> -> vector<256x256xf32>
    %c0_11 = arith.constant 0 : index
    %c0_12 = arith.constant 0 : index
    %14 = vector.load %arg10[%c0_11, %c0_12] : memref<256x1xf32, #tpu.memory_space<vmem>>, vector<256x1xf32>
    %cst_13 = arith.constant dense<0xFF800000> : vector<256xf32>
    %15 = vector.multi_reduction <maximumf>, %13, %cst_13 [1] : vector<256x256xf32> to vector<256xf32>
    %16 = vector.shape_cast %15 : vector<256xf32> to vector<256x1xf32>
    %17 = arith.maximumf %14, %16 : vector<256x1xf32>
    %18 = arith.subf %14, %17 : vector<256x1xf32>
    %19 = math.exp %18 : vector<256x1xf32>
    %20 = vector.broadcast %17 : vector<256x1xf32> to vector<256x256xf32>
    %21 = arith.subf %13, %20 : vector<256x256xf32>
    %22 = math.exp %21 : vector<256x256xf32>
    %c0_14 = arith.constant 0 : index
    %c0_15 = arith.constant 0 : index
    %23 = vector.load %arg11[%c0_14, %c0_15] : memref<256x1xf32, #tpu.memory_space<vmem>>, vector<256x1xf32>
    %24 = arith.mulf %19, %23 : vector<256x1xf32>
    %cst_16 = arith.constant dense<0.000000e+00> : vector<256xf32>
    %25 = vector.multi_reduction <add>, %22, %cst_16 [1] : vector<256x256xf32> to vector<256xf32>
    %26 = vector.shape_cast %25 : vector<256xf32> to vector<256x1xf32>
    %27 = arith.addf %24, %26 : vector<256x1xf32>
    %c0_17 = arith.constant 0 : index
    %c0_18 = arith.constant 0 : index
    %28 = vector.load %arg11[%c0_17, %c0_18] : memref<256x1xf32, #tpu.memory_space<vmem>>, vector<256x1xf32>
    tpu.vector_store %arg11[%c0_17, %c0_18], %27 {strides = array<i32>} : memref<256x1xf32, #tpu.memory_space<vmem>>, vector<256x1xf32>,
    %c0_19 = arith.constant 0 : index
    %c0_20 = arith.constant 0 : index
    %29 = vector.load %arg12[%c0_19, %c0_20] : memref<256x128xf32, #tpu.memory_space<vmem>>, vector<256x128xf32>
    %30 = vector.broadcast %19 : vector<256x1xf32> to vector<256x128xf32>
    %31 = arith.mulf %30, %29 : vector<256x128xf32>
    %32 = arith.truncf %22 : vector<256x256xf32> to vector<256x256xbf16>
    %cst_21 = arith.constant dense<0.000000e+00> : vector<256x128xf32>
    %33 = tpu.matmul %32, %12, %cst_21 {dimension_numbers = #tpu.dot_dimension_numbers<[1], [1], [0], [0], [0, 0, 1, 0], [], []>} : vector<256x256xbf16>, vector<128x256xbf16>, vector<256x128xf32> -> vector<256x128xf32>
    %34 = arith.addf %31, %33 : vector<256x128xf32>
    %c0_22 = arith.constant 0 : index
    %c0_23 = arith.constant 0 : index
    %35 = vector.load %arg12[%c0_22, %c0_23] : memref<256x128xf32, #tpu.memory_space<vmem>>, vector<256x128xf32>
    tpu.vector_store %arg12[%c0_22, %c0_23], %34 {strides = array<i32>} : memref<256x128xf32, #tpu.memory_space<vmem>>, vector<256x128xf32>,
    %c0_24 = arith.constant 0 : index
    %c0_25 = arith.constant 0 : index
    %36 = vector.load %arg10[%c0_24, %c0_25] : memref<256x1xf32, #tpu.memory_space<vmem>>, vector<256x1xf32>
    tpu.vector_store %arg10[%c0_24, %c0_25], %17 {strides = array<i32>} : memref<256x1xf32, #tpu.memory_space<vmem>>, vector<256x1xf32>,
    %c1_i32_26 = arith.constant 1 : i32
    %c0_i32_27 = arith.constant 0 : i32
    %37 = arith.cmpi eq, %arg2, %c0_i32_27 : i32
    %38 = arith.extui %37 : i1 to i32
    %c0_i32_28 = arith.constant 0 : i32
    %39 = arith.cmpi ne, %38, %c0_i32_28 : i32
    scf.if %39 {
      %c0_29 = arith.constant 0 : index
      %c0_30 = arith.constant 0 : index
      %40 = vector.load %arg12[%c0_29, %c0_30] : memref<256x128xf32, #tpu.memory_space<vmem>>, vector<256x128xf32>
      %c0_31 = arith.constant 0 : index
      %c0_32 = arith.constant 0 : index
      %41 = vector.load %arg11[%c0_31, %c0_32] : memref<256x1xf32, #tpu.memory_space<vmem>>, vector<256x1xf32>
      %42 = tpu.reciprocal %41 : vector<256x1xf32> -> vector<256x1xf32>
      %43 = vector.broadcast %42 : vector<256x1xf32> to vector<256x128xf32>
      %44 = arith.mulf %40, %43 : vector<256x128xf32>
      %45 = arith.truncf %44 : vector<256x128xf32> to vector<256x128xbf16>
      %c0_33 = arith.constant 0 : index
      %c0_34 = arith.constant 0 : index
      %46 = vector.load %arg7[%c0_33, %c0_34] : memref<128x128xbf16, #tpu.memory_space<vmem>>, vector<128x128xbf16>
      %cst_35 = arith.constant dense<0.000000e+00> : vector<128x256xf32>
      %47 = tpu.matmul %46, %45, %cst_35 {dimension_numbers = #tpu.dot_dimension_numbers<[1], [1], [0], [0], [0, 0, 1, 0], [], []>} : vector<128x128xbf16>, vector<256x128xbf16>, vector<128x256xf32> -> vector<128x256xf32>
      %c0_36 = arith.constant 0 : index
      %c0_37 = arith.constant 0 : index
      %48 = vector.load %arg8[%c0_36, %c0_37] : memref<128x1xf32, #tpu.memory_space<vmem>>, vector<128x1xf32>
      %49 = vector.broadcast %48 : vector<128x1xf32> to vector<128x256xf32>
      %50 = arith.addf %47, %49 : vector<128x256xf32>
      %c0_38 = arith.constant 0 : index
      %c0_39 = arith.constant 0 : index
      %c0_40 = arith.constant 0 : index
      %51 = vector.load %arg3[%c0_38, %c0_39, %c0_40] : memref<1x128x256xf32, #tpu.memory_space<vmem>>, vector<1x128x256xf32>
      %52 = vector.shape_cast %51 : vector<1x128x256xf32> to vector<128x256xf32>
      %53 = arith.addf %52, %50 : vector<128x256xf32>
      %c0_41 = arith.constant 0 : index
      %c0_42 = arith.constant 0 : index
      %c0_43 = arith.constant 0 : index
      %54 = vector.load %arg9[%c0_41, %c0_42, %c0_43] : memref<1x128x256xf32, #tpu.memory_space<vmem>>, vector<1x128x256xf32>
      %55 = vector.shape_cast %54 : vector<1x128x256xf32> to vector<128x256xf32>
      %56 = vector.shape_cast %53 : vector<128x256xf32> to vector<1x128x256xf32>
      tpu.vector_store %arg9[%c0_41, %c0_42, %c0_43], %56 {strides = array<i32>} : memref<1x128x256xf32, #tpu.memory_space<vmem>>, vector<1x128x256xf32>,
    } else {
    }
    return
  }
  func.func @transform_0(%arg0: i32, %arg1: i32, %arg2: i32) -> (i32, i32, i32) {
    %c0_i32 = arith.constant 0 : i32
    %c0_i32_0 = arith.constant 0 : i32
    return %arg0, %c0_i32, %arg1 : i32, i32, i32
  }
  func.func @transform_1(%arg0: i32, %arg1: i32, %arg2: i32) -> (i32, i32, i32) {
    %c0_i32 = arith.constant 0 : i32
    %c0_i32_0 = arith.constant 0 : i32
    return %arg0, %arg1, %c0_i32 : i32, i32, i32
  }
  func.func @transform_2(%arg0: i32, %arg1: i32, %arg2: i32) -> (i32, i32, i32, i32) {
    %c0_i32 = arith.constant 0 : i32
    %c0_i32_0 = arith.constant 0 : i32
    %c0_i32_1 = arith.constant 0 : i32
    return %arg0, %arg2, %c0_i32, %c0_i32_0 : i32, i32, i32, i32
  }
  func.func @transform_3(%arg0: i32, %arg1: i32, %arg2: i32) -> (i32, i32, i32, i32) {
    %c0_i32 = arith.constant 0 : i32
    %c0_i32_0 = arith.constant 0 : i32
    %c0_i32_1 = arith.constant 0 : i32
    return %arg0, %arg2, %c0_i32, %c0_i32_0 : i32, i32, i32, i32
  }
  func.func @transform_4(%arg0: i32, %arg1: i32, %arg2: i32) -> (i32, i32) {
    %c0_i32 = arith.constant 0 : i32
    %c0_i32_0 = arith.constant 0 : i32
    %c0_i32_1 = arith.constant 0 : i32
    return %c0_i32, %c0_i32_0 : i32, i32
  }
  func.func @transform_5(%arg0: i32, %arg1: i32, %arg2: i32) -> (i32, i32) {
    %c0_i32 = arith.constant 0 : i32
    %c0_i32_0 = arith.constant 0 : i32
    %c0_i32_1 = arith.constant 0 : i32
    return %c0_i32, %c0_i32_0 : i32, i32
  }
  func.func @transform_6(%arg0: i32, %arg1: i32, %arg2: i32) -> (i32, i32, i32) {
    %c0_i32 = arith.constant 0 : i32
    %c0_i32_0 = arith.constant 0 : i32
    return %arg0, %c0_i32, %arg1 : i32, i32, i32
  }
}

</mosaic_0001>

<llo_original>
// kernel: squeeze.2
$region0: #{squeeze.2}
  %s0 = inlined_call_operand.vmem [shape: f32[2,128], index: 0, kind: input, shape index: {}]
  %s1 = inlined_call_operand.vmem [shape: f32[2,32,4], index: 1, kind: output, shape index: {}]
  $region1: #{squeeze.2} parent=0
    #allocation0 [shape = 'u8[4096]{0}', space=vmem, size = 0x1000, scoped, tag = 'scoped mem for input reshape']
    %s3 = ssub.s32 4, 1
    %v4 = vld [vmem:[%s0] sm:%s3]
    %5 = vst [vmem:[#allocation0] sm:%s3] %v4
    %v6 = vld [vmem:[#allocation0] sm:$0x3]
    %vm7 = vcmask 31744
    %8 = vst.msk [vmem:[%s1] sm:$0x1] %vm7, %v6
    %s9 = scalar_lea.vmem %s1, 31
    %10 = vst.msk [vmem:[%s9] sm:$0x2] %vm7, %v6
    %v11 = vld [vmem:[#allocation0] sm:$0x3]
    %12 = vrot.lane.b32.xlu0 %v11, 124
    %v13 = vpop.permute.xlu0 %12
    %vm14 = vcmask 31744
    %s15 = scalar_lea.vmem %s1, 1
    %16 = vst.msk [vmem:[%s15] sm:$0x1] %vm14, %v13
    %s17 = scalar_lea.vmem %s1, 32
    %18 = vst.msk [vmem:[%s17] sm:$0x2] %vm14, %v13
    %v19 = vld [vmem:[#allocation0] sm:$0x3]
    %20 = vrot.lane.b32.xlu0 %v19, 120
    %v21 = vpop.permute.xlu0 %20
    %vm22 = vcmask 31744
    %s23 = scalar_lea.vmem %s1, 2
    %24 = vst.msk [vmem:[%s23] sm:$0x1] %vm22, %v21
    %s25 = scalar_lea.vmem %s1, 33
    %26 = vst.msk [vmem:[%s25] sm:$0x2] %vm22, %v21
    %v27 = vld [vmem:[#allocation0] sm:$0x3]
    %28 = vrot.lane.b32.xlu0 %v27, 116
    %v29 = vpop.permute.xlu0 %28
    %vm30 = vcmask 31744
    %s31 = scalar_lea.vmem %s1, 3
    %32 = vst.msk [vmem:[%s31] sm:$0x1] %vm30, %v29
    %s33 = scalar_lea.vmem %s1, 34
    %34 = vst.msk [vmem:[%s33] sm:$0x2] %vm30, %v29
    %v35 = vld [vmem:[#allocation0] sm:$0x3]
    %36 = vrot.lane.b32.xlu0 %v35, 112
    %v37 = vpop.permute.xlu0 %36
    %vm38 = vcmask 31744
    %s39 = scalar_lea.vmem %s1, 4
    %40 = vst.msk [vmem:[%s39] sm:$0x1] %vm38, %v37
    %s41 = scalar_lea.vmem %s1, 35
    %42 = vst.msk [vmem:[%s41] sm:$0x2] %vm38, %v37
    %v43 = vld [vmem:[#allocation0] sm:$0x3]
    %44 = vrot.lane.b32.xlu0 %v43, 108
    %v45 = vpop.permute.xlu0 %44
    %vm46 = vcmask 31744
    %s47 = scalar_lea.vmem %s1, 5
    %48 = vst.msk [vmem:[%s47] sm:$0x1] %vm46, %v45
    %s49 = scalar_lea.vmem %s1, 36
    %50 = vst.msk [vmem:[%s49] sm:$0x2] %vm46, %v45
    %v51 = vld [vmem:[#allocation0] sm:$0x3]
    %52 = vrot.lane.b32.xlu0 %v51, 104
    %v53 = vpop.permute.xlu0 %52
    %vm54 = vcmask 31744
    %s55 = scalar_lea.vmem %s1, 6
    %56 = vst.msk [vmem:[%s55] sm:$0x1] %vm54, %v53
    %s57 = scalar_lea.vmem %s1, 37
    %58 = vst.msk [vmem:[%s57] sm:$0x2] %vm54, %v53
    %v59 = vld [vmem:[#allocation0] sm:$0x3]
    %60 = vrot.lane.b32.xlu0 %v59, 100
    %v61 = vpop.permute.xlu0 %60
    %vm62 = vcmask 31744
    %s63 = scalar_lea.vmem %s1, 7
    %64 = vst.msk [vmem:[%s63] sm:$0x1] %vm62, %v61
    %s65 = scalar_lea.vmem %s1, 38
    %66 = vst.msk [vmem:[%s65] sm:$0x2] %vm62, %v61
    %v67 = vld [vmem:[#allocation0] sm:$0x3]
    %68 = vrot.lane.b32.xlu0 %v67, 96
    %v69 = vpop.permute.xlu0 %68
    %vm70 = vcmask 31744
    %s71 = scalar_lea.vmem %s1, 8
    %72 = vst.msk [vmem:[%s71] sm:$0x1] %vm70, %v69
    %s73 = scalar_lea.vmem %s1, 39
    %74 = vst.msk [vmem:[%s73] sm:$0x2] %vm70, %v69
    %v75 = vld [vmem:[#allocation0] sm:$0x3]
    %76 = vrot.lane.b32.xlu0 %v75, 92
    %v77 = vpop.permute.xlu0 %76
    %vm78 = vcmask 31744
    %s79 = scalar_lea.vmem %s1, 9
    %80 = vst.msk [vmem:[%s79] sm:$0x1] %vm78, %v77
    %s81 = scalar_lea.vmem %s1, 40
    %82 = vst.msk [vmem:[%s81] sm:$0x2] %vm78, %v77
    %v83 = vld [vmem:[#allocation0] sm:$0x3]
    %84 = vrot.lane.b32.xlu0 %v83, 88
    %v85 = vpop.permute.xlu0 %84
    %vm86 = vcmask 31744
    %s87 = scalar_lea.vmem %s1, 10
    %88 = vst.msk [vmem:[%s87] sm:$0x1] %vm86, %v85
    %s89 = scalar_lea.vmem %s1, 41
    %90 = vst.msk [vmem:[%s89] sm:$0x2] %vm86, %v85
    %v91 = vld [vmem:[#allocation0] sm:$0x3]
    %92 = vrot.lane.b32.xlu0 %v91, 84
    %v93 = vpop.permute.xlu0 %92
    %vm94 = vcmask 31744
    %s95 = scalar_lea.vmem %s1, 11
    %96 = vst.msk [vmem:[%s95] sm:$0x1] %vm94, %v93
    %s97 = scalar_lea.vmem %s1, 42
    %98 = vst.msk [vmem:[%s97] sm:$0x2] %vm94, %v93
    %v99 = vld [vmem:[#allocation0] sm:$0x3]
    %100 = vrot.lane.b32.xlu0 %v99, 80
    %v101 = vpop.permute.xlu0 %100
    %vm102 = vcmask 31744
    %s103 = scalar_lea.vmem %s1, 12
    %104 = vst.msk [vmem:[%s103] sm:$0x1] %vm102, %v101
    %s105 = scalar_lea.vmem %s1, 43
    %106 = vst.msk [vmem:[%s105] sm:$0x2] %vm102, %v101
    %v107 = vld [vmem:[#allocation0] sm:$0x3]
    %108 = vrot.lane.b32.xlu0 %v107, 76
    %v109 = vpop.permute.xlu0 %108
    %vm110 = vcmask 31744
    %s111 = scalar_lea.vmem %s1, 13
    %112 = vst.msk [vmem:[%s111] sm:$0x1] %vm110, %v109
    %s113 = scalar_lea.vmem %s1, 44
    %114 = vst.msk [vmem:[%s113] sm:$0x2] %vm110, %v109
    %v115 = vld [vmem:[#allocation0] sm:$0x3]
    %116 = vrot.lane.b32.xlu0 %v115, 72
    %v117 = vpop.permute.xlu0 %116
    %vm118 = vcmask 31744
    %s119 = scalar_lea.vmem %s1, 14
    %120 = vst.msk [vmem:[%s119] sm:$0x1] %vm118, %v117
    %s121 = scalar_lea.vmem %s1, 45
    %122 = vst.msk [vmem:[%s121] sm:$0x2] %vm118, %v117
    %v123 = vld [vmem:[#allocation0] sm:$0x3]
    %124 = vrot.lane.b32.xlu0 %v123, 68
    %v125 = vpop.permute.xlu0 %124
    %vm126 = vcmask 31744
    %s127 = scalar_lea.vmem %s1, 15
    %128 = vst.msk [vmem:[%s127] sm:$0x1] %vm126, %v125
    %s129 = scalar_lea.vmem %s1, 46
    %130 = vst.msk [vmem:[%s129] sm:$0x2] %vm126, %v125
    %v131 = vld [vmem:[#allocation0] sm:$0x3]
    %132 = vrot.lane.b32.xlu0 %v131, 64
    %v133 = vpop.permute.xlu0 %132
    %vm134 = vcmask 31744
    %s135 = scalar_lea.vmem %s1, 16
    %136 = vst.msk [vmem:[%s135] sm:$0x1] %vm134, %v133
    %s137 = scalar_lea.vmem %s1, 47
    %138 = vst.msk [vmem:[%s137] sm:$0x2] %vm134, %v133
    %v139 = vld [vmem:[#allocation0] sm:$0x3]
    %140 = vrot.lane.b32.xlu0 %v139, 60
    %v141 = vpop.permute.xlu0 %140
    %vm142 = vcmask 31744
    %s143 = scalar_lea.vmem %s1, 17
    %144 = vst.msk [vmem:[%s143] sm:$0x1] %vm142, %v141
    %s145 = scalar_lea.vmem %s1, 48
    %146 = vst.msk [vmem:[%s145] sm:$0x2] %vm142, %v141
    %v147 = vld [vmem:[#allocation0] sm:$0x3]
    %148 = vrot.lane.b32.xlu0 %v147, 56
    %v149 = vpop.permute.xlu0 %148
    %vm150 = vcmask 31744
    %s151 = scalar_lea.vmem %s1, 18
    %152 = vst.msk [vmem:[%s151] sm:$0x1] %vm150, %v149
    %s153 = scalar_lea.vmem %s1, 49
    %154 = vst.msk [vmem:[%s153] sm:$0x2] %vm150, %v149
    %v155 = vld [vmem:[#allocation0] sm:$0x3]
    %156 = vrot.lane.b32.xlu0 %v155, 52
    %v157 = vpop.permute.xlu0 %156
    %vm158 = vcmask 31744
    %s159 = scalar_lea.vmem %s1, 19
    %160 = vst.msk [vmem:[%s159] sm:$0x1] %vm158, %v157
    %s161 = scalar_lea.vmem %s1, 50
    %162 = vst.msk [vmem:[%s161] sm:$0x2] %vm158, %v157
    %v163 = vld [vmem:[#allocation0] sm:$0x3]
    %164 = vrot.lane.b32.xlu0 %v163, 48
    %v165 = vpop.permute.xlu0 %164
    %vm166 = vcmask 31744
    %s167 = scalar_lea.vmem %s1, 20
    %168 = vst.msk [vmem:[%s167] sm:$0x1] %vm166, %v165
    %s169 = scalar_lea.vmem %s1, 51
    %170 = vst.msk [vmem:[%s169] sm:$0x2] %vm166, %v165
    %v171 = vld [vmem:[#allocation0] sm:$0x3]
    %172 = vrot.lane.b32.xlu0 %v171, 44
    %v173 = vpop.permute.xlu0 %172
    %vm174 = vcmask 31744
    %s175 = scalar_lea.vmem %s1, 21
    %176 = vst.msk [vmem:[%s175] sm:$0x1] %vm174, %v173
    %s177 = scalar_lea.vmem %s1, 52
    %178 = vst.msk [vmem:[%s177] sm:$0x2] %vm174, %v173
    %v179 = vld [vmem:[#allocation0] sm:$0x3]
    %180 = vrot.lane.b32.xlu0 %v179, 40
    %v181 = vpop.permute.xlu0 %180
    %vm182 = vcmask 31744
    %s183 = scalar_lea.vmem %s1, 22
    %184 = vst.msk [vmem:[%s183] sm:$0x1] %vm182, %v181
    %s185 = scalar_lea.vmem %s1, 53
    %186 = vst.msk [vmem:[%s185] sm:$0x2] %vm182, %v181
    %v187 = vld [vmem:[#allocation0] sm:$0x3]
    %188 = vrot.lane.b32.xlu0 %v187, 36
    %v189 = vpop.permute.xlu0 %188
    %vm190 = vcmask 31744
    %s191 = scalar_lea.vmem %s1, 23
    %192 = vst.msk [vmem:[%s191] sm:$0x1] %vm190, %v189
    %s193 = scalar_lea.vmem %s1, 54
    %194 = vst.msk [vmem:[%s193] sm:$0x2] %vm190, %v189
    %v195 = vld [vmem:[#allocation0] sm:$0x3]
    %196 = vrot.lane.b32.xlu0 %v195, 32
    %v197 = vpop.permute.xlu0 %196
    %vm198 = vcmask 31744
    %s199 = scalar_lea.vmem %s1, 24
    %200 = vst.msk [vmem:[%s199] sm:$0x1] %vm198, %v197
    %s201 = scalar_lea.vmem %s1, 55
    %202 = vst.msk [vmem:[%s201] sm:$0x2] %vm198, %v197
    %v203 = vld [vmem:[#allocation0] sm:$0x3]
    %204 = vrot.lane.b32.xlu0 %v203, 28
    %v205 = vpop.permute.xlu0 %204
    %vm206 = vcmask 31744
    %s207 = scalar_lea.vmem %s1, 25
    %208 = vst.msk [vmem:[%s207] sm:$0x1] %vm206, %v205
    %s209 = scalar_lea.vmem %s1, 56
    %210 = vst.msk [vmem:[%s209] sm:$0x2] %vm206, %v205
    %v211 = vld [vmem:[#allocation0] sm:$0x3]
    %212 = vrot.lane.b32.xlu0 %v211, 24
    %v213 = vpop.permute.xlu0 %212
    %vm214 = vcmask 31744
    %s215 = scalar_lea.vmem %s1, 26
    %216 = vst.msk [vmem:[%s215] sm:$0x1] %vm214, %v213
    %s217 = scalar_lea.vmem %s1, 57
    %218 = vst.msk [vmem:[%s217] sm:$0x2] %vm214, %v213
    %v219 = vld [vmem:[#allocation0] sm:$0x3]
    %220 = vrot.lane.b32.xlu0 %v219, 20
    %v221 = vpop.permute.xlu0 %220
    %vm222 = vcmask 31744
    %s223 = scalar_lea.vmem %s1, 27
    %224 = vst.msk [vmem:[%s223] sm:$0x1] %vm222, %v221
    %s225 = scalar_lea.vmem %s1, 58
    %226 = vst.msk [vmem:[%s225] sm:$0x2] %vm222, %v221
    %v227 = vld [vmem:[#allocation0] sm:$0x3]
    %228 = vrot.lane.b32.xlu0 %v227, 16
    %v229 = vpop.permute.xlu0 %228
    %vm230 = vcmask 31744
    %s231 = scalar_lea.vmem %s1, 28
    %232 = vst.msk [vmem:[%s231] sm:$0x1] %vm230, %v229
    %s233 = scalar_lea.vmem %s1, 59
    %234 = vst.msk [vmem:[%s233] sm:$0x2] %vm230, %v229
    %v235 = vld [vmem:[#allocation0] sm:$0x3]
    %236 = vrot.lane.b32.xlu0 %v235, 12
    %v237 = vpop.permute.xlu0 %236
    %vm238 = vcmask 31744
    %s239 = scalar_lea.vmem %s1, 29
    %240 = vst.msk [vmem:[%s239] sm:$0x1] %vm238, %v237
    %s241 = scalar_lea.vmem %s1, 60
    %242 = vst.msk [vmem:[%s241] sm:$0x2] %vm238, %v237
    %v243 = vld [vmem:[#allocation0] sm:$0x3]
    %244 = vrot.lane.b32.xlu0 %v243, 8
    %v245 = vpop.permute.xlu0 %244
    %vm246 = vcmask 31744
    %s247 = scalar_lea.vmem %s1, 30
    %248 = vst.msk [vmem:[%s247] sm:$0x1] %vm246, %v245
    %s249 = scalar_lea.vmem %s1, 61
    %250 = vst.msk [vmem:[%s249] sm:$0x2] %vm246, %v245
    %v251 = vld [vmem:[#allocation0] sm:$0x3]
    %252 = vrot.lane.b32.xlu0 %v251, 4
    %v253 = vpop.permute.xlu0 %252
    %vm254 = vcmask 31744
    %s255 = scalar_lea.vmem %s1, 31
    %256 = vst.msk [vmem:[%s255] sm:$0x1] %vm254, %v253
    %s257 = scalar_lea.vmem %s1, 62
    %258 = vst.msk [vmem:[%s257] sm:$0x2] %vm254, %v253

// kernel: attn_block.3
$region0: #{attn_block.3}
  #allocation0 [shape = 'u32[]', space=smem, size = 0x4, offset = 0x4, fixed_abs, tag = 'smem constant byte address 0x4 - core index']
  #allocation1 [shape = 'u32[72,128]{1,0:T(1,128)}', space=vmem, size = 0x9000, scoped, tag = 'internal scratch']
  #allocation2 [shape = 'f32[128,1]{1,0:T(8,128)}', space=vmem, size = 0x10000, scoped, tag = 'scratch operand']
  #allocation3 [shape = 'f32[128,1]{1,0:T(8,128)}', space=vmem, size = 0x10000, scoped, tag = 'scratch operand']
  %s0 = inlined_call_operand.vmem [shape: f32[2,128,256], index: 0, kind: input, shape index: {}]
  %s1 = inlined_call_operand.vmem [shape: f32[2,128,1], index: 1, kind: output, shape index: {0}]
  %s2 = inlined_call_operand.vmem [shape: f32[2,128,1], index: 2, kind: output, shape index: {1}]
  %3 = xla_tuple %s1, %s2
  %s4 = sld [smem:[#allocation0]]
  $region53: #{attn_block.3} parent=0
    _
  %s6 = ssub.s32 1, %s4
  %s7 = scalar_select 0, %s6, %s4
  loop: start=0, step=1, limit=4
  $region2: #{attn_block.3} parent=0 // loop_pre_header
    _
  $region3: #{attn_block.3} parent=0 // loop_header
    %s9 = sphi 0, %s13
    %p10 = scmp.ge.s32.totalorder %s9, 4
    %s16 = sphi 0, %s28
    %s17 = sphi 0, %s24
    %s18 = sphi 0, %s16
    %s19 = sphi 0, %s17
    %s20 = sphi 0, %s18
    %s21 = sphi 0, %s19
    %s33 = sphi 0, %s35
    %s36 = sphi 0, %s33
    %s37 = sphi 0, %s36
    %s53 = sphi 0, %s37
    %s59 = sphi 0, %s61
    %s62 = sphi 0, %s59
    %s63 = sphi 0, %s62
    %s79 = sphi 0, %s63
    %s85 = sphi 0, %s87
    %s88 = sphi 0, %s85
    %s89 = sphi 0, %s88
    %s105 = sphi 0, %s89
  $region4: #{attn_block.3} parent=0 // loop_header_branch
    %12 = sbr.rel (%p10) target = $region8
  $region5: #{attn_block.3} parent=0 // loop_body
    %s14 = ssub.s32 %s9, 1
    %s15 = ssub.s32 %s9, 2
    %s22 = sadd.s32 1, %s17
    %p23 = scmp.ge.s32.totalorder %s22, 1
    %s24 = scalar_select %p23, 0, %s22
    %s25 = sadd.s32 1, %s16
    %s26 = scalar_select %p23, %s25, %s16
    %p27 = scmp.ge.s32.totalorder %s26, 2
    %s28 = scalar_select %p27, 0, %s26
    %s29 = ssub.s32 %s16, %s28
    %s30 = ssub.s32 %s17, %s24
    %s31 = sor.u32 %s29, %s30
    %p32 = scmp.eq.s32.totalorder %s31, 0
    %s34 = sadd.s32 %s33, 1
    %s35 = scalar_select %p32, %s33, %s34
    %p38 = pneg %p32
    %p39 = scmp.eq.s32.totalorder %s9, 1
    %p40 = por %p38, %p39
    %p41 = scmp.ne.s32.totalorder %s33, %s36
    %p42 = scmp.eq.s32.totalorder %s9, 0
    %p43 = por %p41, %p42
    %p44 = scmp.ne.s32.totalorder %s33, %s36
    %p45 = scmp.eq.s32.totalorder %s14, 1
    %p46 = por %p44, %p45
    %p47 = scmp.ne.s32.totalorder %s36, %s37
    %p48 = scmp.eq.s32.totalorder %s14, 0
    %p49 = por %p47, %p48
    %p50 = scmp.ne.s32.totalorder %s36, %s37
    %p51 = scmp.eq.s32.totalorder %s15, 1
    %p52 = por %p50, %p51
    %p54 = scmp.ne.s32.totalorder %s37, %s53
    %p55 = scmp.eq.s32.totalorder %s15, 0
    %p56 = por %p54, %p55
    %s57 = ssub.s32 %s16, %s28
    %p58 = scmp.eq.s32.totalorder %s57, 0
    %s60 = sadd.s32 %s59, 1
    %s61 = scalar_select %p58, %s59, %s60
    %p64 = pneg %p58
    %p65 = scmp.eq.s32.totalorder %s9, 1
    %p66 = por %p64, %p65
    %p67 = scmp.ne.s32.totalorder %s59, %s62
    %p68 = scmp.eq.s32.totalorder %s9, 0
    %p69 = por %p67, %p68
    %p70 = scmp.ne.s32.totalorder %s59, %s62
    %p71 = scmp.eq.s32.totalorder %s14, 1
    %p72 = por %p70, %p71
    %p73 = scmp.ne.s32.totalorder %s62, %s63
    %p74 = scmp.eq.s32.totalorder %s14, 0
    %p75 = por %p73, %p74
    %p76 = scmp.ne.s32.totalorder %s62, %s63
    %p77 = scmp.eq.s32.totalorder %s15, 1
    %p78 = por %p76, %p77
    %p80 = scmp.ne.s32.totalorder %s63, %s79
    %p81 = scmp.eq.s32.totalorder %s15, 0
    %p82 = por %p80, %p81
    %s83 = ssub.s32 %s16, %s28
    %p84 = scmp.eq.s32.totalorder %s83, 0
    %s86 = sadd.s32 %s85, 1
    %s87 = scalar_select %p84, %s85, %s86
    %p90 = pneg %p84
    %p91 = scmp.eq.s32.totalorder %s9, 1
    %p92 = por %p90, %p91
    %p93 = scmp.ne.s32.totalorder %s85, %s88
    %p94 = scmp.eq.s32.totalorder %s9, 0
    %p95 = por %p93, %p94
    %p96 = scmp.ne.s32.totalorder %s85, %s88
    %p97 = scmp.eq.s32.totalorder %s14, 1
    %p98 = por %p96, %p97
    %p99 = scmp.ne.s32.totalorder %s88, %s89
    %p100 = scmp.eq.s32.totalorder %s14, 0
    %p101 = por %p99, %p100
    %p102 = scmp.ne.s32.totalorder %s88, %s89
    %p103 = scmp.eq.s32.totalorder %s15, 1
    %p104 = por %p102, %p103
    %p106 = scmp.ne.s32.totalorder %s89, %s105
    %p107 = scmp.eq.s32.totalorder %s15, 0
    %p108 = por %p106, %p107
    %p109 = scmp.le.s32.totalorder 1, %s9
    %p110 = scmp.lt.s32.totalorder %s9, 3
    %p111 = pnand %p109, %p110
    %p112 = pneg %p111
    // Predicated region
    $region9: #{attn_block.3} parent=5 // pred_check
      _
    $region10: #{attn_block.3} parent=5 // pred_check_branch
      %114 = sbr.rel (%p111) target = $region12
    $region11: #{attn_block.3} parent=5 // pred_region
      %s115 = ssub.s32 %s9, 1
    $region12: #{attn_block.3} parent=5 // pred_fallthru
      _
    %p116 = scmp.lt.s32.totalorder %s9, 2
    // Predicated region
    $region13: #{attn_block.3} parent=5 // pred_check
      %p117 = pneg %p116
    $region14: #{attn_block.3} parent=5 // pred_check_branch
      %119 = sbr.rel (%p117) target = $region16
    $region15: #{attn_block.3} parent=5 // pred_region
      // Predicated region
      $region17: #{attn_block.3} parent=15 // pred_check
        %p120 = pneg %p43
      $region18: #{attn_block.3} parent=15 // pred_check_branch
        %122 = sbr.rel (%p120) target = $region20
      $region19: #{attn_block.3} parent=15 // pred_region
        %s123 = smul.u32 2, %s17
        %p124 = scmp.lt.s32.totalorder %s16, 1
        %s125 = scalar_select %p124, %s16, 1
        %p126 = scmp.lt.s32.totalorder %s123, 1
        %s127 = scalar_select %p126, %s123, 1
        %s128 = smul.addr %s125, 32
        %s129 = sadd.s32 %s127, %s128
        %s130 = smul.addr %s129, 8
        %s131 = scalar_lea.vmem %s0, %s130
        %s132 = smul.u32 2, %s17
      $region20: #{attn_block.3} parent=15 // pred_fallthru
        _
    $region16: #{attn_block.3} parent=5 // pred_fallthru
      _
    %p133 = scmp.le.s32.totalorder 1, %s9
    %p134 = scmp.lt.s32.totalorder %s9, 3
    %p135 = pnand %p133, %p134
    %p136 = pneg %p135
    // Predicated region
    $region21: #{attn_block.3} parent=5 // pred_check
      _
    $region22: #{attn_block.3} parent=5 // pred_check_branch
      %138 = sbr.rel (%p135) target = $region24
    $region23: #{attn_block.3} parent=5 // pred_region
      %s139 = ssub.s32 %s9, 1
      %s140 = smul.u32 2, %s19
      %p141 = scmp.lt.s32.totalorder %s18, 1
      %s142 = scalar_select %p141, %s18, 1
      %p143 = scmp.lt.s32.totalorder %s140, 1
      %s144 = scalar_select %p143, %s140, 1
      %s145 = smul.addr %s142, 32
      %s146 = sadd.s32 %s144, %s145
      %s147 = smul.addr %s146, 8
      %s148 = scalar_lea.vmem %s0, %s147
      %p149 = pneg %p49
      %p150 = pneg %p46
      %p151 = pneg %p75
      %p152 = pneg %p72
      %p153 = scmp.lt.s32.totalorder %s18, 1
      %s154 = scalar_select %p153, %s18, 1
      %s155 = smul.addr %s154, 16
      %s156 = smul.addr %s155, 8
      %s157 = scalar_lea.vmem %s1, %s156
      %p158 = pneg %p101
      %p159 = pneg %p98
      %p160 = scmp.lt.s32.totalorder %s18, 1
      %s161 = scalar_select %p160, %s18, 1
      %s162 = smul.addr %s161, 16
      %s163 = smul.addr %s162, 8
      %s164 = scalar_lea.vmem %s2, %s163
      %s165 = smul.u32 2, %s19
      %p166 = scmp.lt.s32.totalorder %s18, 1
      %s167 = scalar_select %p166, %s18, 1
      %p168 = scmp.lt.s32.totalorder %s165, 1
      %s169 = scalar_select %p168, %s165, 1
      %s170 = smul.addr %s167, 32
      %s171 = sadd.s32 %s169, %s170
      %s172 = smul.addr %s171, 8
      %s173 = scalar_lea.vmem %s0, %s172
      %s174 = smul.u32 2, %s19
      %p175 = scmp.lt.s32.totalorder %s18, 1
      %s176 = scalar_select %p175, %s18, 1
      %s177 = smul.addr %s176, 16
      %s178 = smul.addr %s177, 8
      %s179 = scalar_lea.vmem %s1, %s178
      %p180 = scmp.lt.s32.totalorder %s18, 1
      %s181 = scalar_select %p180, %s18, 1
      %s182 = smul.addr %s181, 16
      %s183 = smul.addr %s182, 8
      %s184 = scalar_lea.vmem %s2, %s183
      %p185 = scmp.eq.s32.totalorder %s19, 0
      // Predicated region
      $region25: #{attn_block.3} parent=23 // pred_check
        %p186 = pneg %p185
      $region26: #{attn_block.3} parent=23 // pred_check_branch
        %188 = sbr.rel (%p186) target = $region28
      $region27: #{attn_block.3} parent=23 // pred_region
        %vm189 = vcmask 7168
        %190 = vst.msk [vmem:[#allocation2] sm:$0xff] %vm189, 0.0
        %191 = vst.msk [vmem:[#allocation2 + $0x8] sm:$0xff] %vm189, 0.0
        %192 = vst.msk [vmem:[#allocation2 + $0x10] sm:$0xff] %vm189, 0.0
        %193 = vst.msk [vmem:[#allocation2 + $0x18] sm:$0xff] %vm189, 0.0
        %194 = vst.msk [vmem:[#allocation2 + $0x20] sm:$0xff] %vm189, 0.0
        %195 = vst.msk [vmem:[#allocation2 + $0x28] sm:$0xff] %vm189, 0.0
        %196 = vst.msk [vmem:[#allocation2 + $0x30] sm:$0xff] %vm189, 0.0
        %197 = vst.msk [vmem:[#allocation2 + $0x38] sm:$0xff] %vm189, 0.0
        %198 = vst.msk [vmem:[#allocation2 + $0x40] sm:$0xff] %vm189, 0.0
        %199 = vst.msk [vmem:[#allocation2 + $0x48] sm:$0xff] %vm189, 0.0
        %200 = vst.msk [vmem:[#allocation2 + $0x50] sm:$0xff] %vm189, 0.0
        %201 = vst.msk [vmem:[#allocation2 + $0x58] sm:$0xff] %vm189, 0.0
        %202 = vst.msk [vmem:[#allocation2 + $0x60] sm:$0xff] %vm189, 0.0
        %203 = vst.msk [vmem:[#allocation2 + $0x68] sm:$0xff] %vm189, 0.0
        %204 = vst.msk [vmem:[#allocation2 + $0x70] sm:$0xff] %vm189, 0.0
        %205 = vst.msk [vmem:[#allocation2 + $0x78] sm:$0xff] %vm189, 0.0
        %206 = vst.msk [vmem:[#allocation3] sm:$0xff] %vm189, 0.0
        %207 = vst.msk [vmem:[#allocation3 + $0x8] sm:$0xff] %vm189, 0.0
        %208 = vst.msk [vmem:[#allocation3 + $0x10] sm:$0xff] %vm189, 0.0
        %209 = vst.msk [vmem:[#allocation3 + $0x18] sm:$0xff] %vm189, 0.0
        %210 = vst.msk [vmem:[#allocation3 + $0x20] sm:$0xff] %vm189, 0.0
        %211 = vst.msk [vmem:[#allocation3 + $0x28] sm:$0xff] %vm189, 0.0
        %212 = vst.msk [vmem:[#allocation3 + $0x30] sm:$0xff] %vm189, 0.0
        %213 = vst.msk [vmem:[#allocation3 + $0x38] sm:$0xff] %vm189, 0.0
        %214 = vst.msk [vmem:[#allocation3 + $0x40] sm:$0xff] %vm189, 0.0
        %215 = vst.msk [vmem:[#allocation3 + $0x48] sm:$0xff] %vm189, 0.0
        %216 = vst.msk [vmem:[#allocation3 + $0x50] sm:$0xff] %vm189, 0.0
        %217 = vst.msk [vmem:[#allocation3 + $0x58] sm:$0xff] %vm189, 0.0
        %218 = vst.msk [vmem:[#allocation3 + $0x60] sm:$0xff] %vm189, 0.0
        %219 = vst.msk [vmem:[#allocation3 + $0x68] sm:$0xff] %vm189, 0.0
        %220 = vst.msk [vmem:[#allocation3 + $0x70] sm:$0xff] %vm189, 0.0
        %221 = vst.msk [vmem:[#allocation3 + $0x78] sm:$0xff] %vm189, 0.0
      $region28: #{attn_block.3} parent=23 // pred_fallthru
        _
      %v222 = vld [vmem:[%s173] sm:$0xff]
      %v223 = vld [vmem:[%s173 + $0x8] sm:$0xff]
      %v224 = vld [vmem:[%s173 + $0x10] sm:$0xff]
      %v225 = vld [vmem:[%s173 + $0x18] sm:$0xff]
      %v226 = vld [vmem:[%s173 + $0x20] sm:$0xff]
      %v227 = vld [vmem:[%s173 + $0x28] sm:$0xff]
      %v228 = vld [vmem:[%s173 + $0x30] sm:$0xff]
      %v229 = vld [vmem:[%s173 + $0x38] sm:$0xff]
      %v230 = vld [vmem:[%s173 + $0x40] sm:$0xff]
      %v231 = vld [vmem:[%s173 + $0x48] sm:$0xff]
      %v232 = vld [vmem:[%s173 + $0x50] sm:$0xff]
      %v233 = vld [vmem:[%s173 + $0x58] sm:$0xff]
      %v234 = vld [vmem:[%s173 + $0x60] sm:$0xff]
      %v235 = vld [vmem:[%s173 + $0x68] sm:$0xff]
      %v236 = vld [vmem:[%s173 + $0x70] sm:$0xff]
      %v237 = vld [vmem:[%s173 + $0x78] sm:$0xff]
      %v238 = vld [vmem:[%s173 + $0x80] sm:$0xff]
      %v239 = vld [vmem:[%s173 + $0x88] sm:$0xff]
      %v240 = vld [vmem:[%s173 + $0x90] sm:$0xff]
      %v241 = vld [vmem:[%s173 + $0x98] sm:$0xff]
      %v242 = vld [vmem:[%s173 + $0xa0] sm:$0xff]
      %v243 = vld [vmem:[%s173 + $0xa8] sm:$0xff]
      %v244 = vld [vmem:[%s173 + $0xb0] sm:$0xff]
      %v245 = vld [vmem:[%s173 + $0xb8] sm:$0xff]
      %v246 = vld [vmem:[%s173 + $0xc0] sm:$0xff]
      %v247 = vld [vmem:[%s173 + $0xc8] sm:$0xff]
      %v248 = vld [vmem:[%s173 + $0xd0] sm:$0xff]
      %v249 = vld [vmem:[%s173 + $0xd8] sm:$0xff]
      %v250 = vld [vmem:[%s173 + $0xe0] sm:$0xff]
      %v251 = vld [vmem:[%s173 + $0xe8] sm:$0xff]
      %v252 = vld [vmem:[%s173 + $0xf0] sm:$0xff]
      %v253 = vld [vmem:[%s173 + $0xf8] sm:$0xff]
      %v254 = vld [vmem:[#allocation2] sm:$0xff]
      %v255 = vld [vmem:[#allocation2 + $0x8] sm:$0xff]
      %v256 = vld [vmem:[#allocation2 + $0x10] sm:$0xff]
      %v257 = vld [vmem:[#allocation2 + $0x18] sm:$0xff]
      %v258 = vld [vmem:[#allocation2 + $0x20] sm:$0xff]
      %v259 = vld [vmem:[#allocation2 + $0x28] sm:$0xff]
      %v260 = vld [vmem:[#allocation2 + $0x30] sm:$0xff]
      %v261 = vld [vmem:[#allocation2 + $0x38] sm:$0xff]
      %v262 = vld [vmem:[#allocation2 + $0x40] sm:$0xff]
      %v263 = vld [vmem:[#allocation2 + $0x48] sm:$0xff]
      %v264 = vld [vmem:[#allocation2 + $0x50] sm:$0xff]
      %v265 = vld [vmem:[#allocation2 + $0x58] sm:$0xff]
      %v266 = vld [vmem:[#allocation2 + $0x60] sm:$0xff]
      %v267 = vld [vmem:[#allocation2 + $0x68] sm:$0xff]
      %v268 = vld [vmem:[#allocation2 + $0x70] sm:$0xff]
      %v269 = vld [vmem:[#allocation2 + $0x78] sm:$0xff]
      %v270 = vadd.f32 %v222, %v223
      %271 = vadd.xlane.f32.xlu0 %v270
      %v272 = vpop.xlane.xlu0 %271
      %v273 = vadd.f32 %v224, %v225
      %274 = vadd.xlane.f32.xlu0 %v273
      %v275 = vpop.xlane.xlu0 %274
      %v276 = vadd.f32 %v226, %v227
      %277 = vadd.xlane.f32.xlu0 %v276
      %v278 = vpop.xlane.xlu0 %277
      %v279 = vadd.f32 %v228, %v229
      %280 = vadd.xlane.f32.xlu0 %v279
      %v281 = vpop.xlane.xlu0 %280
      %v282 = vadd.f32 %v230, %v231
      %283 = vadd.xlane.f32.xlu0 %v282
      %v284 = vpop.xlane.xlu0 %283
      %v285 = vadd.f32 %v232, %v233
      %286 = vadd.xlane.f32.xlu0 %v285
      %v287 = vpop.xlane.xlu0 %286
      %v288 = vadd.f32 %v234, %v235
      %289 = vadd.xlane.f32.xlu0 %v288
      %v290 = vpop.xlane.xlu0 %289
      %v291 = vadd.f32 %v236, %v237
      %292 = vadd.xlane.f32.xlu0 %v291
      %v293 = vpop.xlane.xlu0 %292
      %v294 = vadd.f32 %v238, %v239
      %295 = vadd.xlane.f32.xlu0 %v294
      %v296 = vpop.xlane.xlu0 %295
      %v297 = vadd.f32 %v240, %v241
      %298 = vadd.xlane.f32.xlu0 %v297
      %v299 = vpop.xlane.xlu0 %298
      %v300 = vadd.f32 %v242, %v243
      %301 = vadd.xlane.f32.xlu0 %v300
      %v302 = vpop.xlane.xlu0 %301
      %v303 = vadd.f32 %v244, %v245
      %304 = vadd.xlane.f32.xlu0 %v303
      %v305 = vpop.xlane.xlu0 %304
      %v306 = vadd.f32 %v246, %v247
      %307 = vadd.xlane.f32.xlu0 %v306
      %v308 = vpop.xlane.xlu0 %307
      %v309 = vadd.f32 %v248, %v249
      %310 = vadd.xlane.f32.xlu0 %v309
      %v311 = vpop.xlane.xlu0 %310
      %v312 = vadd.f32 %v250, %v251
      %313 = vadd.xlane.f32.xlu0 %v312
      %v314 = vpop.xlane.xlu0 %313
      %v315 = vadd.f32 %v252, %v253
      %316 = vadd.xlane.f32.xlu0 %v315
      %v317 = vpop.xlane.xlu0 %316
      %v318 = vadd.f32 %v254, %v272
      %v319 = vadd.f32 %v255, %v275
      %v320 = vadd.f32 %v256, %v278
      %v321 = vadd.f32 %v257, %v281
      %v322 = vadd.f32 %v258, %v284
      %v323 = vadd.f32 %v259, %v287
      %v324 = vadd.f32 %v260, %v290
      %v325 = vadd.f32 %v261, %v293
      %v326 = vadd.f32 %v262, %v296
      %v327 = vadd.f32 %v263, %v299
      %v328 = vadd.f32 %v264, %v302
      %v329 = vadd.f32 %v265, %v305
      %v330 = vadd.f32 %v266, %v308
      %v331 = vadd.f32 %v267, %v311
      %v332 = vadd.f32 %v268, %v314
      %v333 = vadd.f32 %v269, %v317
      %vm334 = vcmask 7168
      %335 = vst.msk [vmem:[#allocation2] sm:$0xff] %vm334, %v318
      %336 = vst.msk [vmem:[#allocation2 + $0x8] sm:$0xff] %vm334, %v319
      %337 = vst.msk [vmem:[#allocation2 + $0x10] sm:$0xff] %vm334, %v320
      %338 = vst.msk [vmem:[#allocation2 + $0x18] sm:$0xff] %vm334, %v321
      %339 = vst.msk [vmem:[#allocation2 + $0x20] sm:$0xff] %vm334, %v322
      %340 = vst.msk [vmem:[#allocation2 + $0x28] sm:$0xff] %vm334, %v323
      %341 = vst.msk [vmem:[#allocation2 + $0x30] sm:$0xff] %vm334, %v324
      %342 = vst.msk [vmem:[#allocation2 + $0x38] sm:$0xff] %vm334, %v325
      %343 = vst.msk [vmem:[#allocation2 + $0x40] sm:$0xff] %vm334, %v326
      %344 = vst.msk [vmem:[#allocation2 + $0x48] sm:$0xff] %vm334, %v327
      %345 = vst.msk [vmem:[#allocation2 + $0x50] sm:$0xff] %vm334, %v328
      %346 = vst.msk [vmem:[#allocation2 + $0x58] sm:$0xff] %vm334, %v329
      %347 = vst.msk [vmem:[#allocation2 + $0x60] sm:$0xff] %vm334, %v330
      %348 = vst.msk [vmem:[#allocation2 + $0x68] sm:$0xff] %vm334, %v331
      %349 = vst.msk [vmem:[#allocation2 + $0x70] sm:$0xff] %vm334, %v332
      %350 = vst.msk [vmem:[#allocation2 + $0x78] sm:$0xff] %vm334, %v333
      %v351 = vld [vmem:[#allocation3] sm:$0xff]
      %v352 = vld [vmem:[#allocation3 + $0x8] sm:$0xff]
      %v353 = vld [vmem:[#allocation3 + $0x10] sm:$0xff]
      %v354 = vld [vmem:[#allocation3 + $0x18] sm:$0xff]
      %v355 = vld [vmem:[#allocation3 + $0x20] sm:$0xff]
      %v356 = vld [vmem:[#allocation3 + $0x28] sm:$0xff]
      %v357 = vld [vmem:[#allocation3 + $0x30] sm:$0xff]
      %v358 = vld [vmem:[#allocation3 + $0x38] sm:$0xff]
      %v359 = vld [vmem:[#allocation3 + $0x40] sm:$0xff]
      %v360 = vld [vmem:[#allocation3 + $0x48] sm:$0xff]
      %v361 = vld [vmem:[#allocation3 + $0x50] sm:$0xff]
      %v362 = vld [vmem:[#allocation3 + $0x58] sm:$0xff]
      %v363 = vld [vmem:[#allocation3 + $0x60] sm:$0xff]
      %v364 = vld [vmem:[#allocation3 + $0x68] sm:$0xff]
      %v365 = vld [vmem:[#allocation3 + $0x70] sm:$0xff]
      %v366 = vld [vmem:[#allocation3 + $0x78] sm:$0xff]
      %v367 = vmul.f32 %v222, %v222
      %v368 = vmul.f32 %v223, %v223
      %v369 = vmul.f32 %v224, %v224
      %v370 = vmul.f32 %v225, %v225
      %v371 = vmul.f32 %v226, %v226
      %v372 = vmul.f32 %v227, %v227
      %v373 = vmul.f32 %v228, %v228
      %v374 = vmul.f32 %v229, %v229
      %v375 = vmul.f32 %v230, %v230
      %v376 = vmul.f32 %v231, %v231
      %v377 = vmul.f32 %v232, %v232
      %v378 = vmul.f32 %v233, %v233
      %v379 = vmul.f32 %v234, %v234
      %v380 = vmul.f32 %v235, %v235
      %v381 = vmul.f32 %v236, %v236
      %v382 = vmul.f32 %v237, %v237
      %v383 = vmul.f32 %v238, %v238
      %v384 = vmul.f32 %v239, %v239
      %v385 = vmul.f32 %v240, %v240
      %v386 = vmul.f32 %v241, %v241
      %v387 = vmul.f32 %v242, %v242
      %v388 = vmul.f32 %v243, %v243
      %v389 = vmul.f32 %v244, %v244
      %v390 = vmul.f32 %v245, %v245
      %v391 = vmul.f32 %v246, %v246
      %v392 = vmul.f32 %v247, %v247
      %v393 = vmul.f32 %v248, %v248
      %v394 = vmul.f32 %v249, %v249
      %v395 = vmul.f32 %v250, %v250
      %v396 = vmul.f32 %v251, %v251
      %v397 = vmul.f32 %v252, %v252
      %v398 = vmul.f32 %v253, %v253
      %v399 = vadd.f32 %v367, %v368
      %400 = vadd.xlane.f32.xlu0 %v399
      %v401 = vpop.xlane.xlu0 %400
      %v402 = vadd.f32 %v369, %v370
      %403 = vadd.xlane.f32.xlu0 %v402
      %v404 = vpop.xlane.xlu0 %403
      %v405 = vadd.f32 %v371, %v372
      %406 = vadd.xlane.f32.xlu0 %v405
      %v407 = vpop.xlane.xlu0 %406
      %v408 = vadd.f32 %v373, %v374
      %409 = vadd.xlane.f32.xlu0 %v408
      %v410 = vpop.xlane.xlu0 %409
      %v411 = vadd.f32 %v375, %v376
      %412 = vadd.xlane.f32.xlu0 %v411
      %v413 = vpop.xlane.xlu0 %412
      %v414 = vadd.f32 %v377, %v378
      %415 = vadd.xlane.f32.xlu0 %v414
      %v416 = vpop.xlane.xlu0 %415
      %v417 = vadd.f32 %v379, %v380
      %418 = vadd.xlane.f32.xlu0 %v417
      %v419 = vpop.xlane.xlu0 %418
      %v420 = vadd.f32 %v381, %v382
      %421 = vadd.xlane.f32.xlu0 %v420
      %v422 = vpop.xlane.xlu0 %421
      %v423 = vadd.f32 %v383, %v384
      %424 = vadd.xlane.f32.xlu0 %v423
      %v425 = vpop.xlane.xlu0 %424
      %v426 = vadd.f32 %v385, %v386
      %427 = vadd.xlane.f32.xlu0 %v426
      %v428 = vpop.xlane.xlu0 %427
      %v429 = vadd.f32 %v387, %v388
      %430 = vadd.xlane.f32.xlu0 %v429
      %v431 = vpop.xlane.xlu0 %430
      %v432 = vadd.f32 %v389, %v390
      %433 = vadd.xlane.f32.xlu0 %v432
      %v434 = vpop.xlane.xlu0 %433
      %v435 = vadd.f32 %v391, %v392
      %436 = vadd.xlane.f32.xlu0 %v435
      %v437 = vpop.xlane.xlu0 %436
      %v438 = vadd.f32 %v393, %v394
      %439 = vadd.xlane.f32.xlu0 %v438
      %v440 = vpop.xlane.xlu0 %439
      %v441 = vadd.f32 %v395, %v396
      %442 = vadd.xlane.f32.xlu0 %v441
      %v443 = vpop.xlane.xlu0 %442
      %v444 = vadd.f32 %v397, %v398
      %445 = vadd.xlane.f32.xlu0 %v444
      %v446 = vpop.xlane.xlu0 %445
      %v447 = vadd.f32 %v351, %v401
      %v448 = vadd.f32 %v352, %v404
      %v449 = vadd.f32 %v353, %v407
      %v450 = vadd.f32 %v354, %v410
      %v451 = vadd.f32 %v355, %v413
      %v452 = vadd.f32 %v356, %v416
      %v453 = vadd.f32 %v357, %v419
      %v454 = vadd.f32 %v358, %v422
      %v455 = vadd.f32 %v359, %v425
      %v456 = vadd.f32 %v360, %v428
      %v457 = vadd.f32 %v361, %v431
      %v458 = vadd.f32 %v362, %v434
      %v459 = vadd.f32 %v363, %v437
      %v460 = vadd.f32 %v364, %v440
      %v461 = vadd.f32 %v365, %v443
      %v462 = vadd.f32 %v366, %v446
      %463 = vst.msk [vmem:[#allocation3] sm:$0xff] %vm334, %v447
      %464 = vst.msk [vmem:[#allocation3 + $0x8] sm:$0xff] %vm334, %v448
      %465 = vst.msk [vmem:[#allocation3 + $0x10] sm:$0xff] %vm334, %v449
      %466 = vst.msk [vmem:[#allocation3 + $0x18] sm:$0xff] %vm334, %v450
      %467 = vst.msk [vmem:[#allocation3 + $0x20] sm:$0xff] %vm334, %v451
      %468 = vst.msk [vmem:[#allocation3 + $0x28] sm:$0xff] %vm334, %v452
      %469 = vst.msk [vmem:[#allocation3 + $0x30] sm:$0xff] %vm334, %v453
      %470 = vst.msk [vmem:[#allocation3 + $0x38] sm:$0xff] %vm334, %v454
      %471 = vst.msk [vmem:[#allocation3 + $0x40] sm:$0xff] %vm334, %v455
      %472 = vst.msk [vmem:[#allocation3 + $0x48] sm:$0xff] %vm334, %v456
      %473 = vst.msk [vmem:[#allocation3 + $0x50] sm:$0xff] %vm334, %v457
      %474 = vst.msk [vmem:[#allocation3 + $0x58] sm:$0xff] %vm334, %v458
      %475 = vst.msk [vmem:[#allocation3 + $0x60] sm:$0xff] %vm334, %v459
      %476 = vst.msk [vmem:[#allocation3 + $0x68] sm:$0xff] %vm334, %v460
      %477 = vst.msk [vmem:[#allocation3 + $0x70] sm:$0xff] %vm334, %v461
      %478 = vst.msk [vmem:[#allocation3 + $0x78] sm:$0xff] %vm334, %v462
      // Predicated region
      $region29: #{attn_block.3} parent=23 // pred_check
        %p479 = pneg %p185
      $region30: #{attn_block.3} parent=23 // pred_check_branch
        %481 = sbr.rel (%p479) target = $region32
      $region31: #{attn_block.3} parent=23 // pred_region
        %v482 = vld [vmem:[#allocation2] sm:$0xff]
        %v483 = vld [vmem:[#allocation2 + $0x8] sm:$0xff]
        %v484 = vld [vmem:[#allocation2 + $0x10] sm:$0xff]
        %v485 = vld [vmem:[#allocation2 + $0x18] sm:$0xff]
        %v486 = vld [vmem:[#allocation2 + $0x20] sm:$0xff]
        %v487 = vld [vmem:[#allocation2 + $0x28] sm:$0xff]
        %v488 = vld [vmem:[#allocation2 + $0x30] sm:$0xff]
        %v489 = vld [vmem:[#allocation2 + $0x38] sm:$0xff]
        %v490 = vld [vmem:[#allocation2 + $0x40] sm:$0xff]
        %v491 = vld [vmem:[#allocation2 + $0x48] sm:$0xff]
        %v492 = vld [vmem:[#allocation2 + $0x50] sm:$0xff]
        %v493 = vld [vmem:[#allocation2 + $0x58] sm:$0xff]
        %v494 = vld [vmem:[#allocation2 + $0x60] sm:$0xff]
        %v495 = vld [vmem:[#allocation2 + $0x68] sm:$0xff]
        %v496 = vld [vmem:[#allocation2 + $0x70] sm:$0xff]
        %v497 = vld [vmem:[#allocation2 + $0x78] sm:$0xff]
        %498 = vst.msk [vmem:[%s179] sm:$0xff] %vm334, %v482
        %499 = vst.msk [vmem:[%s179 + $0x8] sm:$0xff] %vm334, %v483
        %500 = vst.msk [vmem:[%s179 + $0x10] sm:$0xff] %vm334, %v484
        %501 = vst.msk [vmem:[%s179 + $0x18] sm:$0xff] %vm334, %v485
        %502 = vst.msk [vmem:[%s179 + $0x20] sm:$0xff] %vm334, %v486
        %503 = vst.msk [vmem:[%s179 + $0x28] sm:$0xff] %vm334, %v487
        %504 = vst.msk [vmem:[%s179 + $0x30] sm:$0xff] %vm334, %v488
        %505 = vst.msk [vmem:[%s179 + $0x38] sm:$0xff] %vm334, %v489
        %506 = vst.msk [vmem:[%s179 + $0x40] sm:$0xff] %vm334, %v490
        %507 = vst.msk [vmem:[%s179 + $0x48] sm:$0xff] %vm334, %v491
        %508 = vst.msk [vmem:[%s179 + $0x50] sm:$0xff] %vm334, %v492
        %509 = vst.msk [vmem:[%s179 + $0x58] sm:$0xff] %vm334, %v493
        %510 = vst.msk [vmem:[%s179 + $0x60] sm:$0xff] %vm334, %v494
        %511 = vst.msk [vmem:[%s179 + $0x68] sm:$0xff] %vm334, %v495
        %512 = vst.msk [vmem:[%s179 + $0x70] sm:$0xff] %vm334, %v496
        %513 = vst.msk [vmem:[%s179 + $0x78] sm:$0xff] %vm334, %v497
        %v514 = vld [vmem:[#allocation3] sm:$0xff]
        %v515 = vld [vmem:[#allocation3 + $0x8] sm:$0xff]
        %v516 = vld [vmem:[#allocation3 + $0x10] sm:$0xff]
        %v517 = vld [vmem:[#allocation3 + $0x18] sm:$0xff]
        %v518 = vld [vmem:[#allocation3 + $0x20] sm:$0xff]
        %v519 = vld [vmem:[#allocation3 + $0x28] sm:$0xff]
        %v520 = vld [vmem:[#allocation3 + $0x30] sm:$0xff]
        %v521 = vld [vmem:[#allocation3 + $0x38] sm:$0xff]
        %v522 = vld [vmem:[#allocation3 + $0x40] sm:$0xff]
        %v523 = vld [vmem:[#allocation3 + $0x48] sm:$0xff]
        %v524 = vld [vmem:[#allocation3 + $0x50] sm:$0xff]
        %v525 = vld [vmem:[#allocation3 + $0x58] sm:$0xff]
        %v526 = vld [vmem:[#allocation3 + $0x60] sm:$0xff]
        %v527 = vld [vmem:[#allocation3 + $0x68] sm:$0xff]
        %v528 = vld [vmem:[#allocation3 + $0x70] sm:$0xff]
        %v529 = vld [vmem:[#allocation3 + $0x78] sm:$0xff]
        %530 = vst.msk [vmem:[%s184] sm:$0xff] %vm334, %v514
        %531 = vst.msk [vmem:[%s184 + $0x8] sm:$0xff] %vm334, %v515
        %532 = vst.msk [vmem:[%s184 + $0x10] sm:$0xff] %vm334, %v516
        %533 = vst.msk [vmem:[%s184 + $0x18] sm:$0xff] %vm334, %v517
        %534 = vst.msk [vmem:[%s184 + $0x20] sm:$0xff] %vm334, %v518
        %535 = vst.msk [vmem:[%s184 + $0x28] sm:$0xff] %vm334, %v519
        %536 = vst.msk [vmem:[%s184 + $0x30] sm:$0xff] %vm334, %v520
        %537 = vst.msk [vmem:[%s184 + $0x38] sm:$0xff] %vm334, %v521
        %538 = vst.msk [vmem:[%s184 + $0x40] sm:$0xff] %vm334, %v522
        %539 = vst.msk [vmem:[%s184 + $0x48] sm:$0xff] %vm334, %v523
        %540 = vst.msk [vmem:[%s184 + $0x50] sm:$0xff] %vm334, %v524
        %541 = vst.msk [vmem:[%s184 + $0x58] sm:$0xff] %vm334, %v525
        %542 = vst.msk [vmem:[%s184 + $0x60] sm:$0xff] %vm334, %v526
        %543 = vst.msk [vmem:[%s184 + $0x68] sm:$0xff] %vm334, %v527
        %544 = vst.msk [vmem:[%s184 + $0x70] sm:$0xff] %vm334, %v528
        %545 = vst.msk [vmem:[%s184 + $0x78] sm:$0xff] %vm334, %v529
      $region32: #{attn_block.3} parent=23 // pred_fallthru
        _
      %p546 = scmp.lt.s32.totalorder %s18, 1
      %s547 = scalar_select %p546, %s18, 1
      %s548 = smul.addr %s547, 16
      %s549 = smul.addr %s548, 8
      %s550 = scalar_lea.vmem %s1, %s549
      %p551 = scmp.lt.s32.totalorder %s18, 1
      %s552 = scalar_select %p551, %s18, 1
      %s553 = smul.addr %s552, 16
      %s554 = smul.addr %s553, 8
      %s555 = scalar_lea.vmem %s2, %s554
      // Predicated region
      $region33: #{attn_block.3} parent=23 // pred_check
        %p556 = pneg %p72
      $region34: #{attn_block.3} parent=23 // pred_check_branch
        %558 = sbr.rel (%p556) target = $region36
      $region35: #{attn_block.3} parent=23 // pred_region
        _
      $region36: #{attn_block.3} parent=23 // pred_fallthru
        _
      // Predicated region
      $region37: #{attn_block.3} parent=23 // pred_check
        %p559 = pneg %p98
      $region38: #{attn_block.3} parent=23 // pred_check_branch
        %561 = sbr.rel (%p559) target = $region40
      $region39: #{attn_block.3} parent=23 // pred_region
        _
      $region40: #{attn_block.3} parent=23 // pred_fallthru
        _
    $region24: #{attn_block.3} parent=5 // pred_fallthru
      _
    %p562 = scmp.le.s32.totalorder 2, %s9
    // Predicated region
    $region41: #{attn_block.3} parent=5 // pred_check
      %p563 = pneg %p562
    $region42: #{attn_block.3} parent=5 // pred_check_branch
      %565 = sbr.rel (%p563) target = $region44
    $region43: #{attn_block.3} parent=5 // pred_region
      %s566 = ssub.s32 %s9, 2
      // Predicated region
      $region45: #{attn_block.3} parent=43 // pred_check
        %p567 = pneg %p78
      $region46: #{attn_block.3} parent=43 // pred_check_branch
        %569 = sbr.rel (%p567) target = $region48
      $region47: #{attn_block.3} parent=43 // pred_region
        %p570 = scmp.lt.s32.totalorder %s20, 1
        %s571 = scalar_select %p570, %s20, 1
        %s572 = smul.addr %s571, 16
        %s573 = smul.addr %s572, 8
        %s574 = scalar_lea.vmem %s1, %s573
      $region48: #{attn_block.3} parent=43 // pred_fallthru
        _
      // Predicated region
      $region49: #{attn_block.3} parent=43 // pred_check
        %p575 = pneg %p104
      $region50: #{attn_block.3} parent=43 // pred_check_branch
        %577 = sbr.rel (%p575) target = $region52
      $region51: #{attn_block.3} parent=43 // pred_region
        %p578 = scmp.lt.s32.totalorder %s20, 1
        %s579 = scalar_select %p578, %s20, 1
        %s580 = smul.addr %s579, 16
        %s581 = smul.addr %s580, 8
        %s582 = scalar_lea.vmem %s2, %s581
      $region52: #{attn_block.3} parent=43 // pred_fallthru
        _
    $region44: #{attn_block.3} parent=5 // pred_fallthru
      _
  $region6: #{attn_block.3} parent=0 // loop_footer
    %s13 = sadd.s32 1, %s9
  $region7: #{attn_block.3} parent=0 // loop_footer_branch
    %8 = sbr.rel target = $region3
  $region8: #{attn_block.3} parent=0 // loop_exit
    _

// kernel: attn_block.4
$region0: #{attn_block.4}
  #allocation0 [shape = 'u32[]', space=smem, size = 0x4, offset = 0x4, fixed_abs, tag = 'smem constant byte address 0x4 - core index']
  #allocation1 [shape = 'u32[72,128]{1,0:T(1,128)}', space=vmem, size = 0x9000, scoped, tag = 'internal scratch']
  %s0 = inlined_call_operand.vmem [shape: f32[2,128,256], index: 0, kind: input, shape index: {}]
  %s1 = inlined_call_operand.vmem [shape: f32[2,128,1], index: 1, kind: input, shape index: {}]
  %s2 = inlined_call_operand.vmem [shape: f32[2,128,1], index: 2, kind: input, shape index: {}]
  %s3 = inlined_call_operand.vmem [shape: bf16[384,128], index: 3, kind: input, shape index: {}]
  %s4 = inlined_call_operand.vmem [shape: f32[384,1], index: 4, kind: input, shape index: {}]
  %s5 = inlined_call_operand.vmem [shape: bf16[2,256,128], index: 5, kind: output, shape index: {0}]
  %s6 = inlined_call_operand.vmem [shape: bf16[2,1,128,256], index: 6, kind: output, shape index: {1}]
  %s7 = inlined_call_operand.vmem [shape: bf16[2,1,128,256], index: 7, kind: output, shape index: {2}]
  %8 = xla_tuple %s5, %s6, %s7
  %s9 = sld [smem:[#allocation0]]
  $region69: #{attn_block.4} parent=0
    _
  %s11 = ssub.s32 1, %s9
  %s12 = scalar_select 0, %s11, %s9
  loop: start=0, step=1, limit=4
  $region2: #{attn_block.4} parent=0 // loop_pre_header
    _
  $region3: #{attn_block.4} parent=0 // loop_header
    %s14 = sphi 0, %s18
    %p15 = scmp.ge.s32.totalorder %s14, 4
    %s21 = sphi 0, %s33
    %s22 = sphi 0, %s29
    %s23 = sphi 0, %s21
    %s24 = sphi 0, %s22
    %s25 = sphi 0, %s23
    %s26 = sphi 0, %s24
    %s38 = sphi 0, %s40
    %s41 = sphi 0, %s38
    %s42 = sphi 0, %s41
    %s58 = sphi 0, %s42
    %s64 = sphi 0, %s66
    %s67 = sphi 0, %s64
    %s68 = sphi 0, %s67
    %s84 = sphi 0, %s68
    %s90 = sphi 0, %s92
    %s93 = sphi 0, %s90
    %s94 = sphi 0, %s93
    %s110 = sphi 0, %s94
    %s114 = sphi 0, %s114
    %s116 = sphi 0, %s114
    %s117 = sphi 0, %s116
    %s131 = sphi 0, %s117
    %s135 = sphi 0, %s135
    %s137 = sphi 0, %s135
    %s138 = sphi 0, %s137
    %s152 = sphi 0, %s138
    %s160 = sphi 0, %s162
    %s163 = sphi 0, %s160
    %s164 = sphi 0, %s163
    %s180 = sphi 0, %s164
    %s188 = sphi 0, %s190
    %s191 = sphi 0, %s188
    %s192 = sphi 0, %s191
    %s208 = sphi 0, %s192
    %s216 = sphi 0, %s218
    %s219 = sphi 0, %s216
    %s220 = sphi 0, %s219
    %s236 = sphi 0, %s220
  $region4: #{attn_block.4} parent=0 // loop_header_branch
    %17 = sbr.rel (%p15) target = $region8
  $region5: #{attn_block.4} parent=0 // loop_body
    %s19 = ssub.s32 %s14, 1
    %s20 = ssub.s32 %s14, 2
    %s27 = sadd.s32 1, %s22
    %p28 = scmp.ge.s32.totalorder %s27, 1
    %s29 = scalar_select %p28, 0, %s27
    %s30 = sadd.s32 1, %s21
    %s31 = scalar_select %p28, %s30, %s21
    %p32 = scmp.ge.s32.totalorder %s31, 2
    %s33 = scalar_select %p32, 0, %s31
    %s34 = ssub.s32 %s21, %s33
    %s35 = ssub.s32 %s22, %s29
    %s36 = sor.u32 %s34, %s35
    %p37 = scmp.eq.s32.totalorder %s36, 0
    %s39 = sadd.s32 %s38, 1
    %s40 = scalar_select %p37, %s38, %s39
    %p43 = pneg %p37
    %p44 = scmp.eq.s32.totalorder %s14, 1
    %p45 = por %p43, %p44
    %p46 = scmp.ne.s32.totalorder %s38, %s41
    %p47 = scmp.eq.s32.totalorder %s14, 0
    %p48 = por %p46, %p47
    %p49 = scmp.ne.s32.totalorder %s38, %s41
    %p50 = scmp.eq.s32.totalorder %s19, 1
    %p51 = por %p49, %p50
    %p52 = scmp.ne.s32.totalorder %s41, %s42
    %p53 = scmp.eq.s32.totalorder %s19, 0
    %p54 = por %p52, %p53
    %p55 = scmp.ne.s32.totalorder %s41, %s42
    %p56 = scmp.eq.s32.totalorder %s20, 1
    %p57 = por %p55, %p56
    %p59 = scmp.ne.s32.totalorder %s42, %s58
    %p60 = scmp.eq.s32.totalorder %s20, 0
    %p61 = por %p59, %p60
    %s62 = ssub.s32 %s21, %s33
    %p63 = scmp.eq.s32.totalorder %s62, 0
    %s65 = sadd.s32 %s64, 1
    %s66 = scalar_select %p63, %s64, %s65
    %p69 = pneg %p63
    %p70 = scmp.eq.s32.totalorder %s14, 1
    %p71 = por %p69, %p70
    %p72 = scmp.ne.s32.totalorder %s64, %s67
    %p73 = scmp.eq.s32.totalorder %s14, 0
    %p74 = por %p72, %p73
    %p75 = scmp.ne.s32.totalorder %s64, %s67
    %p76 = scmp.eq.s32.totalorder %s19, 1
    %p77 = por %p75, %p76
    %p78 = scmp.ne.s32.totalorder %s67, %s68
    %p79 = scmp.eq.s32.totalorder %s19, 0
    %p80 = por %p78, %p79
    %p81 = scmp.ne.s32.totalorder %s67, %s68
    %p82 = scmp.eq.s32.totalorder %s20, 1
    %p83 = por %p81, %p82
    %p85 = scmp.ne.s32.totalorder %s68, %s84
    %p86 = scmp.eq.s32.totalorder %s20, 0
    %p87 = por %p85, %p86
    %s88 = ssub.s32 %s21, %s33
    %p89 = scmp.eq.s32.totalorder %s88, 0
    %s91 = sadd.s32 %s90, 1
    %s92 = scalar_select %p89, %s90, %s91
    %p95 = pneg %p89
    %p96 = scmp.eq.s32.totalorder %s14, 1
    %p97 = por %p95, %p96
    %p98 = scmp.ne.s32.totalorder %s90, %s93
    %p99 = scmp.eq.s32.totalorder %s14, 0
    %p100 = por %p98, %p99
    %p101 = scmp.ne.s32.totalorder %s90, %s93
    %p102 = scmp.eq.s32.totalorder %s19, 1
    %p103 = por %p101, %p102
    %p104 = scmp.ne.s32.totalorder %s93, %s94
    %p105 = scmp.eq.s32.totalorder %s19, 0
    %p106 = por %p104, %p105
    %p107 = scmp.ne.s32.totalorder %s93, %s94
    %p108 = scmp.eq.s32.totalorder %s20, 1
    %p109 = por %p107, %p108
    %p111 = scmp.ne.s32.totalorder %s94, %s110
    %p112 = scmp.eq.s32.totalorder %s20, 0
    %p113 = por %p111, %p112
    %s115 = sadd.s32 %s114, 1
    %p118 = scmp.eq.s32.totalorder %s14, 1
    %p119 = scmp.ne.s32.totalorder %s114, %s116
    %p120 = scmp.eq.s32.totalorder %s14, 0
    %p121 = por %p119, %p120
    %p122 = scmp.ne.s32.totalorder %s114, %s116
    %p123 = scmp.eq.s32.totalorder %s19, 1
    %p124 = por %p122, %p123
    %p125 = scmp.ne.s32.totalorder %s116, %s117
    %p126 = scmp.eq.s32.totalorder %s19, 0
    %p127 = por %p125, %p126
    %p128 = scmp.ne.s32.totalorder %s116, %s117
    %p129 = scmp.eq.s32.totalorder %s20, 1
    %p130 = por %p128, %p129
    %p132 = scmp.ne.s32.totalorder %s117, %s131
    %p133 = scmp.eq.s32.totalorder %s20, 0
    %p134 = por %p132, %p133
    %s136 = sadd.s32 %s135, 1
    %p139 = scmp.eq.s32.totalorder %s14, 1
    %p140 = scmp.ne.s32.totalorder %s135, %s137
    %p141 = scmp.eq.s32.totalorder %s14, 0
    %p142 = por %p140, %p141
    %p143 = scmp.ne.s32.totalorder %s135, %s137
    %p144 = scmp.eq.s32.totalorder %s19, 1
    %p145 = por %p143, %p144
    %p146 = scmp.ne.s32.totalorder %s137, %s138
    %p147 = scmp.eq.s32.totalorder %s19, 0
    %p148 = por %p146, %p147
    %p149 = scmp.ne.s32.totalorder %s137, %s138
    %p150 = scmp.eq.s32.totalorder %s20, 1
    %p151 = por %p149, %p150
    %p153 = scmp.ne.s32.totalorder %s138, %s152
    %p154 = scmp.eq.s32.totalorder %s20, 0
    %p155 = por %p153, %p154
    %s156 = ssub.s32 %s21, %s33
    %s157 = ssub.s32 %s22, %s29
    %s158 = sor.u32 %s156, %s157
    %p159 = scmp.eq.s32.totalorder %s158, 0
    %s161 = sadd.s32 %s160, 1
    %s162 = scalar_select %p159, %s160, %s161
    %p165 = pneg %p159
    %p166 = scmp.eq.s32.totalorder %s14, 1
    %p167 = por %p165, %p166
    %p168 = scmp.ne.s32.totalorder %s160, %s163
    %p169 = scmp.eq.s32.totalorder %s14, 0
    %p170 = por %p168, %p169
    %p171 = scmp.ne.s32.totalorder %s160, %s163
    %p172 = scmp.eq.s32.totalorder %s19, 1
    %p173 = por %p171, %p172
    %p174 = scmp.ne.s32.totalorder %s163, %s164
    %p175 = scmp.eq.s32.totalorder %s19, 0
    %p176 = por %p174, %p175
    %p177 = scmp.ne.s32.totalorder %s163, %s164
    %p178 = scmp.eq.s32.totalorder %s20, 1
    %p179 = por %p177, %p178
    %p181 = scmp.ne.s32.totalorder %s164, %s180
    %p182 = scmp.eq.s32.totalorder %s20, 0
    %p183 = por %p181, %p182
    %s184 = ssub.s32 %s21, %s33
    %s185 = ssub.s32 %s22, %s29
    %s186 = sor.u32 %s184, %s185
    %p187 = scmp.eq.s32.totalorder %s186, 0
    %s189 = sadd.s32 %s188, 1
    %s190 = scalar_select %p187, %s188, %s189
    %p193 = pneg %p187
    %p194 = scmp.eq.s32.totalorder %s14, 1
    %p195 = por %p193, %p194
    %p196 = scmp.ne.s32.totalorder %s188, %s191
    %p197 = scmp.eq.s32.totalorder %s14, 0
    %p198 = por %p196, %p197
    %p199 = scmp.ne.s32.totalorder %s188, %s191
    %p200 = scmp.eq.s32.totalorder %s19, 1
    %p201 = por %p199, %p200
    %p202 = scmp.ne.s32.totalorder %s191, %s192
    %p203 = scmp.eq.s32.totalorder %s19, 0
    %p204 = por %p202, %p203
    %p205 = scmp.ne.s32.totalorder %s191, %s192
    %p206 = scmp.eq.s32.totalorder %s20, 1
    %p207 = por %p205, %p206
    %p209 = scmp.ne.s32.totalorder %s192, %s208
    %p210 = scmp.eq.s32.totalorder %s20, 0
    %p211 = por %p209, %p210
    %s212 = ssub.s32 %s21, %s33
    %s213 = ssub.s32 %s22, %s29
    %s214 = sor.u32 %s212, %s213
    %p215 = scmp.eq.s32.totalorder %s214, 0
    %s217 = sadd.s32 %s216, 1
    %s218 = scalar_select %p215, %s216, %s217
    %p221 = pneg %p215
    %p222 = scmp.eq.s32.totalorder %s14, 1
    %p223 = por %p221, %p222
    %p224 = scmp.ne.s32.totalorder %s216, %s219
    %p225 = scmp.eq.s32.totalorder %s14, 0
    %p226 = por %p224, %p225
    %p227 = scmp.ne.s32.totalorder %s216, %s219
    %p228 = scmp.eq.s32.totalorder %s19, 1
    %p229 = por %p227, %p228
    %p230 = scmp.ne.s32.totalorder %s219, %s220
    %p231 = scmp.eq.s32.totalorder %s19, 0
    %p232 = por %p230, %p231
    %p233 = scmp.ne.s32.totalorder %s219, %s220
    %p234 = scmp.eq.s32.totalorder %s20, 1
    %p235 = por %p233, %p234
    %p237 = scmp.ne.s32.totalorder %s220, %s236
    %p238 = scmp.eq.s32.totalorder %s20, 0
    %p239 = por %p237, %p238
    %p240 = scmp.le.s32.totalorder 1, %s14
    %p241 = scmp.lt.s32.totalorder %s14, 3
    %p242 = pnand %p240, %p241
    %p243 = pneg %p242
    // Predicated region
    $region9: #{attn_block.4} parent=5 // pred_check
      _
    $region10: #{attn_block.4} parent=5 // pred_check_branch
      %245 = sbr.rel (%p242) target = $region12
    $region11: #{attn_block.4} parent=5 // pred_region
      %s246 = ssub.s32 %s14, 1
      // Predicated region
      $region13: #{attn_block.4} parent=11 // pred_check
        %p247 = pneg %p127
      $region14: #{attn_block.4} parent=11 // pred_check_branch
        %249 = sbr.rel (%p247) target = $region16
      $region15: #{attn_block.4} parent=11 // pred_region
        _
      $region16: #{attn_block.4} parent=11 // pred_fallthru
        _
      // Predicated region
      $region17: #{attn_block.4} parent=11 // pred_check
        %p250 = pneg %p148
      $region18: #{attn_block.4} parent=11 // pred_check_branch
        %252 = sbr.rel (%p250) target = $region20
      $region19: #{attn_block.4} parent=11 // pred_region
        _
      $region20: #{attn_block.4} parent=11 // pred_fallthru
        _
    $region12: #{attn_block.4} parent=5 // pred_fallthru
      _
    %p253 = scmp.lt.s32.totalorder %s14, 2
    // Predicated region
    $region21: #{attn_block.4} parent=5 // pred_check
      %p254 = pneg %p253
    $region22: #{attn_block.4} parent=5 // pred_check_branch
      %256 = sbr.rel (%p254) target = $region24
    $region23: #{attn_block.4} parent=5 // pred_region
      // Predicated region
      $region25: #{attn_block.4} parent=23 // pred_check
        %p257 = pneg %p48
      $region26: #{attn_block.4} parent=23 // pred_check_branch
        %259 = sbr.rel (%p257) target = $region28
      $region27: #{attn_block.4} parent=23 // pred_region
        %s260 = smul.u32 2, %s22
        %p261 = scmp.lt.s32.totalorder %s21, 1
        %s262 = scalar_select %p261, %s21, 1
        %p263 = scmp.lt.s32.totalorder %s260, 1
        %s264 = scalar_select %p263, %s260, 1
        %s265 = smul.addr %s262, 32
        %s266 = sadd.s32 %s264, %s265
        %s267 = smul.addr %s266, 8
        %s268 = scalar_lea.vmem %s0, %s267
        %s269 = smul.u32 2, %s22
      $region28: #{attn_block.4} parent=23 // pred_fallthru
        _
      // Predicated region
      $region29: #{attn_block.4} parent=23 // pred_check
        %p270 = pneg %p74
      $region30: #{attn_block.4} parent=23 // pred_check_branch
        %272 = sbr.rel (%p270) target = $region32
      $region31: #{attn_block.4} parent=23 // pred_region
        %p273 = scmp.lt.s32.totalorder %s21, 1
        %s274 = scalar_select %p273, %s21, 1
        %s275 = smul.addr %s274, 16
        %s276 = smul.addr %s275, 8
        %s277 = scalar_lea.vmem %s1, %s276
      $region32: #{attn_block.4} parent=23 // pred_fallthru
        _
      // Predicated region
      $region33: #{attn_block.4} parent=23 // pred_check
        %p278 = pneg %p100
      $region34: #{attn_block.4} parent=23 // pred_check_branch
        %280 = sbr.rel (%p278) target = $region36
      $region35: #{attn_block.4} parent=23 // pred_region
        %p281 = scmp.lt.s32.totalorder %s21, 1
        %s282 = scalar_select %p281, %s21, 1
        %s283 = smul.addr %s282, 16
        %s284 = smul.addr %s283, 8
        %s285 = scalar_lea.vmem %s2, %s284
      $region36: #{attn_block.4} parent=23 // pred_fallthru
        _
    $region24: #{attn_block.4} parent=5 // pred_fallthru
      _
    %p286 = scmp.le.s32.totalorder 1, %s14
    %p287 = scmp.lt.s32.totalorder %s14, 3
    %p288 = pnand %p286, %p287
    %p289 = pneg %p288
    // Predicated region
    $region37: #{attn_block.4} parent=5 // pred_check
      _
    $region38: #{attn_block.4} parent=5 // pred_check_branch
      %291 = sbr.rel (%p288) target = $region40
    $region39: #{attn_block.4} parent=5 // pred_region
      %s292 = ssub.s32 %s14, 1
      %s293 = smul.u32 2, %s24
      %p294 = scmp.lt.s32.totalorder %s23, 1
      %s295 = scalar_select %p294, %s23, 1
      %p296 = scmp.lt.s32.totalorder %s293, 1
      %s297 = scalar_select %p296, %s293, 1
      %s298 = smul.addr %s295, 32
      %s299 = sadd.s32 %s297, %s298
      %s300 = smul.addr %s299, 8
      %s301 = scalar_lea.vmem %s0, %s300
      %p302 = pneg %p54
      %p303 = pneg %p51
      %p304 = scmp.lt.s32.totalorder %s23, 1
      %s305 = scalar_select %p304, %s23, 1
      %s306 = smul.addr %s305, 16
      %s307 = smul.addr %s306, 8
      %s308 = scalar_lea.vmem %s1, %s307
      %p309 = pneg %p80
      %p310 = pneg %p77
      %p311 = scmp.lt.s32.totalorder %s23, 1
      %s312 = scalar_select %p311, %s23, 1
      %s313 = smul.addr %s312, 16
      %s314 = smul.addr %s313, 8
      %s315 = scalar_lea.vmem %s2, %s314
      %p316 = pneg %p106
      %p317 = pneg %p103
      %p318 = pneg %p127
      %p319 = pneg %p124
      %p320 = pneg %p148
      %p321 = pneg %p145
      %p322 = pneg %p176
      %p323 = pneg %p173
      %s324 = smul.u32 32, %s24
      %p325 = scmp.lt.s32.totalorder %s23, 1
      %s326 = scalar_select %p325, %s23, 1
      %p327 = scmp.lt.s32.totalorder %s324, 31
      %s328 = scalar_select %p327, %s324, 31
      %s329 = smul.addr %s326, 32
      %s330 = sadd.s32 %s328, %s329
      %s331 = smul.addr %s330, 4
      %s332 = scalar_lea.vmem %s5, %s331
      %p333 = pneg %p204
      %p334 = pneg %p201
      %p335 = scmp.lt.s32.totalorder %s23, 1
      %s336 = scalar_select %p335, %s23, 1
      %p337 = scmp.lt.s32.totalorder %s24, 0
      %s338 = scalar_select %p337, %s24, 0
      %s339 = smul.addr %s338, 32
      %s340 = smul.addr %s336, 32
      %s341 = sadd.s32 %s339, %s340
      %s342 = smul.addr %s341, 4
      %s343 = scalar_lea.vmem %s6, %s342
      %p344 = pneg %p232
      %p345 = pneg %p229
      %p346 = scmp.lt.s32.totalorder %s23, 1
      %s347 = scalar_select %p346, %s23, 1
      %p348 = scmp.lt.s32.totalorder %s24, 0
      %s349 = scalar_select %p348, %s24, 0
      %s350 = smul.addr %s349, 32
      %s351 = smul.addr %s347, 32
      %s352 = sadd.s32 %s350, %s351
      %s353 = smul.addr %s352, 4
      %s354 = scalar_lea.vmem %s7, %s353
      %s355 = smul.u32 2, %s24
      %p356 = scmp.lt.s32.totalorder %s23, 1
      %s357 = scalar_select %p356, %s23, 1
      %p358 = scmp.lt.s32.totalorder %s355, 1
      %s359 = scalar_select %p358, %s355, 1
      %s360 = smul.addr %s357, 32
      %s361 = sadd.s32 %s359, %s360
      %s362 = smul.addr %s361, 8
      %s363 = scalar_lea.vmem %s0, %s362
      %s364 = smul.u32 2, %s24
      %p365 = scmp.lt.s32.totalorder %s23, 1
      %s366 = scalar_select %p365, %s23, 1
      %s367 = smul.addr %s366, 16
      %s368 = smul.addr %s367, 8
      %s369 = scalar_lea.vmem %s1, %s368
      %p370 = scmp.lt.s32.totalorder %s23, 1
      %s371 = scalar_select %p370, %s23, 1
      %s372 = smul.addr %s371, 16
      %s373 = smul.addr %s372, 8
      %s374 = scalar_lea.vmem %s2, %s373
      %s375 = smul.u32 32, %s24
      %p376 = scmp.lt.s32.totalorder %s23, 1
      %s377 = scalar_select %p376, %s23, 1
      %p378 = scmp.lt.s32.totalorder %s375, 31
      %s379 = scalar_select %p378, %s375, 31
      %s380 = smul.addr %s377, 32
      %s381 = sadd.s32 %s379, %s380
      %s382 = smul.addr %s381, 4
      %s383 = scalar_lea.vmem %s5, %s382
      %s384 = smul.u32 32, %s24
      %p385 = scmp.lt.s32.totalorder %s23, 1
      %s386 = scalar_select %p385, %s23, 1
      %p387 = scmp.lt.s32.totalorder %s24, 0
      %s388 = scalar_select %p387, %s24, 0
      %s389 = smul.addr %s388, 32
      %s390 = smul.addr %s386, 32
      %s391 = sadd.s32 %s389, %s390
      %s392 = smul.addr %s391, 4
      %s393 = scalar_lea.vmem %s6, %s392
      %p394 = scmp.lt.s32.totalorder %s23, 1
      %s395 = scalar_select %p394, %s23, 1
      %p396 = scmp.lt.s32.totalorder %s24, 0
      %s397 = scalar_select %p396, %s24, 0
      %s398 = smul.addr %s397, 32
      %s399 = smul.addr %s395, 32
      %s400 = sadd.s32 %s398, %s399
      %s401 = smul.addr %s400, 4
      %s402 = scalar_lea.vmem %s7, %s401
      %v403 = vld [vmem:[%s363] sm:$0xff]
      %v404 = vld [vmem:[%s363 + $0x8] sm:$0xff]
      %v405 = vld [vmem:[%s363 + $0x10] sm:$0xff]
      %v406 = vld [vmem:[%s363 + $0x18] sm:$0xff]
      %v407 = vld [vmem:[%s363 + $0x20] sm:$0xff]
      %v408 = vld [vmem:[%s363 + $0x28] sm:$0xff]
      %v409 = vld [vmem:[%s363 + $0x30] sm:$0xff]
      %v410 = vld [vmem:[%s363 + $0x38] sm:$0xff]
      %v411 = vld [vmem:[%s363 + $0x40] sm:$0xff]
      %v412 = vld [vmem:[%s363 + $0x48] sm:$0xff]
      %v413 = vld [vmem:[%s363 + $0x50] sm:$0xff]
      %v414 = vld [vmem:[%s363 + $0x58] sm:$0xff]
      %v415 = vld [vmem:[%s363 + $0x60] sm:$0xff]
      %v416 = vld [vmem:[%s363 + $0x68] sm:$0xff]
      %v417 = vld [vmem:[%s363 + $0x70] sm:$0xff]
      %v418 = vld [vmem:[%s363 + $0x78] sm:$0xff]
      %v419 = vld [vmem:[%s363 + $0x80] sm:$0xff]
      %v420 = vld [vmem:[%s363 + $0x88] sm:$0xff]
      %v421 = vld [vmem:[%s363 + $0x90] sm:$0xff]
      %v422 = vld [vmem:[%s363 + $0x98] sm:$0xff]
      %v423 = vld [vmem:[%s363 + $0xa0] sm:$0xff]
      %v424 = vld [vmem:[%s363 + $0xa8] sm:$0xff]
      %v425 = vld [vmem:[%s363 + $0xb0] sm:$0xff]
      %v426 = vld [vmem:[%s363 + $0xb8] sm:$0xff]
      %v427 = vld [vmem:[%s363 + $0xc0] sm:$0xff]
      %v428 = vld [vmem:[%s363 + $0xc8] sm:$0xff]
      %v429 = vld [vmem:[%s363 + $0xd0] sm:$0xff]
      %v430 = vld [vmem:[%s363 + $0xd8] sm:$0xff]
      %v431 = vld [vmem:[%s363 + $0xe0] sm:$0xff]
      %v432 = vld [vmem:[%s363 + $0xe8] sm:$0xff]
      %v433 = vld [vmem:[%s363 + $0xf0] sm:$0xff]
      %v434 = vld [vmem:[%s363 + $0xf8] sm:$0xff]
      %v435 = vld [vmem:[%s369] sm:$0xff]
      %v436 = vld [vmem:[%s369 + $0x8] sm:$0xff]
      %v437 = vld [vmem:[%s369 + $0x10] sm:$0xff]
      %v438 = vld [vmem:[%s369 + $0x18] sm:$0xff]
      %v439 = vld [vmem:[%s369 + $0x20] sm:$0xff]
      %v440 = vld [vmem:[%s369 + $0x28] sm:$0xff]
      %v441 = vld [vmem:[%s369 + $0x30] sm:$0xff]
      %v442 = vld [vmem:[%s369 + $0x38] sm:$0xff]
      %v443 = vld [vmem:[%s369 + $0x40] sm:$0xff]
      %v444 = vld [vmem:[%s369 + $0x48] sm:$0xff]
      %v445 = vld [vmem:[%s369 + $0x50] sm:$0xff]
      %v446 = vld [vmem:[%s369 + $0x58] sm:$0xff]
      %v447 = vld [vmem:[%s369 + $0x60] sm:$0xff]
      %v448 = vld [vmem:[%s369 + $0x68] sm:$0xff]
      %v449 = vld [vmem:[%s369 + $0x70] sm:$0xff]
      %v450 = vld [vmem:[%s369 + $0x78] sm:$0xff]
      %452 = vset.pattern.permute.xlu0 0
      %453 = vperm.xlu0 %452, %v435
      %v454 = vpop.permute.xlu0 %453
      %457 = vset.pattern.permute.xlu0 0
      %458 = vperm.xlu0 %457, %v436
      %v459 = vpop.permute.xlu0 %458
      %462 = vset.pattern.permute.xlu0 0
      %463 = vperm.xlu0 %462, %v437
      %v464 = vpop.permute.xlu0 %463
      %467 = vset.pattern.permute.xlu0 0
      %468 = vperm.xlu0 %467, %v438
      %v469 = vpop.permute.xlu0 %468
      %472 = vset.pattern.permute.xlu0 0
      %473 = vperm.xlu0 %472, %v439
      %v474 = vpop.permute.xlu0 %473
      %477 = vset.pattern.permute.xlu0 0
      %478 = vperm.xlu0 %477, %v440
      %v479 = vpop.permute.xlu0 %478
      %482 = vset.pattern.permute.xlu0 0
      %483 = vperm.xlu0 %482, %v441
      %v484 = vpop.permute.xlu0 %483
      %487 = vset.pattern.permute.xlu0 0
      %488 = vperm.xlu0 %487, %v442
      %v489 = vpop.permute.xlu0 %488
      %492 = vset.pattern.permute.xlu0 0
      %493 = vperm.xlu0 %492, %v443
      %v494 = vpop.permute.xlu0 %493
      %497 = vset.pattern.permute.xlu0 0
      %498 = vperm.xlu0 %497, %v444
      %v499 = vpop.permute.xlu0 %498
      %502 = vset.pattern.permute.xlu0 0
      %503 = vperm.xlu0 %502, %v445
      %v504 = vpop.permute.xlu0 %503
      %507 = vset.pattern.permute.xlu0 0
      %508 = vperm.xlu0 %507, %v446
      %v509 = vpop.permute.xlu0 %508
      %512 = vset.pattern.permute.xlu0 0
      %513 = vperm.xlu0 %512, %v447
      %v514 = vpop.permute.xlu0 %513
      %517 = vset.pattern.permute.xlu0 0
      %518 = vperm.xlu0 %517, %v448
      %v519 = vpop.permute.xlu0 %518
      %522 = vset.pattern.permute.xlu0 0
      %523 = vperm.xlu0 %522, %v449
      %v524 = vpop.permute.xlu0 %523
      %527 = vset.pattern.permute.xlu0 0
      %528 = vperm.xlu0 %527, %v450
      %v529 = vpop.permute.xlu0 %528
      %v531 = vmul.f32 %v403, %v454
      %v532 = vmul.f32 %v404, %v454
      %v533 = vmul.f32 %v405, %v459
      %v534 = vmul.f32 %v406, %v459
      %v535 = vmul.f32 %v407, %v464
      %v536 = vmul.f32 %v408, %v464
      %v537 = vmul.f32 %v409, %v469
      %v538 = vmul.f32 %v410, %v469
      %v539 = vmul.f32 %v411, %v474
      %v540 = vmul.f32 %v412, %v474
      %v541 = vmul.f32 %v413, %v479
      %v542 = vmul.f32 %v414, %v479
      %v543 = vmul.f32 %v415, %v484
      %v544 = vmul.f32 %v416, %v484
      %v545 = vmul.f32 %v417, %v489
      %v546 = vmul.f32 %v418, %v489
      %v547 = vmul.f32 %v419, %v494
      %v548 = vmul.f32 %v420, %v494
      %v549 = vmul.f32 %v421, %v499
      %v550 = vmul.f32 %v422, %v499
      %v551 = vmul.f32 %v423, %v504
      %v552 = vmul.f32 %v424, %v504
      %v553 = vmul.f32 %v425, %v509
      %v554 = vmul.f32 %v426, %v509
      %v555 = vmul.f32 %v427, %v514
      %v556 = vmul.f32 %v428, %v514
      %v557 = vmul.f32 %v429, %v519
      %v558 = vmul.f32 %v430, %v519
      %v559 = vmul.f32 %v431, %v524
      %v560 = vmul.f32 %v432, %v524
      %v561 = vmul.f32 %v433, %v529
      %v562 = vmul.f32 %v434, %v529
      %v563 = vld [vmem:[%s374] sm:$0xff]
      %v564 = vld [vmem:[%s374 + $0x8] sm:$0xff]
      %v565 = vld [vmem:[%s374 + $0x10] sm:$0xff]
      %v566 = vld [vmem:[%s374 + $0x18] sm:$0xff]
      %v567 = vld [vmem:[%s374 + $0x20] sm:$0xff]
      %v568 = vld [vmem:[%s374 + $0x28] sm:$0xff]
      %v569 = vld [vmem:[%s374 + $0x30] sm:$0xff]
      %v570 = vld [vmem:[%s374 + $0x38] sm:$0xff]
      %v571 = vld [vmem:[%s374 + $0x40] sm:$0xff]
      %v572 = vld [vmem:[%s374 + $0x48] sm:$0xff]
      %v573 = vld [vmem:[%s374 + $0x50] sm:$0xff]
      %v574 = vld [vmem:[%s374 + $0x58] sm:$0xff]
      %v575 = vld [vmem:[%s374 + $0x60] sm:$0xff]
      %v576 = vld [vmem:[%s374 + $0x68] sm:$0xff]
      %v577 = vld [vmem:[%s374 + $0x70] sm:$0xff]
      %v578 = vld [vmem:[%s374 + $0x78] sm:$0xff]
      %580 = vset.pattern.permute.xlu0 0
      %581 = vperm.xlu0 %580, %v563
      %v582 = vpop.permute.xlu0 %581
      %585 = vset.pattern.permute.xlu0 0
      %586 = vperm.xlu0 %585, %v564
      %v587 = vpop.permute.xlu0 %586
      %590 = vset.pattern.permute.xlu0 0
      %591 = vperm.xlu0 %590, %v565
      %v592 = vpop.permute.xlu0 %591
      %595 = vset.pattern.permute.xlu0 0
      %596 = vperm.xlu0 %595, %v566
      %v597 = vpop.permute.xlu0 %596
      %600 = vset.pattern.permute.xlu0 0
      %601 = vperm.xlu0 %600, %v567
      %v602 = vpop.permute.xlu0 %601
      %605 = vset.pattern.permute.xlu0 0
      %606 = vperm.xlu0 %605, %v568
      %v607 = vpop.permute.xlu0 %606
      %610 = vset.pattern.permute.xlu0 0
      %611 = vperm.xlu0 %610, %v569
      %v612 = vpop.permute.xlu0 %611
      %615 = vset.pattern.permute.xlu0 0
      %616 = vperm.xlu0 %615, %v570
      %v617 = vpop.permute.xlu0 %616
      %620 = vset.pattern.permute.xlu0 0
      %621 = vperm.xlu0 %620, %v571
      %v622 = vpop.permute.xlu0 %621
      %625 = vset.pattern.permute.xlu0 0
      %626 = vperm.xlu0 %625, %v572
      %v627 = vpop.permute.xlu0 %626
      %630 = vset.pattern.permute.xlu0 0
      %631 = vperm.xlu0 %630, %v573
      %v632 = vpop.permute.xlu0 %631
      %635 = vset.pattern.permute.xlu0 0
      %636 = vperm.xlu0 %635, %v574
      %v637 = vpop.permute.xlu0 %636
      %640 = vset.pattern.permute.xlu0 0
      %641 = vperm.xlu0 %640, %v575
      %v642 = vpop.permute.xlu0 %641
      %645 = vset.pattern.permute.xlu0 0
      %646 = vperm.xlu0 %645, %v576
      %v647 = vpop.permute.xlu0 %646
      %650 = vset.pattern.permute.xlu0 0
      %651 = vperm.xlu0 %650, %v577
      %v652 = vpop.permute.xlu0 %651
      %655 = vset.pattern.permute.xlu0 0
      %656 = vperm.xlu0 %655, %v578
      %v657 = vpop.permute.xlu0 %656
      %v659 = vadd.f32 %v531, %v582
      %v660 = vadd.f32 %v532, %v582
      %v661 = vadd.f32 %v533, %v587
      %v662 = vadd.f32 %v534, %v587
      %v663 = vadd.f32 %v535, %v592
      %v664 = vadd.f32 %v536, %v592
      %v665 = vadd.f32 %v537, %v597
      %v666 = vadd.f32 %v538, %v597
      %v667 = vadd.f32 %v539, %v602
      %v668 = vadd.f32 %v540, %v602
      %v669 = vadd.f32 %v541, %v607
      %v670 = vadd.f32 %v542, %v607
      %v671 = vadd.f32 %v543, %v612
      %v672 = vadd.f32 %v544, %v612
      %v673 = vadd.f32 %v545, %v617
      %v674 = vadd.f32 %v546, %v617
      %v675 = vadd.f32 %v547, %v622
      %v676 = vadd.f32 %v548, %v622
      %v677 = vadd.f32 %v549, %v627
      %v678 = vadd.f32 %v550, %v627
      %v679 = vadd.f32 %v551, %v632
      %v680 = vadd.f32 %v552, %v632
      %v681 = vadd.f32 %v553, %v637
      %v682 = vadd.f32 %v554, %v637
      %v683 = vadd.f32 %v555, %v642
      %v684 = vadd.f32 %v556, %v642
      %v685 = vadd.f32 %v557, %v647
      %v686 = vadd.f32 %v558, %v647
      %v687 = vadd.f32 %v559, %v652
      %v688 = vadd.f32 %v560, %v652
      %v689 = vadd.f32 %v561, %v657
      %v690 = vadd.f32 %v562, %v657
      %v691 = vpack.c.bf16 %v661, %v659
      %v692 = vpack.c.bf16 %v662, %v660
      %v693 = vpack.c.bf16 %v665, %v663
      %v694 = vpack.c.bf16 %v666, %v664
      %v695 = vpack.c.bf16 %v669, %v667
      %v696 = vpack.c.bf16 %v670, %v668
      %v697 = vpack.c.bf16 %v673, %v671
      %v698 = vpack.c.bf16 %v674, %v672
      %v699 = vpack.c.bf16 %v677, %v675
      %v700 = vpack.c.bf16 %v678, %v676
      %v701 = vpack.c.bf16 %v681, %v679
      %v702 = vpack.c.bf16 %v682, %v680
      %v703 = vpack.c.bf16 %v685, %v683
      %v704 = vpack.c.bf16 %v686, %v684
      %v705 = vpack.c.bf16 %v689, %v687
      %v706 = vpack.c.bf16 %v690, %v688
      %v707 = vld [vmem:[%s3] sm:$0xf]
      %v708 = vld [vmem:[%s3 + $0x4] sm:$0xf]
      %v709 = vld [vmem:[%s3 + $0x8] sm:$0xf]
      %v710 = vld [vmem:[%s3 + $0xc] sm:$0xf]
      %v711 = vld [vmem:[%s3 + $0x10] sm:$0xf]
      %v712 = vld [vmem:[%s3 + $0x14] sm:$0xf]
      %v713 = vld [vmem:[%s3 + $0x18] sm:$0xf]
      %v714 = vld [vmem:[%s3 + $0x1c] sm:$0xf]
      %v715 = vld [vmem:[%s3 + $0x20] sm:$0xf]
      %v716 = vld [vmem:[%s3 + $0x24] sm:$0xf]
      %v717 = vld [vmem:[%s3 + $0x28] sm:$0xf]
      %v718 = vld [vmem:[%s3 + $0x2c] sm:$0xf]
      %v719 = vld [vmem:[%s3 + $0x30] sm:$0xf]
      %v720 = vld [vmem:[%s3 + $0x34] sm:$0xf]
      %v721 = vld [vmem:[%s3 + $0x38] sm:$0xf]
      %v722 = vld [vmem:[%s3 + $0x3c] sm:$0xf]
      %v723 = vld [vmem:[%s3 + $0x40] sm:$0xf]
      %v724 = vld [vmem:[%s3 + $0x44] sm:$0xf]
      %v725 = vld [vmem:[%s3 + $0x48] sm:$0xf]
      %v726 = vld [vmem:[%s3 + $0x4c] sm:$0xf]
      %v727 = vld [vmem:[%s3 + $0x50] sm:$0xf]
      %v728 = vld [vmem:[%s3 + $0x54] sm:$0xf]
      %v729 = vld [vmem:[%s3 + $0x58] sm:$0xf]
      %v730 = vld [vmem:[%s3 + $0x5c] sm:$0xf]
      %v731 = vld [vmem:[%s3 + $0x60] sm:$0xf]
      %v732 = vld [vmem:[%s3 + $0x64] sm:$0xf]
      %v733 = vld [vmem:[%s3 + $0x68] sm:$0xf]
      %v734 = vld [vmem:[%s3 + $0x6c] sm:$0xf]
      %v735 = vld [vmem:[%s3 + $0x70] sm:$0xf]
      %v736 = vld [vmem:[%s3 + $0x74] sm:$0xf]
      %v737 = vld [vmem:[%s3 + $0x78] sm:$0xf]
      %v738 = vld [vmem:[%s3 + $0x7c] sm:$0xf]
      %v739 = vld [vmem:[%s3 + $0x80] sm:$0xf]
      %v740 = vld [vmem:[%s3 + $0x84] sm:$0xf]
      %v741 = vld [vmem:[%s3 + $0x88] sm:$0xf]
      %v742 = vld [vmem:[%s3 + $0x8c] sm:$0xf]
      %v743 = vld [vmem:[%s3 + $0x90] sm:$0xf]
      %v744 = vld [vmem:[%s3 + $0x94] sm:$0xf]
      %v745 = vld [vmem:[%s3 + $0x98] sm:$0xf]
      %v746 = vld [vmem:[%s3 + $0x9c] sm:$0xf]
      %v747 = vld [vmem:[%s3 + $0xa0] sm:$0xf]
      %v748 = vld [vmem:[%s3 + $0xa4] sm:$0xf]
      %v749 = vld [vmem:[%s3 + $0xa8] sm:$0xf]
      %v750 = vld [vmem:[%s3 + $0xac] sm:$0xf]
      %v751 = vld [vmem:[%s3 + $0xb0] sm:$0xf]
      %v752 = vld [vmem:[%s3 + $0xb4] sm:$0xf]
      %v753 = vld [vmem:[%s3 + $0xb8] sm:$0xf]
      %v754 = vld [vmem:[%s3 + $0xbc] sm:$0xf]
      %v755 = vld [vmem:[%s4] sm:$0xff]
      %v756 = vld [vmem:[%s4 + $0x8] sm:$0xff]
      %v757 = vld [vmem:[%s4 + $0x10] sm:$0xff]
      %v758 = vld [vmem:[%s4 + $0x18] sm:$0xff]
      %v759 = vld [vmem:[%s4 + $0x20] sm:$0xff]
      %v760 = vld [vmem:[%s4 + $0x28] sm:$0xff]
      %v761 = vld [vmem:[%s4 + $0x30] sm:$0xff]
      %v762 = vld [vmem:[%s4 + $0x38] sm:$0xff]
      %v763 = vld [vmem:[%s4 + $0x40] sm:$0xff]
      %v764 = vld [vmem:[%s4 + $0x48] sm:$0xff]
      %v765 = vld [vmem:[%s4 + $0x50] sm:$0xff]
      %v766 = vld [vmem:[%s4 + $0x58] sm:$0xff]
      %v767 = vld [vmem:[%s4 + $0x60] sm:$0xff]
      %v768 = vld [vmem:[%s4 + $0x68] sm:$0xff]
      %v769 = vld [vmem:[%s4 + $0x70] sm:$0xff]
      %v770 = vld [vmem:[%s4 + $0x78] sm:$0xff]
      %v771 = vld [vmem:[%s4 + $0x80] sm:$0xff]
      %v772 = vld [vmem:[%s4 + $0x88] sm:$0xff]
      %v773 = vld [vmem:[%s4 + $0x90] sm:$0xff]
      %v774 = vld [vmem:[%s4 + $0x98] sm:$0xff]
      %v775 = vld [vmem:[%s4 + $0xa0] sm:$0xff]
      %v776 = vld [vmem:[%s4 + $0xa8] sm:$0xff]
      %v777 = vld [vmem:[%s4 + $0xb0] sm:$0xff]
      %v778 = vld [vmem:[%s4 + $0xb8] sm:$0xff]
      %v779 = vld [vmem:[%s4 + $0xc0] sm:$0xff]
      %v780 = vld [vmem:[%s4 + $0xc8] sm:$0xff]
      %v781 = vld [vmem:[%s4 + $0xd0] sm:$0xff]
      %v782 = vld [vmem:[%s4 + $0xd8] sm:$0xff]
      %v783 = vld [vmem:[%s4 + $0xe0] sm:$0xff]
      %v784 = vld [vmem:[%s4 + $0xe8] sm:$0xff]
      %v785 = vld [vmem:[%s4 + $0xf0] sm:$0xff]
      %v786 = vld [vmem:[%s4 + $0xf8] sm:$0xff]
      %v787 = vld [vmem:[%s4 + $0x100] sm:$0xff]
      %v788 = vld [vmem:[%s4 + $0x108] sm:$0xff]
      %v789 = vld [vmem:[%s4 + $0x110] sm:$0xff]
      %v790 = vld [vmem:[%s4 + $0x118] sm:$0xff]
      %v791 = vld [vmem:[%s4 + $0x120] sm:$0xff]
      %v792 = vld [vmem:[%s4 + $0x128] sm:$0xff]
      %v793 = vld [vmem:[%s4 + $0x130] sm:$0xff]
      %v794 = vld [vmem:[%s4 + $0x138] sm:$0xff]
      %v795 = vld [vmem:[%s4 + $0x140] sm:$0xff]
      %v796 = vld [vmem:[%s4 + $0x148] sm:$0xff]
      %v797 = vld [vmem:[%s4 + $0x150] sm:$0xff]
      %v798 = vld [vmem:[%s4 + $0x158] sm:$0xff]
      %v799 = vld [vmem:[%s4 + $0x160] sm:$0xff]
      %v800 = vld [vmem:[%s4 + $0x168] sm:$0xff]
      %v801 = vld [vmem:[%s4 + $0x170] sm:$0xff]
      %v802 = vld [vmem:[%s4 + $0x178] sm:$0xff]
      %804 = vset.pattern.permute.xlu0 0
      %805 = vperm.xlu0 %804, %v755
      %v806 = vpop.permute.xlu0 %805
      %809 = vset.pattern.permute.xlu0 0
      %810 = vperm.xlu0 %809, %v756
      %v811 = vpop.permute.xlu0 %810
      %814 = vset.pattern.permute.xlu0 0
      %815 = vperm.xlu0 %814, %v757
      %v816 = vpop.permute.xlu0 %815
      %819 = vset.pattern.permute.xlu0 0
      %820 = vperm.xlu0 %819, %v758
      %v821 = vpop.permute.xlu0 %820
      %824 = vset.pattern.permute.xlu0 0
      %825 = vperm.xlu0 %824, %v759
      %v826 = vpop.permute.xlu0 %825
      %829 = vset.pattern.permute.xlu0 0
      %830 = vperm.xlu0 %829, %v760
      %v831 = vpop.permute.xlu0 %830
      %834 = vset.pattern.permute.xlu0 0
      %835 = vperm.xlu0 %834, %v761
      %v836 = vpop.permute.xlu0 %835
      %839 = vset.pattern.permute.xlu0 0
      %840 = vperm.xlu0 %839, %v762
      %v841 = vpop.permute.xlu0 %840
      %844 = vset.pattern.permute.xlu0 0
      %845 = vperm.xlu0 %844, %v763
      %v846 = vpop.permute.xlu0 %845
      %849 = vset.pattern.permute.xlu0 0
      %850 = vperm.xlu0 %849, %v764
      %v851 = vpop.permute.xlu0 %850
      %854 = vset.pattern.permute.xlu0 0
      %855 = vperm.xlu0 %854, %v765
      %v856 = vpop.permute.xlu0 %855
      %859 = vset.pattern.permute.xlu0 0
      %860 = vperm.xlu0 %859, %v766
      %v861 = vpop.permute.xlu0 %860
      %864 = vset.pattern.permute.xlu0 0
      %865 = vperm.xlu0 %864, %v767
      %v866 = vpop.permute.xlu0 %865
      %869 = vset.pattern.permute.xlu0 0
      %870 = vperm.xlu0 %869, %v768
      %v871 = vpop.permute.xlu0 %870
      %874 = vset.pattern.permute.xlu0 0
      %875 = vperm.xlu0 %874, %v769
      %v876 = vpop.permute.xlu0 %875
      %879 = vset.pattern.permute.xlu0 0
      %880 = vperm.xlu0 %879, %v770
      %v881 = vpop.permute.xlu0 %880
      %884 = vset.pattern.permute.xlu0 0
      %885 = vperm.xlu0 %884, %v771
      %v886 = vpop.permute.xlu0 %885
      %889 = vset.pattern.permute.xlu0 0
      %890 = vperm.xlu0 %889, %v772
      %v891 = vpop.permute.xlu0 %890
      %894 = vset.pattern.permute.xlu0 0
      %895 = vperm.xlu0 %894, %v773
      %v896 = vpop.permute.xlu0 %895
      %899 = vset.pattern.permute.xlu0 0
      %900 = vperm.xlu0 %899, %v774
      %v901 = vpop.permute.xlu0 %900
      %904 = vset.pattern.permute.xlu0 0
      %905 = vperm.xlu0 %904, %v775
      %v906 = vpop.permute.xlu0 %905
      %909 = vset.pattern.permute.xlu0 0
      %910 = vperm.xlu0 %909, %v776
      %v911 = vpop.permute.xlu0 %910
      %914 = vset.pattern.permute.xlu0 0
      %915 = vperm.xlu0 %914, %v777
      %v916 = vpop.permute.xlu0 %915
      %919 = vset.pattern.permute.xlu0 0
      %920 = vperm.xlu0 %919, %v778
      %v921 = vpop.permute.xlu0 %920
      %924 = vset.pattern.permute.xlu0 0
      %925 = vperm.xlu0 %924, %v779
      %v926 = vpop.permute.xlu0 %925
      %929 = vset.pattern.permute.xlu0 0
      %930 = vperm.xlu0 %929, %v780
      %v931 = vpop.permute.xlu0 %930
      %934 = vset.pattern.permute.xlu0 0
      %935 = vperm.xlu0 %934, %v781
      %v936 = vpop.permute.xlu0 %935
      %939 = vset.pattern.permute.xlu0 0
      %940 = vperm.xlu0 %939, %v782
      %v941 = vpop.permute.xlu0 %940
      %944 = vset.pattern.permute.xlu0 0
      %945 = vperm.xlu0 %944, %v783
      %v946 = vpop.permute.xlu0 %945
      %949 = vset.pattern.permute.xlu0 0
      %950 = vperm.xlu0 %949, %v784
      %v951 = vpop.permute.xlu0 %950
      %954 = vset.pattern.permute.xlu0 0
      %955 = vperm.xlu0 %954, %v785
      %v956 = vpop.permute.xlu0 %955
      %959 = vset.pattern.permute.xlu0 0
      %960 = vperm.xlu0 %959, %v786
      %v961 = vpop.permute.xlu0 %960
      %964 = vset.pattern.permute.xlu0 0
      %965 = vperm.xlu0 %964, %v787
      %v966 = vpop.permute.xlu0 %965
      %969 = vset.pattern.permute.xlu0 0
      %970 = vperm.xlu0 %969, %v788
      %v971 = vpop.permute.xlu0 %970
      %974 = vset.pattern.permute.xlu0 0
      %975 = vperm.xlu0 %974, %v789
      %v976 = vpop.permute.xlu0 %975
      %979 = vset.pattern.permute.xlu0 0
      %980 = vperm.xlu0 %979, %v790
      %v981 = vpop.permute.xlu0 %980
      %984 = vset.pattern.permute.xlu0 0
      %985 = vperm.xlu0 %984, %v791
      %v986 = vpop.permute.xlu0 %985
      %989 = vset.pattern.permute.xlu0 0
      %990 = vperm.xlu0 %989, %v792
      %v991 = vpop.permute.xlu0 %990
      %994 = vset.pattern.permute.xlu0 0
      %995 = vperm.xlu0 %994, %v793
      %v996 = vpop.permute.xlu0 %995
      %999 = vset.pattern.permute.xlu0 0
      %1000 = vperm.xlu0 %999, %v794
      %v1001 = vpop.permute.xlu0 %1000
      %1004 = vset.pattern.permute.xlu0 0
      %1005 = vperm.xlu0 %1004, %v795
      %v1006 = vpop.permute.xlu0 %1005
      %1009 = vset.pattern.permute.xlu0 0
      %1010 = vperm.xlu0 %1009, %v796
      %v1011 = vpop.permute.xlu0 %1010
      %1014 = vset.pattern.permute.xlu0 0
      %1015 = vperm.xlu0 %1014, %v797
      %v1016 = vpop.permute.xlu0 %1015
      %1019 = vset.pattern.permute.xlu0 0
      %1020 = vperm.xlu0 %1019, %v798
      %v1021 = vpop.permute.xlu0 %1020
      %1024 = vset.pattern.permute.xlu0 0
      %1025 = vperm.xlu0 %1024, %v799
      %v1026 = vpop.permute.xlu0 %1025
      %1029 = vset.pattern.permute.xlu0 0
      %1030 = vperm.xlu0 %1029, %v800
      %v1031 = vpop.permute.xlu0 %1030
      %1034 = vset.pattern.permute.xlu0 0
      %1035 = vperm.xlu0 %1034, %v801
      %v1036 = vpop.permute.xlu0 %1035
      %1039 = vset.pattern.permute.xlu0 0
      %1040 = vperm.xlu0 %1039, %v802
      %v1041 = vpop.permute.xlu0 %1040
      %v1091 = vunpack.c.l.b16 %v707
      %v1092 = vunpack.c.l.b16 %v708
      %v1093 = vunpack.c.l.b16 %v709
      %v1094 = vunpack.c.l.b16 %v710
      %v1095 = vunpack.c.l.b16 %v711
      %v1096 = vunpack.c.l.b16 %v712
      %v1097 = vunpack.c.l.b16 %v713
      %v1098 = vunpack.c.l.b16 %v714
      %v1099 = vunpack.c.l.b16 %v715
      %v1100 = vunpack.c.l.b16 %v716
      %v1101 = vunpack.c.l.b16 %v717
      %v1102 = vunpack.c.l.b16 %v718
      %v1103 = vunpack.c.l.b16 %v719
      %v1104 = vunpack.c.l.b16 %v720
      %v1105 = vunpack.c.l.b16 %v721
      %v1106 = vunpack.c.l.b16 %v722
      %v1107 = vunpack.c.l.b16 %v723
      %v1108 = vunpack.c.l.b16 %v724
      %v1109 = vunpack.c.l.b16 %v725
      %v1110 = vunpack.c.l.b16 %v726
      %v1111 = vunpack.c.l.b16 %v727
      %v1112 = vunpack.c.l.b16 %v728
      %v1113 = vunpack.c.l.b16 %v729
      %v1114 = vunpack.c.l.b16 %v730
      %v1115 = vunpack.c.l.b16 %v731
      %v1116 = vunpack.c.l.b16 %v732
      %v1117 = vunpack.c.l.b16 %v733
      %v1118 = vunpack.c.l.b16 %v734
      %v1119 = vunpack.c.l.b16 %v735
      %v1120 = vunpack.c.l.b16 %v736
      %v1121 = vunpack.c.l.b16 %v737
      %v1122 = vunpack.c.l.b16 %v738
      %v1123 = vunpack.c.l.b16 %v739
      %v1124 = vunpack.c.l.b16 %v740
      %v1125 = vunpack.c.l.b16 %v741
      %v1126 = vunpack.c.l.b16 %v742
      %v1127 = vunpack.c.l.b16 %v743
      %v1128 = vunpack.c.l.b16 %v744
      %v1129 = vunpack.c.l.b16 %v745
      %v1130 = vunpack.c.l.b16 %v746
      %v1131 = vunpack.c.l.b16 %v747
      %v1132 = vunpack.c.l.b16 %v748
      %v1133 = vunpack.c.l.b16 %v749
      %v1134 = vunpack.c.l.b16 %v750
      %v1135 = vunpack.c.l.b16 %v751
      %v1136 = vunpack.c.l.b16 %v752
      %v1137 = vunpack.c.l.b16 %v753
      %v1138 = vunpack.c.l.b16 %v754
      %v1139 = vpack.c.b16 %v1092, %v1091
      %v1140 = vpack.c.b16 %v1094, %v1093
      %v1141 = vpack.c.b16 %v1096, %v1095
      %v1142 = vpack.c.b16 %v1098, %v1097
      %v1143 = vpack.c.b16 %v1100, %v1099
      %v1144 = vpack.c.b16 %v1102, %v1101
      %v1145 = vpack.c.b16 %v1104, %v1103
      %v1146 = vpack.c.b16 %v1106, %v1105
      %v1147 = vpack.c.b16 %v1108, %v1107
      %v1148 = vpack.c.b16 %v1110, %v1109
      %v1149 = vpack.c.b16 %v1112, %v1111
      %v1150 = vpack.c.b16 %v1114, %v1113
      %v1151 = vpack.c.b16 %v1116, %v1115
      %v1152 = vpack.c.b16 %v1118, %v1117
      %v1153 = vpack.c.b16 %v1120, %v1119
      %v1154 = vpack.c.b16 %v1122, %v1121
      %v1155 = vpack.c.b16 %v1124, %v1123
      %v1156 = vpack.c.b16 %v1126, %v1125
      %v1157 = vpack.c.b16 %v1128, %v1127
      %v1158 = vpack.c.b16 %v1130, %v1129
      %v1159 = vpack.c.b16 %v1132, %v1131
      %v1160 = vpack.c.b16 %v1134, %v1133
      %v1161 = vpack.c.b16 %v1136, %v1135
      %v1162 = vpack.c.b16 %v1138, %v1137
      %1187 = vmatpush.bf16.msra.mxu0 %v705
      %1188 = vmatpush.bf16.msra.mxu0 %v703
      %1189 = vmatpush.bf16.msra.mxu0 %v701
      %1190 = vmatpush.bf16.msra.mxu0 %v699
      %1191 = vmatpush.bf16.msra.mxu0 %v697
      %1192 = vmatpush.bf16.msra.mxu0 %v695
      %1193 = vmatpush.bf16.msra.mxu0 %v693
      %1194 = vmatpush.bf16.msra.mxu0 %v691
      %1195 = vmatmul.bf16.gmra.mxu0 %v1139
      %v1196 = vpop.f32.mrf.mxu0
      %v1197 = vadd.f32 %v806, %v1196
      %v1198 = vpop.f32.mrf.mxu0
      %v1199 = vadd.f32 %v811, %v1198
      %1200 = vmatmul.bf16.gmra.mxu0 %v1140
      %v1201 = vpop.f32.mrf.mxu0
      %v1202 = vadd.f32 %v816, %v1201
      %v1203 = vpop.f32.mrf.mxu0
      %v1204 = vadd.f32 %v821, %v1203
      %1205 = vmatmul.bf16.gmra.mxu0 %v1141
      %v1206 = vpop.f32.mrf.mxu0
      %v1207 = vadd.f32 %v826, %v1206
      %v1208 = vpop.f32.mrf.mxu0
      %v1209 = vadd.f32 %v831, %v1208
      %1210 = vmatmul.bf16.gmra.mxu0 %v1142
      %v1211 = vpop.f32.mrf.mxu0
      %v1212 = vadd.f32 %v836, %v1211
      %v1213 = vpop.f32.mrf.mxu0
      %v1214 = vadd.f32 %v841, %v1213
      %1215 = vmatmul.bf16.gmra.mxu0 %v1143
      %v1216 = vpop.f32.mrf.mxu0
      %v1217 = vadd.f32 %v846, %v1216
      %v1218 = vpop.f32.mrf.mxu0
      %v1219 = vadd.f32 %v851, %v1218
      %1220 = vmatmul.bf16.gmra.mxu0 %v1144
      %v1221 = vpop.f32.mrf.mxu0
      %v1222 = vadd.f32 %v856, %v1221
      %v1223 = vpop.f32.mrf.mxu0
      %v1224 = vadd.f32 %v861, %v1223
      %1225 = vmatmul.bf16.gmra.mxu0 %v1145
      %v1226 = vpop.f32.mrf.mxu0
      %v1227 = vadd.f32 %v866, %v1226
      %v1228 = vpop.f32.mrf.mxu0
      %v1229 = vadd.f32 %v871, %v1228
      %1230 = vmatmul.bf16.gmra.mxu0 %v1146
      %v1231 = vpop.f32.mrf.mxu0
      %v1232 = vadd.f32 %v876, %v1231
      %v1233 = vpop.f32.mrf.mxu0
      %v1234 = vadd.f32 %v881, %v1233
      %1235 = vmatmul.bf16.gmra.mxu0 %v1147
      %v1236 = vpop.f32.mrf.mxu0
      %v1237 = vadd.f32 %v886, %v1236
      %v1238 = vpop.f32.mrf.mxu0
      %v1239 = vadd.f32 %v891, %v1238
      %1240 = vmatmul.bf16.gmra.mxu0 %v1148
      %v1241 = vpop.f32.mrf.mxu0
      %v1242 = vadd.f32 %v896, %v1241
      %v1243 = vpop.f32.mrf.mxu0
      %v1244 = vadd.f32 %v901, %v1243
      %1245 = vmatmul.bf16.gmra.mxu0 %v1149
      %v1246 = vpop.f32.mrf.mxu0
      %v1247 = vadd.f32 %v906, %v1246
      %v1248 = vpop.f32.mrf.mxu0
      %v1249 = vadd.f32 %v911, %v1248
      %1250 = vmatmul.bf16.gmra.mxu0 %v1150
      %v1251 = vpop.f32.mrf.mxu0
      %v1252 = vadd.f32 %v916, %v1251
      %v1253 = vpop.f32.mrf.mxu0
      %v1254 = vadd.f32 %v921, %v1253
      %1255 = vmatmul.bf16.gmra.mxu0 %v1151
      %v1256 = vpop.f32.mrf.mxu0
      %v1257 = vadd.f32 %v926, %v1256
      %v1258 = vpop.f32.mrf.mxu0
      %v1259 = vadd.f32 %v931, %v1258
      %1260 = vmatmul.bf16.gmra.mxu0 %v1152
      %v1261 = vpop.f32.mrf.mxu0
      %v1262 = vadd.f32 %v936, %v1261
      %v1263 = vpop.f32.mrf.mxu0
      %v1264 = vadd.f32 %v941, %v1263
      %1265 = vmatmul.bf16.gmra.mxu0 %v1153
      %v1266 = vpop.f32.mrf.mxu0
      %v1267 = vadd.f32 %v946, %v1266
      %v1268 = vpop.f32.mrf.mxu0
      %v1269 = vadd.f32 %v951, %v1268
      %1270 = vmatmul.bf16.gmra.mxu0 %v1154
      %v1271 = vpop.f32.mrf.mxu0
      %v1272 = vadd.f32 %v956, %v1271
      %v1273 = vpop.f32.mrf.mxu0
      %v1274 = vadd.f32 %v961, %v1273
      %1275 = vmatmul.bf16.gmra.mxu0 %v1155
      %v1276 = vpop.f32.mrf.mxu0
      %v1277 = vadd.f32 %v966, %v1276
      %v1278 = vpop.f32.mrf.mxu0
      %v1279 = vadd.f32 %v971, %v1278
      %1280 = vmatmul.bf16.gmra.mxu0 %v1156
      %v1281 = vpop.f32.mrf.mxu0
      %v1282 = vadd.f32 %v976, %v1281
      %v1283 = vpop.f32.mrf.mxu0
      %v1284 = vadd.f32 %v981, %v1283
      %1285 = vmatmul.bf16.gmra.mxu0 %v1157
      %v1286 = vpop.f32.mrf.mxu0
      %v1287 = vadd.f32 %v986, %v1286
      %v1288 = vpop.f32.mrf.mxu0
      %v1289 = vadd.f32 %v991, %v1288
      %1290 = vmatmul.bf16.gmra.mxu0 %v1158
      %v1291 = vpop.f32.mrf.mxu0
      %v1292 = vadd.f32 %v996, %v1291
      %v1293 = vpop.f32.mrf.mxu0
      %v1294 = vadd.f32 %v1001, %v1293
      %1295 = vmatmul.bf16.gmra.mxu0 %v1159
      %v1296 = vpop.f32.mrf.mxu0
      %v1297 = vadd.f32 %v1006, %v1296
      %v1298 = vpop.f32.mrf.mxu0
      %v1299 = vadd.f32 %v1011, %v1298
      %1300 = vmatmul.bf16.gmra.mxu0 %v1160
      %v1301 = vpop.f32.mrf.mxu0
      %v1302 = vadd.f32 %v1016, %v1301
      %v1303 = vpop.f32.mrf.mxu0
      %v1304 = vadd.f32 %v1021, %v1303
      %1305 = vmatmul.bf16.gmra.mxu0 %v1161
      %v1306 = vpop.f32.mrf.mxu0
      %v1307 = vadd.f32 %v1026, %v1306
      %v1308 = vpop.f32.mrf.mxu0
      %v1309 = vadd.f32 %v1031, %v1308
      %1310 = vmatmul.bf16.gmra.mxu0 %v1162
      %v1311 = vpop.f32.mrf.mxu0
      %v1312 = vadd.f32 %v1036, %v1311
      %v1313 = vpop.f32.mrf.mxu0
      %v1314 = vadd.f32 %v1041, %v1313
      %1315 = vdwg.mxu0
      %1316 = vmatpush.bf16.msra.mxu0 %v706
      %1317 = vmatpush.bf16.msra.mxu0 %v704
      %1318 = vmatpush.bf16.msra.mxu0 %v702
      %1319 = vmatpush.bf16.msra.mxu0 %v700
      %1320 = vmatpush.bf16.msra.mxu0 %v698
      %1321 = vmatpush.bf16.msra.mxu0 %v696
      %1322 = vmatpush.bf16.msra.mxu0 %v694
      %1323 = vmatpush.bf16.msra.mxu0 %v692
      %1324 = vmatmul.bf16.gmra.mxu0 %v1139
      %v1325 = vpop.f32.mrf.mxu0
      %v1326 = vadd.f32 %v806, %v1325
      %v1327 = vpop.f32.mrf.mxu0
      %v1328 = vadd.f32 %v811, %v1327
      %1329 = vmatmul.bf16.gmra.mxu0 %v1140
      %v1330 = vpop.f32.mrf.mxu0
      %v1331 = vadd.f32 %v816, %v1330
      %v1332 = vpop.f32.mrf.mxu0
      %v1333 = vadd.f32 %v821, %v1332
      %1334 = vmatmul.bf16.gmra.mxu0 %v1141
      %v1335 = vpop.f32.mrf.mxu0
      %v1336 = vadd.f32 %v826, %v1335
      %v1337 = vpop.f32.mrf.mxu0
      %v1338 = vadd.f32 %v831, %v1337
      %1339 = vmatmul.bf16.gmra.mxu0 %v1142
      %v1340 = vpop.f32.mrf.mxu0
      %v1341 = vadd.f32 %v836, %v1340
      %v1342 = vpop.f32.mrf.mxu0
      %v1343 = vadd.f32 %v841, %v1342
      %1344 = vmatmul.bf16.gmra.mxu0 %v1143
      %v1345 = vpop.f32.mrf.mxu0
      %v1346 = vadd.f32 %v846, %v1345
      %v1347 = vpop.f32.mrf.mxu0
      %v1348 = vadd.f32 %v851, %v1347
      %1349 = vmatmul.bf16.gmra.mxu0 %v1144
      %v1350 = vpop.f32.mrf.mxu0
      %v1351 = vadd.f32 %v856, %v1350
      %v1352 = vpop.f32.mrf.mxu0
      %v1353 = vadd.f32 %v861, %v1352
      %1354 = vmatmul.bf16.gmra.mxu0 %v1145
      %v1355 = vpop.f32.mrf.mxu0
      %v1356 = vadd.f32 %v866, %v1355
      %v1357 = vpop.f32.mrf.mxu0
      %v1358 = vadd.f32 %v871, %v1357
      %1359 = vmatmul.bf16.gmra.mxu0 %v1146
      %v1360 = vpop.f32.mrf.mxu0
      %v1361 = vadd.f32 %v876, %v1360
      %v1362 = vpop.f32.mrf.mxu0
      %v1363 = vadd.f32 %v881, %v1362
      %1364 = vmatmul.bf16.gmra.mxu0 %v1147
      %v1365 = vpop.f32.mrf.mxu0
      %v1366 = vadd.f32 %v886, %v1365
      %v1367 = vpop.f32.mrf.mxu0
      %v1368 = vadd.f32 %v891, %v1367
      %1369 = vmatmul.bf16.gmra.mxu0 %v1148
      %v1370 = vpop.f32.mrf.mxu0
      %v1371 = vadd.f32 %v896, %v1370
      %v1372 = vpop.f32.mrf.mxu0
      %v1373 = vadd.f32 %v901, %v1372
      %1374 = vmatmul.bf16.gmra.mxu0 %v1149
      %v1375 = vpop.f32.mrf.mxu0
      %v1376 = vadd.f32 %v906, %v1375
      %v1377 = vpop.f32.mrf.mxu0
      %v1378 = vadd.f32 %v911, %v1377
      %1379 = vmatmul.bf16.gmra.mxu0 %v1150
      %v1380 = vpop.f32.mrf.mxu0
      %v1381 = vadd.f32 %v916, %v1380
      %v1382 = vpop.f32.mrf.mxu0
      %v1383 = vadd.f32 %v921, %v1382
      %1384 = vmatmul.bf16.gmra.mxu0 %v1151
      %v1385 = vpop.f32.mrf.mxu0
      %v1386 = vadd.f32 %v926, %v1385
      %v1387 = vpop.f32.mrf.mxu0
      %v1388 = vadd.f32 %v931, %v1387
      %1389 = vmatmul.bf16.gmra.mxu0 %v1152
      %v1390 = vpop.f32.mrf.mxu0
      %v1391 = vadd.f32 %v936, %v1390
      %v1392 = vpop.f32.mrf.mxu0
      %v1393 = vadd.f32 %v941, %v1392
      %1394 = vmatmul.bf16.gmra.mxu0 %v1153
      %v1395 = vpop.f32.mrf.mxu0
      %v1396 = vadd.f32 %v946, %v1395
      %v1397 = vpop.f32.mrf.mxu0
      %v1398 = vadd.f32 %v951, %v1397
      %1399 = vmatmul.bf16.gmra.mxu0 %v1154
      %v1400 = vpop.f32.mrf.mxu0
      %v1401 = vadd.f32 %v956, %v1400
      %v1402 = vpop.f32.mrf.mxu0
      %v1403 = vadd.f32 %v961, %v1402
      %1404 = vmatmul.bf16.gmra.mxu0 %v1155
      %v1405 = vpop.f32.mrf.mxu0
      %v1406 = vadd.f32 %v966, %v1405
      %v1407 = vpop.f32.mrf.mxu0
      %v1408 = vadd.f32 %v971, %v1407
      %1409 = vmatmul.bf16.gmra.mxu0 %v1156
      %v1410 = vpop.f32.mrf.mxu0
      %v1411 = vadd.f32 %v976, %v1410
      %v1412 = vpop.f32.mrf.mxu0
      %v1413 = vadd.f32 %v981, %v1412
      %1414 = vmatmul.bf16.gmra.mxu0 %v1157
      %v1415 = vpop.f32.mrf.mxu0
      %v1416 = vadd.f32 %v986, %v1415
      %v1417 = vpop.f32.mrf.mxu0
      %v1418 = vadd.f32 %v991, %v1417
      %1419 = vmatmul.bf16.gmra.mxu0 %v1158
      %v1420 = vpop.f32.mrf.mxu0
      %v1421 = vadd.f32 %v996, %v1420
      %v1422 = vpop.f32.mrf.mxu0
      %v1423 = vadd.f32 %v1001, %v1422
      %1424 = vmatmul.bf16.gmra.mxu0 %v1159
      %v1425 = vpop.f32.mrf.mxu0
      %v1426 = vadd.f32 %v1006, %v1425
      %v1427 = vpop.f32.mrf.mxu0
      %v1428 = vadd.f32 %v1011, %v1427
      %1429 = vmatmul.bf16.gmra.mxu0 %v1160
      %v1430 = vpop.f32.mrf.mxu0
      %v1431 = vadd.f32 %v1016, %v1430
      %v1432 = vpop.f32.mrf.mxu0
      %v1433 = vadd.f32 %v1021, %v1432
      %1434 = vmatmul.bf16.gmra.mxu0 %v1161
      %v1435 = vpop.f32.mrf.mxu0
      %v1436 = vadd.f32 %v1026, %v1435
      %v1437 = vpop.f32.mrf.mxu0
      %v1438 = vadd.f32 %v1031, %v1437
      %1439 = vmatmul.bf16.gmra.mxu0 %v1162
      %v1440 = vpop.f32.mrf.mxu0
      %v1441 = vadd.f32 %v1036, %v1440
      %v1442 = vpop.f32.mrf.mxu0
      %v1443 = vadd.f32 %v1041, %v1442
      %1444 = vdwg.mxu0
      %1445 = vxpose.xlu0.b32.start [1/16] %v1197, 128
      %1446 = vxpose.xlu0.b32.cont [2/16] %v1199, 128
      %1447 = vxpose.xlu0.b32.cont [3/16] %v1202, 128
      %1448 = vxpose.xlu0.b32.cont [4/16] %v1204, 128
      %1449 = vxpose.xlu0.b32.cont [5/16] %v1207, 128
      %1450 = vxpose.xlu0.b32.cont [6/16] %v1209, 128
      %1451 = vxpose.xlu0.b32.cont [7/16] %v1212, 128
      %1452 = vxpose.xlu0.b32.cont [8/16] %v1214, 128
      %1453 = vxpose.xlu0.b32.cont [9/16] %v1217, 128
      %1454 = vxpose.xlu0.b32.cont [10/16] %v1219, 128
      %1455 = vxpose.xlu0.b32.cont [11/16] %v1222, 128
      %1456 = vxpose.xlu0.b32.cont [12/16] %v1224, 128
      %1457 = vxpose.xlu0.b32.cont [13/16] %v1227, 128
      %1458 = vxpose.xlu0.b32.cont [14/16] %v1229, 128
      %1459 = vxpose.xlu0.b32.cont [15/16] %v1232, 128
      %1460 = vxpose.xlu0.b32.end [16/16] %v1234, 128
      %v1461 = vpop.trf.xlu0
      %v1462 = vpop.trf.xlu0
      %v1463 = vpop.trf.xlu0
      %v1464 = vpop.trf.xlu0
      %v1465 = vpop.trf.xlu0
      %v1466 = vpop.trf.xlu0
      %v1467 = vpop.trf.xlu0
      %v1468 = vpop.trf.xlu0
      %v1469 = vpop.trf.xlu0
      %v1470 = vpop.trf.xlu0
      %v1471 = vpop.trf.xlu0
      %v1472 = vpop.trf.xlu0
      %v1473 = vpop.trf.xlu0
      %v1474 = vpop.trf.xlu0
      %v1475 = vpop.trf.xlu0
      %v1476 = vpop.trf.xlu0
      %1477 = vxpose.xlu0.b32.start [1/16] %v1326, 128
      %1478 = vxpose.xlu0.b32.cont [2/16] %v1328, 128
      %1479 = vxpose.xlu0.b32.cont [3/16] %v1331, 128
      %1480 = vxpose.xlu0.b32.cont [4/16] %v1333, 128
      %1481 = vxpose.xlu0.b32.cont [5/16] %v1336, 128
      %1482 = vxpose.xlu0.b32.cont [6/16] %v1338, 128
      %1483 = vxpose.xlu0.b32.cont [7/16] %v1341, 128
      %1484 = vxpose.xlu0.b32.cont [8/16] %v1343, 128
      %1485 = vxpose.xlu0.b32.cont [9/16] %v1346, 128
      %1486 = vxpose.xlu0.b32.cont [10/16] %v1348, 128
      %1487 = vxpose.xlu0.b32.cont [11/16] %v1351, 128
      %1488 = vxpose.xlu0.b32.cont [12/16] %v1353, 128
      %1489 = vxpose.xlu0.b32.cont [13/16] %v1356, 128
      %1490 = vxpose.xlu0.b32.cont [14/16] %v1358, 128
      %1491 = vxpose.xlu0.b32.cont [15/16] %v1361, 128
      %1492 = vxpose.xlu0.b32.end [16/16] %v1363, 128
      %v1493 = vpop.trf.xlu0
      %v1494 = vpop.trf.xlu0
      %v1495 = vpop.trf.xlu0
      %v1496 = vpop.trf.xlu0
      %v1497 = vpop.trf.xlu0
      %v1498 = vpop.trf.xlu0
      %v1499 = vpop.trf.xlu0
      %v1500 = vpop.trf.xlu0
      %v1501 = vpop.trf.xlu0
      %v1502 = vpop.trf.xlu0
      %v1503 = vpop.trf.xlu0
      %v1504 = vpop.trf.xlu0
      %v1505 = vpop.trf.xlu0
      %v1506 = vpop.trf.xlu0
      %v1507 = vpop.trf.xlu0
      %v1508 = vpop.trf.xlu0
      %v1509 = vpack.c.bf16 %v1461, %v1461
      %v1510 = vpack.c.bf16 %v1462, %v1462
      %v1511 = vpack.c.bf16 %v1463, %v1463
      %v1512 = vpack.c.bf16 %v1464, %v1464
      %v1513 = vpack.c.bf16 %v1465, %v1465
      %v1514 = vpack.c.bf16 %v1466, %v1466
      %v1515 = vpack.c.bf16 %v1467, %v1467
      %v1516 = vpack.c.bf16 %v1468, %v1468
      %v1517 = vpack.c.bf16 %v1469, %v1469
      %v1518 = vpack.c.bf16 %v1470, %v1470
      %v1519 = vpack.c.bf16 %v1471, %v1471
      %v1520 = vpack.c.bf16 %v1472, %v1472
      %v1521 = vpack.c.bf16 %v1473, %v1473
      %v1522 = vpack.c.bf16 %v1474, %v1474
      %v1523 = vpack.c.bf16 %v1475, %v1475
      %v1524 = vpack.c.bf16 %v1476, %v1476
      %v1525 = vpack.c.bf16 %v1493, %v1493
      %v1526 = vpack.c.bf16 %v1494, %v1494
      %v1527 = vpack.c.bf16 %v1495, %v1495
      %v1528 = vpack.c.bf16 %v1496, %v1496
      %v1529 = vpack.c.bf16 %v1497, %v1497
      %v1530 = vpack.c.bf16 %v1498, %v1498
      %v1531 = vpack.c.bf16 %v1499, %v1499
      %v1532 = vpack.c.bf16 %v1500, %v1500
      %v1533 = vpack.c.bf16 %v1501, %v1501
      %v1534 = vpack.c.bf16 %v1502, %v1502
      %v1535 = vpack.c.bf16 %v1503, %v1503
      %v1536 = vpack.c.bf16 %v1504, %v1504
      %v1537 = vpack.c.bf16 %v1505, %v1505
      %v1538 = vpack.c.bf16 %v1506, %v1506
      %v1539 = vpack.c.bf16 %v1507, %v1507
      %v1540 = vpack.c.bf16 %v1508, %v1508
      %1541 = vst [vmem:[%s383] sm:$0xf] %v1509
      %1542 = vst [vmem:[%s383 + $0x4] sm:$0xf] %v1510
      %1543 = vst [vmem:[%s383 + $0x8] sm:$0xf] %v1511
      %1544 = vst [vmem:[%s383 + $0xc] sm:$0xf] %v1512
      %1545 = vst [vmem:[%s383 + $0x10] sm:$0xf] %v1513
      %1546 = vst [vmem:[%s383 + $0x14] sm:$0xf] %v1514
      %1547 = vst [vmem:[%s383 + $0x18] sm:$0xf] %v1515
      %1548 = vst [vmem:[%s383 + $0x1c] sm:$0xf] %v1516
      %1549 = vst [vmem:[%s383 + $0x20] sm:$0xf] %v1517
      %1550 = vst [vmem:[%s383 + $0x24] sm:$0xf] %v1518
      %1551 = vst [vmem:[%s383 + $0x28] sm:$0xf] %v1519
      %1552 = vst [vmem:[%s383 + $0x2c] sm:$0xf] %v1520
      %1553 = vst [vmem:[%s383 + $0x30] sm:$0xf] %v1521
      %1554 = vst [vmem:[%s383 + $0x34] sm:$0xf] %v1522
      %1555 = vst [vmem:[%s383 + $0x38] sm:$0xf] %v1523
      %1556 = vst [vmem:[%s383 + $0x3c] sm:$0xf] %v1524
      %1557 = vst [vmem:[%s383 + $0x40] sm:$0xf] %v1525
      %1558 = vst [vmem:[%s383 + $0x44] sm:$0xf] %v1526
      %1559 = vst [vmem:[%s383 + $0x48] sm:$0xf] %v1527
      %1560 = vst [vmem:[%s383 + $0x4c] sm:$0xf] %v1528
      %1561 = vst [vmem:[%s383 + $0x50] sm:$0xf] %v1529
      %1562 = vst [vmem:[%s383 + $0x54] sm:$0xf] %v1530
      %1563 = vst [vmem:[%s383 + $0x58] sm:$0xf] %v1531
      %1564 = vst [vmem:[%s383 + $0x5c] sm:$0xf] %v1532
      %1565 = vst [vmem:[%s383 + $0x60] sm:$0xf] %v1533
      %1566 = vst [vmem:[%s383 + $0x64] sm:$0xf] %v1534
      %1567 = vst [vmem:[%s383 + $0x68] sm:$0xf] %v1535
      %1568 = vst [vmem:[%s383 + $0x6c] sm:$0xf] %v1536
      %1569 = vst [vmem:[%s383 + $0x70] sm:$0xf] %v1537
      %1570 = vst [vmem:[%s383 + $0x74] sm:$0xf] %v1538
      %1571 = vst [vmem:[%s383 + $0x78] sm:$0xf] %v1539
      %1572 = vst [vmem:[%s383 + $0x7c] sm:$0xf] %v1540
      %v1573 = vpack.c.bf16 %v1366, %v1237
      %v1574 = vpack.c.bf16 %v1368, %v1239
      %v1575 = vpack.c.bf16 %v1371, %v1242
      %v1576 = vpack.c.bf16 %v1373, %v1244
      %v1577 = vpack.c.bf16 %v1376, %v1247
      %v1578 = vpack.c.bf16 %v1378, %v1249
      %v1579 = vpack.c.bf16 %v1381, %v1252
      %v1580 = vpack.c.bf16 %v1383, %v1254
      %v1581 = vpack.c.bf16 %v1386, %v1257
      %v1582 = vpack.c.bf16 %v1388, %v1259
      %v1583 = vpack.c.bf16 %v1391, %v1262
      %v1584 = vpack.c.bf16 %v1393, %v1264
      %v1585 = vpack.c.bf16 %v1396, %v1267
      %v1586 = vpack.c.bf16 %v1398, %v1269
      %v1587 = vpack.c.bf16 %v1401, %v1272
      %v1588 = vpack.c.bf16 %v1403, %v1274
      %1589 = vst [vmem:[%s393] sm:$0xff] %v1573
      %1590 = vst [vmem:[%s393 + $0x8] sm:$0xff] %v1574
      %1591 = vst [vmem:[%s393 + $0x10] sm:$0xff] %v1575
      %1592 = vst [vmem:[%s393 + $0x18] sm:$0xff] %v1576
      %1593 = vst [vmem:[%s393 + $0x20] sm:$0xff] %v1577
      %1594 = vst [vmem:[%s393 + $0x28] sm:$0xff] %v1578
      %1595 = vst [vmem:[%s393 + $0x30] sm:$0xff] %v1579
      %1596 = vst [vmem:[%s393 + $0x38] sm:$0xff] %v1580
      %1597 = vst [vmem:[%s393 + $0x40] sm:$0xff] %v1581
      %1598 = vst [vmem:[%s393 + $0x48] sm:$0xff] %v1582
      %1599 = vst [vmem:[%s393 + $0x50] sm:$0xff] %v1583
      %1600 = vst [vmem:[%s393 + $0x58] sm:$0xff] %v1584
      %1601 = vst [vmem:[%s393 + $0x60] sm:$0xff] %v1585
      %1602 = vst [vmem:[%s393 + $0x68] sm:$0xff] %v1586
      %1603 = vst [vmem:[%s393 + $0x70] sm:$0xff] %v1587
      %1604 = vst [vmem:[%s393 + $0x78] sm:$0xff] %v1588
      %v1605 = vpack.c.bf16 %v1406, %v1277
      %v1606 = vpack.c.bf16 %v1408, %v1279
      %v1607 = vpack.c.bf16 %v1411, %v1282
      %v1608 = vpack.c.bf16 %v1413, %v1284
      %v1609 = vpack.c.bf16 %v1416, %v1287
      %v1610 = vpack.c.bf16 %v1418, %v1289
      %v1611 = vpack.c.bf16 %v1421, %v1292
      %v1612 = vpack.c.bf16 %v1423, %v1294
      %v1613 = vpack.c.bf16 %v1426, %v1297
      %v1614 = vpack.c.bf16 %v1428, %v1299
      %v1615 = vpack.c.bf16 %v1431, %v1302
      %v1616 = vpack.c.bf16 %v1433, %v1304
      %v1617 = vpack.c.bf16 %v1436, %v1307
      %v1618 = vpack.c.bf16 %v1438, %v1309
      %v1619 = vpack.c.bf16 %v1441, %v1312
      %v1620 = vpack.c.bf16 %v1443, %v1314
      %1621 = vst [vmem:[%s402] sm:$0xff] %v1605
      %1622 = vst [vmem:[%s402 + $0x8] sm:$0xff] %v1606
      %1623 = vst [vmem:[%s402 + $0x10] sm:$0xff] %v1607
      %1624 = vst [vmem:[%s402 + $0x18] sm:$0xff] %v1608
      %1625 = vst [vmem:[%s402 + $0x20] sm:$0xff] %v1609
      %1626 = vst [vmem:[%s402 + $0x28] sm:$0xff] %v1610
      %1627 = vst [vmem:[%s402 + $0x30] sm:$0xff] %v1611
      %1628 = vst [vmem:[%s402 + $0x38] sm:$0xff] %v1612
      %1629 = vst [vmem:[%s402 + $0x40] sm:$0xff] %v1613
      %1630 = vst [vmem:[%s402 + $0x48] sm:$0xff] %v1614
      %1631 = vst [vmem:[%s402 + $0x50] sm:$0xff] %v1615
      %1632 = vst [vmem:[%s402 + $0x58] sm:$0xff] %v1616
      %1633 = vst [vmem:[%s402 + $0x60] sm:$0xff] %v1617
      %1634 = vst [vmem:[%s402 + $0x68] sm:$0xff] %v1618
      %1635 = vst [vmem:[%s402 + $0x70] sm:$0xff] %v1619
      %1636 = vst [vmem:[%s402 + $0x78] sm:$0xff] %v1620
      %s1637 = smul.u32 32, %s24
      %p1638 = scmp.lt.s32.totalorder %s23, 1
      %s1639 = scalar_select %p1638, %s23, 1
      %p1640 = scmp.lt.s32.totalorder %s1637, 31
      %s1641 = scalar_select %p1640, %s1637, 31
      %s1642 = smul.addr %s1639, 32
      %s1643 = sadd.s32 %s1641, %s1642
      %s1644 = smul.addr %s1643, 4
      %s1645 = scalar_lea.vmem %s5, %s1644
      %p1646 = scmp.lt.s32.totalorder %s23, 1
      %s1647 = scalar_select %p1646, %s23, 1
      %p1648 = scmp.lt.s32.totalorder %s24, 0
      %s1649 = scalar_select %p1648, %s24, 0
      %s1650 = smul.addr %s1649, 32
      %s1651 = smul.addr %s1647, 32
      %s1652 = sadd.s32 %s1650, %s1651
      %s1653 = smul.addr %s1652, 4
      %s1654 = scalar_lea.vmem %s6, %s1653
      %p1655 = scmp.lt.s32.totalorder %s23, 1
      %s1656 = scalar_select %p1655, %s23, 1
      %p1657 = scmp.lt.s32.totalorder %s24, 0
      %s1658 = scalar_select %p1657, %s24, 0
      %s1659 = smul.addr %s1658, 32
      %s1660 = smul.addr %s1656, 32
      %s1661 = sadd.s32 %s1659, %s1660
      %s1662 = smul.addr %s1661, 4
      %s1663 = scalar_lea.vmem %s7, %s1662
      // Predicated region
      $region41: #{attn_block.4} parent=39 // pred_check
        %p1664 = pneg %p173
      $region42: #{attn_block.4} parent=39 // pred_check_branch
        %1666 = sbr.rel (%p1664) target = $region44
      $region43: #{attn_block.4} parent=39 // pred_region
        %s1667 = smul.u32 32, %s24
      $region44: #{attn_block.4} parent=39 // pred_fallthru
        _
      // Predicated region
      $region45: #{attn_block.4} parent=39 // pred_check
        %p1668 = pneg %p201
      $region46: #{attn_block.4} parent=39 // pred_check_branch
        %1670 = sbr.rel (%p1668) target = $region48
      $region47: #{attn_block.4} parent=39 // pred_region
        _
      $region48: #{attn_block.4} parent=39 // pred_fallthru
        _
      // Predicated region
      $region49: #{attn_block.4} parent=39 // pred_check
        %p1671 = pneg %p229
      $region50: #{attn_block.4} parent=39 // pred_check_branch
        %1673 = sbr.rel (%p1671) target = $region52
      $region51: #{attn_block.4} parent=39 // pred_region
        _
      $region52: #{attn_block.4} parent=39 // pred_fallthru
        _
    $region40: #{attn_block.4} parent=5 // pred_fallthru
      _
    %p1674 = scmp.le.s32.totalorder 2, %s14
    // Predicated region
    $region53: #{attn_block.4} parent=5 // pred_check
      %p1675 = pneg %p1674
    $region54: #{attn_block.4} parent=5 // pred_check_branch
      %1677 = sbr.rel (%p1675) target = $region56
    $region55: #{attn_block.4} parent=5 // pred_region
      %s1678 = ssub.s32 %s14, 2
      // Predicated region
      $region57: #{attn_block.4} parent=55 // pred_check
        %p1679 = pneg %p179
      $region58: #{attn_block.4} parent=55 // pred_check_branch
        %1681 = sbr.rel (%p1679) target = $region60
      $region59: #{attn_block.4} parent=55 // pred_region
        %s1682 = smul.u32 32, %s26
        %p1683 = scmp.lt.s32.totalorder %s25, 1
        %s1684 = scalar_select %p1683, %s25, 1
        %p1685 = scmp.lt.s32.totalorder %s1682, 31
        %s1686 = scalar_select %p1685, %s1682, 31
        %s1687 = smul.addr %s1684, 32
        %s1688 = sadd.s32 %s1686, %s1687
        %s1689 = smul.addr %s1688, 4
        %s1690 = scalar_lea.vmem %s5, %s1689
      $region60: #{attn_block.4} parent=55 // pred_fallthru
        _
      // Predicated region
      $region61: #{attn_block.4} parent=55 // pred_check
        %p1691 = pneg %p207
      $region62: #{attn_block.4} parent=55 // pred_check_branch
        %1693 = sbr.rel (%p1691) target = $region64
      $region63: #{attn_block.4} parent=55 // pred_region
        %p1694 = scmp.lt.s32.totalorder %s25, 1
        %s1695 = scalar_select %p1694, %s25, 1
        %p1696 = scmp.lt.s32.totalorder %s26, 0
        %s1697 = scalar_select %p1696, %s26, 0
        %s1698 = smul.addr %s1697, 32
        %s1699 = smul.addr %s1695, 32
        %s1700 = sadd.s32 %s1698, %s1699
        %s1701 = smul.addr %s1700, 4
        %s1702 = scalar_lea.vmem %s6, %s1701
      $region64: #{attn_block.4} parent=55 // pred_fallthru
        _
      // Predicated region
      $region65: #{attn_block.4} parent=55 // pred_check
        %p1703 = pneg %p235
      $region66: #{attn_block.4} parent=55 // pred_check_branch
        %1705 = sbr.rel (%p1703) target = $region68
      $region67: #{attn_block.4} parent=55 // pred_region
        %p1706 = scmp.lt.s32.totalorder %s25, 1
        %s1707 = scalar_select %p1706, %s25, 1
        %p1708 = scmp.lt.s32.totalorder %s26, 0
        %s1709 = scalar_select %p1708, %s26, 0
        %s1710 = smul.addr %s1709, 32
        %s1711 = smul.addr %s1707, 32
        %s1712 = sadd.s32 %s1710, %s1711
        %s1713 = smul.addr %s1712, 4
        %s1714 = scalar_lea.vmem %s7, %s1713
      $region68: #{attn_block.4} parent=55 // pred_fallthru
        _
    $region56: #{attn_block.4} parent=5 // pred_fallthru
      _
  $region6: #{attn_block.4} parent=0 // loop_footer
    %s18 = sadd.s32 1, %s14
  $region7: #{attn_block.4} parent=0 // loop_footer_branch
    %13 = sbr.rel target = $region3
  $region8: #{attn_block.4} parent=0 // loop_exit
    _

// kernel: attn_block.5
$region0: #{attn_block.5}
  #allocation0 [shape = 'u32[]', space=smem, size = 0x4, offset = 0x4, fixed_abs, tag = 'smem constant byte address 0x4 - core index']
  #allocation1 [shape = 'u32[72,128]{1,0:T(1,128)}', space=vmem, size = 0x9000, scoped, tag = 'internal scratch']
  #allocation2 [shape = 'f32[256,1]{1,0:T(8,128)}', space=vmem, size = 0x20000, scoped, tag = 'scratch operand']
  #allocation3 [shape = 'f32[256,1]{1,0:T(8,128)}', space=vmem, size = 0x20000, scoped, tag = 'scratch operand']
  #allocation4 [shape = 'f32[256,128]{1,0:T(8,128)}', space=vmem, size = 0x20000, scoped, tag = 'scratch operand']
  %s0 = inlined_call_operand.vmem [shape: f32[2,128,256], index: 0, kind: input, shape index: {}]
  %s1 = inlined_call_operand.vmem [shape: bf16[2,256,128], index: 1, kind: input, shape index: {}]
  %s2 = inlined_call_operand.vmem [shape: bf16[2,1,128,256], index: 2, kind: input, shape index: {}]
  %s3 = inlined_call_operand.vmem [shape: bf16[2,1,128,256], index: 3, kind: input, shape index: {}]
  %s4 = inlined_call_operand.vmem [shape: bf16[128,128], index: 4, kind: input, shape index: {}]
  %s5 = inlined_call_operand.vmem [shape: f32[128,1], index: 5, kind: input, shape index: {}]
  %s6 = inlined_call_operand.vmem [shape: f32[2,128,256], index: 6, kind: output, shape index: {}]
  %s7 = sld [smem:[#allocation0]]
  $region65: #{attn_block.5} parent=0
    _
  %s9 = ssub.s32 1, %s7
  %s10 = scalar_select 0, %s9, %s7
  loop: start=0, step=1, limit=4
  $region2: #{attn_block.5} parent=0 // loop_pre_header
    _
  $region3: #{attn_block.5} parent=0 // loop_header
    %s12 = sphi 0, %s16
    %p13 = scmp.ge.s32.totalorder %s12, 4
    %s19 = sphi 0, %s38
    %s20 = sphi 0, %s34
    %s21 = sphi 0, %s30
    %s22 = sphi 0, %s19
    %s23 = sphi 0, %s20
    %s24 = sphi 0, %s21
    %s25 = sphi 0, %s22
    %s26 = sphi 0, %s23
    %s27 = sphi 0, %s24
    %s43 = sphi 0, %s45
    %s46 = sphi 0, %s43
    %s47 = sphi 0, %s46
    %s63 = sphi 0, %s47
    %s71 = sphi 0, %s73
    %s74 = sphi 0, %s71
    %s75 = sphi 0, %s74
    %s91 = sphi 0, %s75
    %s99 = sphi 0, %s101
    %s102 = sphi 0, %s99
    %s103 = sphi 0, %s102
    %s119 = sphi 0, %s103
    %s127 = sphi 0, %s129
    %s130 = sphi 0, %s127
    %s131 = sphi 0, %s130
    %s147 = sphi 0, %s131
    %s151 = sphi 0, %s151
    %s153 = sphi 0, %s151
    %s154 = sphi 0, %s153
    %s168 = sphi 0, %s154
    %s172 = sphi 0, %s172
    %s174 = sphi 0, %s172
    %s175 = sphi 0, %s174
    %s189 = sphi 0, %s175
    %s197 = sphi 0, %s199
    %s200 = sphi 0, %s197
    %s201 = sphi 0, %s200
    %s217 = sphi 0, %s201
  $region4: #{attn_block.5} parent=0 // loop_header_branch
    %15 = sbr.rel (%p13) target = $region8
  $region5: #{attn_block.5} parent=0 // loop_body
    %s17 = ssub.s32 %s12, 1
    %s18 = ssub.s32 %s12, 2
    %s28 = sadd.s32 1, %s21
    %p29 = scmp.ge.s32.totalorder %s28, 1
    %s30 = scalar_select %p29, 0, %s28
    %s31 = sadd.s32 1, %s20
    %s32 = scalar_select %p29, %s31, %s20
    %p33 = scmp.ge.s32.totalorder %s32, 1
    %s34 = scalar_select %p33, 0, %s32
    %s35 = sadd.s32 1, %s19
    %s36 = scalar_select %p33, %s35, %s19
    %p37 = scmp.ge.s32.totalorder %s36, 2
    %s38 = scalar_select %p37, 0, %s36
    %s39 = ssub.s32 %s19, %s38
    %s40 = ssub.s32 %s20, %s34
    %s41 = sor.u32 %s39, %s40
    %p42 = scmp.eq.s32.totalorder %s41, 0
    %s44 = sadd.s32 %s43, 1
    %s45 = scalar_select %p42, %s43, %s44
    %p48 = pneg %p42
    %p49 = scmp.eq.s32.totalorder %s12, 1
    %p50 = por %p48, %p49
    %p51 = scmp.ne.s32.totalorder %s43, %s46
    %p52 = scmp.eq.s32.totalorder %s12, 0
    %p53 = por %p51, %p52
    %p54 = scmp.ne.s32.totalorder %s43, %s46
    %p55 = scmp.eq.s32.totalorder %s17, 1
    %p56 = por %p54, %p55
    %p57 = scmp.ne.s32.totalorder %s46, %s47
    %p58 = scmp.eq.s32.totalorder %s17, 0
    %p59 = por %p57, %p58
    %p60 = scmp.ne.s32.totalorder %s46, %s47
    %p61 = scmp.eq.s32.totalorder %s18, 1
    %p62 = por %p60, %p61
    %p64 = scmp.ne.s32.totalorder %s47, %s63
    %p65 = scmp.eq.s32.totalorder %s18, 0
    %p66 = por %p64, %p65
    %s67 = ssub.s32 %s19, %s38
    %s68 = ssub.s32 %s20, %s34
    %s69 = sor.u32 %s67, %s68
    %p70 = scmp.eq.s32.totalorder %s69, 0
    %s72 = sadd.s32 %s71, 1
    %s73 = scalar_select %p70, %s71, %s72
    %p76 = pneg %p70
    %p77 = scmp.eq.s32.totalorder %s12, 1
    %p78 = por %p76, %p77
    %p79 = scmp.ne.s32.totalorder %s71, %s74
    %p80 = scmp.eq.s32.totalorder %s12, 0
    %p81 = por %p79, %p80
    %p82 = scmp.ne.s32.totalorder %s71, %s74
    %p83 = scmp.eq.s32.totalorder %s17, 1
    %p84 = por %p82, %p83
    %p85 = scmp.ne.s32.totalorder %s74, %s75
    %p86 = scmp.eq.s32.totalorder %s17, 0
    %p87 = por %p85, %p86
    %p88 = scmp.ne.s32.totalorder %s74, %s75
    %p89 = scmp.eq.s32.totalorder %s18, 1
    %p90 = por %p88, %p89
    %p92 = scmp.ne.s32.totalorder %s75, %s91
    %p93 = scmp.eq.s32.totalorder %s18, 0
    %p94 = por %p92, %p93
    %s95 = ssub.s32 %s19, %s38
    %s96 = ssub.s32 %s21, %s30
    %s97 = sor.u32 %s95, %s96
    %p98 = scmp.eq.s32.totalorder %s97, 0
    %s100 = sadd.s32 %s99, 1
    %s101 = scalar_select %p98, %s99, %s100
    %p104 = pneg %p98
    %p105 = scmp.eq.s32.totalorder %s12, 1
    %p106 = por %p104, %p105
    %p107 = scmp.ne.s32.totalorder %s99, %s102
    %p108 = scmp.eq.s32.totalorder %s12, 0
    %p109 = por %p107, %p108
    %p110 = scmp.ne.s32.totalorder %s99, %s102
    %p111 = scmp.eq.s32.totalorder %s17, 1
    %p112 = por %p110, %p111
    %p113 = scmp.ne.s32.totalorder %s102, %s103
    %p114 = scmp.eq.s32.totalorder %s17, 0
    %p115 = por %p113, %p114
    %p116 = scmp.ne.s32.totalorder %s102, %s103
    %p117 = scmp.eq.s32.totalorder %s18, 1
    %p118 = por %p116, %p117
    %p120 = scmp.ne.s32.totalorder %s103, %s119
    %p121 = scmp.eq.s32.totalorder %s18, 0
    %p122 = por %p120, %p121
    %s123 = ssub.s32 %s19, %s38
    %s124 = ssub.s32 %s21, %s30
    %s125 = sor.u32 %s123, %s124
    %p126 = scmp.eq.s32.totalorder %s125, 0
    %s128 = sadd.s32 %s127, 1
    %s129 = scalar_select %p126, %s127, %s128
    %p132 = pneg %p126
    %p133 = scmp.eq.s32.totalorder %s12, 1
    %p134 = por %p132, %p133
    %p135 = scmp.ne.s32.totalorder %s127, %s130
    %p136 = scmp.eq.s32.totalorder %s12, 0
    %p137 = por %p135, %p136
    %p138 = scmp.ne.s32.totalorder %s127, %s130
    %p139 = scmp.eq.s32.totalorder %s17, 1
    %p140 = por %p138, %p139
    %p141 = scmp.ne.s32.totalorder %s130, %s131
    %p142 = scmp.eq.s32.totalorder %s17, 0
    %p143 = por %p141, %p142
    %p144 = scmp.ne.s32.totalorder %s130, %s131
    %p145 = scmp.eq.s32.totalorder %s18, 1
    %p146 = por %p144, %p145
    %p148 = scmp.ne.s32.totalorder %s131, %s147
    %p149 = scmp.eq.s32.totalorder %s18, 0
    %p150 = por %p148, %p149
    %s152 = sadd.s32 %s151, 1
    %p155 = scmp.eq.s32.totalorder %s12, 1
    %p156 = scmp.ne.s32.totalorder %s151, %s153
    %p157 = scmp.eq.s32.totalorder %s12, 0
    %p158 = por %p156, %p157
    %p159 = scmp.ne.s32.totalorder %s151, %s153
    %p160 = scmp.eq.s32.totalorder %s17, 1
    %p161 = por %p159, %p160
    %p162 = scmp.ne.s32.totalorder %s153, %s154
    %p163 = scmp.eq.s32.totalorder %s17, 0
    %p164 = por %p162, %p163
    %p165 = scmp.ne.s32.totalorder %s153, %s154
    %p166 = scmp.eq.s32.totalorder %s18, 1
    %p167 = por %p165, %p166
    %p169 = scmp.ne.s32.totalorder %s154, %s168
    %p170 = scmp.eq.s32.totalorder %s18, 0
    %p171 = por %p169, %p170
    %s173 = sadd.s32 %s172, 1
    %p176 = scmp.eq.s32.totalorder %s12, 1
    %p177 = scmp.ne.s32.totalorder %s172, %s174
    %p178 = scmp.eq.s32.totalorder %s12, 0
    %p179 = por %p177, %p178
    %p180 = scmp.ne.s32.totalorder %s172, %s174
    %p181 = scmp.eq.s32.totalorder %s17, 1
    %p182 = por %p180, %p181
    %p183 = scmp.ne.s32.totalorder %s174, %s175
    %p184 = scmp.eq.s32.totalorder %s17, 0
    %p185 = por %p183, %p184
    %p186 = scmp.ne.s32.totalorder %s174, %s175
    %p187 = scmp.eq.s32.totalorder %s18, 1
    %p188 = por %p186, %p187
    %p190 = scmp.ne.s32.totalorder %s175, %s189
    %p191 = scmp.eq.s32.totalorder %s18, 0
    %p192 = por %p190, %p191
    %s193 = ssub.s32 %s19, %s38
    %s194 = ssub.s32 %s20, %s34
    %s195 = sor.u32 %s193, %s194
    %p196 = scmp.eq.s32.totalorder %s195, 0
    %s198 = sadd.s32 %s197, 1
    %s199 = scalar_select %p196, %s197, %s198
    %p202 = pneg %p196
    %p203 = scmp.eq.s32.totalorder %s12, 1
    %p204 = por %p202, %p203
    %p205 = scmp.ne.s32.totalorder %s197, %s200
    %p206 = scmp.eq.s32.totalorder %s12, 0
    %p207 = por %p205, %p206
    %p208 = scmp.ne.s32.totalorder %s197, %s200
    %p209 = scmp.eq.s32.totalorder %s17, 1
    %p210 = por %p208, %p209
    %p211 = scmp.ne.s32.totalorder %s200, %s201
    %p212 = scmp.eq.s32.totalorder %s17, 0
    %p213 = por %p211, %p212
    %p214 = scmp.ne.s32.totalorder %s200, %s201
    %p215 = scmp.eq.s32.totalorder %s18, 1
    %p216 = por %p214, %p215
    %p218 = scmp.ne.s32.totalorder %s201, %s217
    %p219 = scmp.eq.s32.totalorder %s18, 0
    %p220 = por %p218, %p219
    %p221 = scmp.le.s32.totalorder 1, %s12
    %p222 = scmp.lt.s32.totalorder %s12, 3
    %p223 = pnand %p221, %p222
    %p224 = pneg %p223
    // Predicated region
    $region9: #{attn_block.5} parent=5 // pred_check
      _
    $region10: #{attn_block.5} parent=5 // pred_check_branch
      %226 = sbr.rel (%p223) target = $region12
    $region11: #{attn_block.5} parent=5 // pred_region
      %s227 = ssub.s32 %s12, 1
      // Predicated region
      $region13: #{attn_block.5} parent=11 // pred_check
        %p228 = pneg %p164
      $region14: #{attn_block.5} parent=11 // pred_check_branch
        %230 = sbr.rel (%p228) target = $region16
      $region15: #{attn_block.5} parent=11 // pred_region
        _
      $region16: #{attn_block.5} parent=11 // pred_fallthru
        _
      // Predicated region
      $region17: #{attn_block.5} parent=11 // pred_check
        %p231 = pneg %p185
      $region18: #{attn_block.5} parent=11 // pred_check_branch
        %233 = sbr.rel (%p231) target = $region20
      $region19: #{attn_block.5} parent=11 // pred_region
        _
      $region20: #{attn_block.5} parent=11 // pred_fallthru
        _
    $region12: #{attn_block.5} parent=5 // pred_fallthru
      _
    %p234 = scmp.lt.s32.totalorder %s12, 2
    // Predicated region
    $region21: #{attn_block.5} parent=5 // pred_check
      %p235 = pneg %p234
    $region22: #{attn_block.5} parent=5 // pred_check_branch
      %237 = sbr.rel (%p235) target = $region24
    $region23: #{attn_block.5} parent=5 // pred_region
      // Predicated region
      $region25: #{attn_block.5} parent=23 // pred_check
        %p238 = pneg %p53
      $region26: #{attn_block.5} parent=23 // pred_check_branch
        %240 = sbr.rel (%p238) target = $region28
      $region27: #{attn_block.5} parent=23 // pred_region
        %s241 = smul.u32 2, %s20
        %p242 = scmp.lt.s32.totalorder %s19, 1
        %s243 = scalar_select %p242, %s19, 1
        %p244 = scmp.lt.s32.totalorder %s241, 1
        %s245 = scalar_select %p244, %s241, 1
        %s246 = smul.addr %s243, 32
        %s247 = sadd.s32 %s245, %s246
        %s248 = smul.addr %s247, 8
        %s249 = scalar_lea.vmem %s0, %s248
        %s250 = smul.u32 2, %s20
      $region28: #{attn_block.5} parent=23 // pred_fallthru
        _
      // Predicated region
      $region29: #{attn_block.5} parent=23 // pred_check
        %p251 = pneg %p81
      $region30: #{attn_block.5} parent=23 // pred_check_branch
        %253 = sbr.rel (%p251) target = $region32
      $region31: #{attn_block.5} parent=23 // pred_region
        %s254 = smul.u32 32, %s20
        %p255 = scmp.lt.s32.totalorder %s19, 1
        %s256 = scalar_select %p255, %s19, 1
        %p257 = scmp.lt.s32.totalorder %s254, 31
        %s258 = scalar_select %p257, %s254, 31
        %s259 = smul.addr %s256, 32
        %s260 = sadd.s32 %s258, %s259
        %s261 = smul.addr %s260, 4
        %s262 = scalar_lea.vmem %s1, %s261
        %s263 = smul.u32 32, %s20
      $region32: #{attn_block.5} parent=23 // pred_fallthru
        _
      // Predicated region
      $region33: #{attn_block.5} parent=23 // pred_check
        %p264 = pneg %p109
      $region34: #{attn_block.5} parent=23 // pred_check_branch
        %266 = sbr.rel (%p264) target = $region36
      $region35: #{attn_block.5} parent=23 // pred_region
        %p267 = scmp.lt.s32.totalorder %s19, 1
        %s268 = scalar_select %p267, %s19, 1
        %p269 = scmp.lt.s32.totalorder %s21, 0
        %s270 = scalar_select %p269, %s21, 0
        %s271 = smul.addr %s270, 32
        %s272 = smul.addr %s268, 32
        %s273 = sadd.s32 %s271, %s272
        %s274 = smul.addr %s273, 4
        %s275 = scalar_lea.vmem %s2, %s274
      $region36: #{attn_block.5} parent=23 // pred_fallthru
        _
      // Predicated region
      $region37: #{attn_block.5} parent=23 // pred_check
        %p276 = pneg %p137
      $region38: #{attn_block.5} parent=23 // pred_check_branch
        %278 = sbr.rel (%p276) target = $region40
      $region39: #{attn_block.5} parent=23 // pred_region
        %p279 = scmp.lt.s32.totalorder %s19, 1
        %s280 = scalar_select %p279, %s19, 1
        %p281 = scmp.lt.s32.totalorder %s21, 0
        %s282 = scalar_select %p281, %s21, 0
        %s283 = smul.addr %s282, 32
        %s284 = smul.addr %s280, 32
        %s285 = sadd.s32 %s283, %s284
        %s286 = smul.addr %s285, 4
        %s287 = scalar_lea.vmem %s3, %s286
      $region40: #{attn_block.5} parent=23 // pred_fallthru
        _
    $region24: #{attn_block.5} parent=5 // pred_fallthru
      _
    %p288 = scmp.le.s32.totalorder 1, %s12
    %p289 = scmp.lt.s32.totalorder %s12, 3
    %p290 = pnand %p288, %p289
    %p291 = pneg %p290
    // Predicated region
    $region41: #{attn_block.5} parent=5 // pred_check
      _
    $region42: #{attn_block.5} parent=5 // pred_check_branch
      %293 = sbr.rel (%p290) target = $region44
    $region43: #{attn_block.5} parent=5 // pred_region
      %s294 = ssub.s32 %s12, 1
      %s295 = smul.u32 2, %s23
      %p296 = scmp.lt.s32.totalorder %s22, 1
      %s297 = scalar_select %p296, %s22, 1
      %p298 = scmp.lt.s32.totalorder %s295, 1
      %s299 = scalar_select %p298, %s295, 1
      %s300 = smul.addr %s297, 32
      %s301 = sadd.s32 %s299, %s300
      %s302 = smul.addr %s301, 8
      %s303 = scalar_lea.vmem %s0, %s302
      %p304 = pneg %p59
      %p305 = pneg %p56
      %s306 = smul.u32 32, %s23
      %p307 = scmp.lt.s32.totalorder %s22, 1
      %s308 = scalar_select %p307, %s22, 1
      %p309 = scmp.lt.s32.totalorder %s306, 31
      %s310 = scalar_select %p309, %s306, 31
      %s311 = smul.addr %s308, 32
      %s312 = sadd.s32 %s310, %s311
      %s313 = smul.addr %s312, 4
      %s314 = scalar_lea.vmem %s1, %s313
      %p315 = pneg %p87
      %p316 = pneg %p84
      %p317 = scmp.lt.s32.totalorder %s22, 1
      %s318 = scalar_select %p317, %s22, 1
      %p319 = scmp.lt.s32.totalorder %s24, 0
      %s320 = scalar_select %p319, %s24, 0
      %s321 = smul.addr %s320, 32
      %s322 = smul.addr %s318, 32
      %s323 = sadd.s32 %s321, %s322
      %s324 = smul.addr %s323, 4
      %s325 = scalar_lea.vmem %s2, %s324
      %p326 = pneg %p115
      %p327 = pneg %p112
      %p328 = scmp.lt.s32.totalorder %s22, 1
      %s329 = scalar_select %p328, %s22, 1
      %p330 = scmp.lt.s32.totalorder %s24, 0
      %s331 = scalar_select %p330, %s24, 0
      %s332 = smul.addr %s331, 32
      %s333 = smul.addr %s329, 32
      %s334 = sadd.s32 %s332, %s333
      %s335 = smul.addr %s334, 4
      %s336 = scalar_lea.vmem %s3, %s335
      %p337 = pneg %p143
      %p338 = pneg %p140
      %p339 = pneg %p164
      %p340 = pneg %p161
      %p341 = pneg %p185
      %p342 = pneg %p182
      %p343 = pneg %p213
      %p344 = pneg %p210
      %s345 = smul.u32 2, %s23
      %p346 = scmp.lt.s32.totalorder %s22, 1
      %s347 = scalar_select %p346, %s22, 1
      %p348 = scmp.lt.s32.totalorder %s345, 1
      %s349 = scalar_select %p348, %s345, 1
      %s350 = smul.addr %s347, 32
      %s351 = sadd.s32 %s349, %s350
      %s352 = smul.addr %s351, 8
      %s353 = scalar_lea.vmem %s6, %s352
      %s354 = smul.u32 2, %s23
      %p355 = scmp.lt.s32.totalorder %s22, 1
      %s356 = scalar_select %p355, %s22, 1
      %p357 = scmp.lt.s32.totalorder %s354, 1
      %s358 = scalar_select %p357, %s354, 1
      %s359 = smul.addr %s356, 32
      %s360 = sadd.s32 %s358, %s359
      %s361 = smul.addr %s360, 8
      %s362 = scalar_lea.vmem %s0, %s361
      %s363 = smul.u32 2, %s23
      %s364 = smul.u32 32, %s23
      %p365 = scmp.lt.s32.totalorder %s22, 1
      %s366 = scalar_select %p365, %s22, 1
      %p367 = scmp.lt.s32.totalorder %s364, 31
      %s368 = scalar_select %p367, %s364, 31
      %s369 = smul.addr %s366, 32
      %s370 = sadd.s32 %s368, %s369
      %s371 = smul.addr %s370, 4
      %s372 = scalar_lea.vmem %s1, %s371
      %s373 = smul.u32 32, %s23
      %p374 = scmp.lt.s32.totalorder %s22, 1
      %s375 = scalar_select %p374, %s22, 1
      %p376 = scmp.lt.s32.totalorder %s24, 0
      %s377 = scalar_select %p376, %s24, 0
      %s378 = smul.addr %s377, 32
      %s379 = smul.addr %s375, 32
      %s380 = sadd.s32 %s378, %s379
      %s381 = smul.addr %s380, 4
      %s382 = scalar_lea.vmem %s2, %s381
      %p383 = scmp.lt.s32.totalorder %s22, 1
      %s384 = scalar_select %p383, %s22, 1
      %p385 = scmp.lt.s32.totalorder %s24, 0
      %s386 = scalar_select %p385, %s24, 0
      %s387 = smul.addr %s386, 32
      %s388 = smul.addr %s384, 32
      %s389 = sadd.s32 %s387, %s388
      %s390 = smul.addr %s389, 4
      %s391 = scalar_lea.vmem %s3, %s390
      %s392 = smul.u32 2, %s23
      %p393 = scmp.lt.s32.totalorder %s22, 1
      %s394 = scalar_select %p393, %s22, 1
      %p395 = scmp.lt.s32.totalorder %s392, 1
      %s396 = scalar_select %p395, %s392, 1
      %s397 = smul.addr %s394, 32
      %s398 = sadd.s32 %s396, %s397
      %s399 = smul.addr %s398, 8
      %s400 = scalar_lea.vmem %s6, %s399
      %s401 = smul.u32 2, %s23
      %p402 = scmp.eq.s32.totalorder %s24, 0
      // Predicated region
      $region45: #{attn_block.5} parent=43 // pred_check
        %p403 = pneg %p402
      $region46: #{attn_block.5} parent=43 // pred_check_branch
        %405 = sbr.rel (%p403) target = $region48
      $region47: #{attn_block.5} parent=43 // pred_region
        %vm406 = vcmask 7168
        %407 = vst.msk [vmem:[#allocation2] sm:$0xff] %vm406, -inf
        %408 = vst.msk [vmem:[#allocation2 + $0x8] sm:$0xff] %vm406, -inf
        %409 = vst.msk [vmem:[#allocation2 + $0x10] sm:$0xff] %vm406, -inf
        %410 = vst.msk [vmem:[#allocation2 + $0x18] sm:$0xff] %vm406, -inf
        %411 = vst.msk [vmem:[#allocation2 + $0x20] sm:$0xff] %vm406, -inf
        %412 = vst.msk [vmem:[#allocation2 + $0x28] sm:$0xff] %vm406, -inf
        %413 = vst.msk [vmem:[#allocation2 + $0x30] sm:$0xff] %vm406, -inf
        %414 = vst.msk [vmem:[#allocation2 + $0x38] sm:$0xff] %vm406, -inf
        %415 = vst.msk [vmem:[#allocation2 + $0x40] sm:$0xff] %vm406, -inf
        %416 = vst.msk [vmem:[#allocation2 + $0x48] sm:$0xff] %vm406, -inf
        %417 = vst.msk [vmem:[#allocation2 + $0x50] sm:$0xff] %vm406, -inf
        %418 = vst.msk [vmem:[#allocation2 + $0x58] sm:$0xff] %vm406, -inf
        %419 = vst.msk [vmem:[#allocation2 + $0x60] sm:$0xff] %vm406, -inf
        %420 = vst.msk [vmem:[#allocation2 + $0x68] sm:$0xff] %vm406, -inf
        %421 = vst.msk [vmem:[#allocation2 + $0x70] sm:$0xff] %vm406, -inf
        %422 = vst.msk [vmem:[#allocation2 + $0x78] sm:$0xff] %vm406, -inf
        %423 = vst.msk [vmem:[#allocation2 + $0x80] sm:$0xff] %vm406, -inf
        %424 = vst.msk [vmem:[#allocation2 + $0x88] sm:$0xff] %vm406, -inf
        %425 = vst.msk [vmem:[#allocation2 + $0x90] sm:$0xff] %vm406, -inf
        %426 = vst.msk [vmem:[#allocation2 + $0x98] sm:$0xff] %vm406, -inf
        %427 = vst.msk [vmem:[#allocation2 + $0xa0] sm:$0xff] %vm406, -inf
        %428 = vst.msk [vmem:[#allocation2 + $0xa8] sm:$0xff] %vm406, -inf
        %429 = vst.msk [vmem:[#allocation2 + $0xb0] sm:$0xff] %vm406, -inf
        %430 = vst.msk [vmem:[#allocation2 + $0xb8] sm:$0xff] %vm406, -inf
        %431 = vst.msk [vmem:[#allocation2 + $0xc0] sm:$0xff] %vm406, -inf
        %432 = vst.msk [vmem:[#allocation2 + $0xc8] sm:$0xff] %vm406, -inf
        %433 = vst.msk [vmem:[#allocation2 + $0xd0] sm:$0xff] %vm406, -inf
        %434 = vst.msk [vmem:[#allocation2 + $0xd8] sm:$0xff] %vm406, -inf
        %435 = vst.msk [vmem:[#allocation2 + $0xe0] sm:$0xff] %vm406, -inf
        %436 = vst.msk [vmem:[#allocation2 + $0xe8] sm:$0xff] %vm406, -inf
        %437 = vst.msk [vmem:[#allocation2 + $0xf0] sm:$0xff] %vm406, -inf
        %438 = vst.msk [vmem:[#allocation2 + $0xf8] sm:$0xff] %vm406, -inf
        %439 = vst.msk [vmem:[#allocation3] sm:$0xff] %vm406, 0.0
        %440 = vst.msk [vmem:[#allocation3 + $0x8] sm:$0xff] %vm406, 0.0
        %441 = vst.msk [vmem:[#allocation3 + $0x10] sm:$0xff] %vm406, 0.0
        %442 = vst.msk [vmem:[#allocation3 + $0x18] sm:$0xff] %vm406, 0.0
        %443 = vst.msk [vmem:[#allocation3 + $0x20] sm:$0xff] %vm406, 0.0
        %444 = vst.msk [vmem:[#allocation3 + $0x28] sm:$0xff] %vm406, 0.0
        %445 = vst.msk [vmem:[#allocation3 + $0x30] sm:$0xff] %vm406, 0.0
        %446 = vst.msk [vmem:[#allocation3 + $0x38] sm:$0xff] %vm406, 0.0
        %447 = vst.msk [vmem:[#allocation3 + $0x40] sm:$0xff] %vm406, 0.0
        %448 = vst.msk [vmem:[#allocation3 + $0x48] sm:$0xff] %vm406, 0.0
        %449 = vst.msk [vmem:[#allocation3 + $0x50] sm:$0xff] %vm406, 0.0
        %450 = vst.msk [vmem:[#allocation3 + $0x58] sm:$0xff] %vm406, 0.0
        %451 = vst.msk [vmem:[#allocation3 + $0x60] sm:$0xff] %vm406, 0.0
        %452 = vst.msk [vmem:[#allocation3 + $0x68] sm:$0xff] %vm406, 0.0
        %453 = vst.msk [vmem:[#allocation3 + $0x70] sm:$0xff] %vm406, 0.0
        %454 = vst.msk [vmem:[#allocation3 + $0x78] sm:$0xff] %vm406, 0.0
        %455 = vst.msk [vmem:[#allocation3 + $0x80] sm:$0xff] %vm406, 0.0
        %456 = vst.msk [vmem:[#allocation3 + $0x88] sm:$0xff] %vm406, 0.0
        %457 = vst.msk [vmem:[#allocation3 + $0x90] sm:$0xff] %vm406, 0.0
        %458 = vst.msk [vmem:[#allocation3 + $0x98] sm:$0xff] %vm406, 0.0
        %459 = vst.msk [vmem:[#allocation3 + $0xa0] sm:$0xff] %vm406, 0.0
        %460 = vst.msk [vmem:[#allocation3 + $0xa8] sm:$0xff] %vm406, 0.0
        %461 = vst.msk [vmem:[#allocation3 + $0xb0] sm:$0xff] %vm406, 0.0
        %462 = vst.msk [vmem:[#allocation3 + $0xb8] sm:$0xff] %vm406, 0.0
        %463 = vst.msk [vmem:[#allocation3 + $0xc0] sm:$0xff] %vm406, 0.0
        %464 = vst.msk [vmem:[#allocation3 + $0xc8] sm:$0xff] %vm406, 0.0
        %465 = vst.msk [vmem:[#allocation3 + $0xd0] sm:$0xff] %vm406, 0.0
        %466 = vst.msk [vmem:[#allocation3 + $0xd8] sm:$0xff] %vm406, 0.0
        %467 = vst.msk [vmem:[#allocation3 + $0xe0] sm:$0xff] %vm406, 0.0
        %468 = vst.msk [vmem:[#allocation3 + $0xe8] sm:$0xff] %vm406, 0.0
        %469 = vst.msk [vmem:[#allocation3 + $0xf0] sm:$0xff] %vm406, 0.0
        %470 = vst.msk [vmem:[#allocation3 + $0xf8] sm:$0xff] %vm406, 0.0
        %471 = vst [vmem:[#allocation4] sm:$0xff] 0.0
        %472 = vst [vmem:[#allocation4 + $0x8] sm:$0xff] 0.0
        %473 = vst [vmem:[#allocation4 + $0x10] sm:$0xff] 0.0
        %474 = vst [vmem:[#allocation4 + $0x18] sm:$0xff] 0.0
        %475 = vst [vmem:[#allocation4 + $0x20] sm:$0xff] 0.0
        %476 = vst [vmem:[#allocation4 + $0x28] sm:$0xff] 0.0
        %477 = vst [vmem:[#allocation4 + $0x30] sm:$0xff] 0.0
        %478 = vst [vmem:[#allocation4 + $0x38] sm:$0xff] 0.0
        %479 = vst [vmem:[#allocation4 + $0x40] sm:$0xff] 0.0
        %480 = vst [vmem:[#allocation4 + $0x48] sm:$0xff] 0.0
        %481 = vst [vmem:[#allocation4 + $0x50] sm:$0xff] 0.0
        %482 = vst [vmem:[#allocation4 + $0x58] sm:$0xff] 0.0
        %483 = vst [vmem:[#allocation4 + $0x60] sm:$0xff] 0.0
        %484 = vst [vmem:[#allocation4 + $0x68] sm:$0xff] 0.0
        %485 = vst [vmem:[#allocation4 + $0x70] sm:$0xff] 0.0
        %486 = vst [vmem:[#allocation4 + $0x78] sm:$0xff] 0.0
        %487 = vst [vmem:[#allocation4 + $0x80] sm:$0xff] 0.0
        %488 = vst [vmem:[#allocation4 + $0x88] sm:$0xff] 0.0
        %489 = vst [vmem:[#allocation4 + $0x90] sm:$0xff] 0.0
        %490 = vst [vmem:[#allocation4 + $0x98] sm:$0xff] 0.0
        %491 = vst [vmem:[#allocation4 + $0xa0] sm:$0xff] 0.0
        %492 = vst [vmem:[#allocation4 + $0xa8] sm:$0xff] 0.0
        %493 = vst [vmem:[#allocation4 + $0xb0] sm:$0xff] 0.0
        %494 = vst [vmem:[#allocation4 + $0xb8] sm:$0xff] 0.0
        %495 = vst [vmem:[#allocation4 + $0xc0] sm:$0xff] 0.0
        %496 = vst [vmem:[#allocation4 + $0xc8] sm:$0xff] 0.0
        %497 = vst [vmem:[#allocation4 + $0xd0] sm:$0xff] 0.0
        %498 = vst [vmem:[#allocation4 + $0xd8] sm:$0xff] 0.0
        %499 = vst [vmem:[#allocation4 + $0xe0] sm:$0xff] 0.0
        %500 = vst [vmem:[#allocation4 + $0xe8] sm:$0xff] 0.0
        %501 = vst [vmem:[#allocation4 + $0xf0] sm:$0xff] 0.0
        %502 = vst [vmem:[#allocation4 + $0xf8] sm:$0xff] 0.0
      $region48: #{attn_block.5} parent=43 // pred_fallthru
        _
      %v503 = vld [vmem:[%s372] sm:$0xf]
      %v504 = vld [vmem:[%s372 + $0x4] sm:$0xf]
      %v505 = vld [vmem:[%s372 + $0x8] sm:$0xf]
      %v506 = vld [vmem:[%s372 + $0xc] sm:$0xf]
      %v507 = vld [vmem:[%s372 + $0x10] sm:$0xf]
      %v508 = vld [vmem:[%s372 + $0x14] sm:$0xf]
      %v509 = vld [vmem:[%s372 + $0x18] sm:$0xf]
      %v510 = vld [vmem:[%s372 + $0x1c] sm:$0xf]
      %v511 = vld [vmem:[%s372 + $0x20] sm:$0xf]
      %v512 = vld [vmem:[%s372 + $0x24] sm:$0xf]
      %v513 = vld [vmem:[%s372 + $0x28] sm:$0xf]
      %v514 = vld [vmem:[%s372 + $0x2c] sm:$0xf]
      %v515 = vld [vmem:[%s372 + $0x30] sm:$0xf]
      %v516 = vld [vmem:[%s372 + $0x34] sm:$0xf]
      %v517 = vld [vmem:[%s372 + $0x38] sm:$0xf]
      %v518 = vld [vmem:[%s372 + $0x3c] sm:$0xf]
      %v519 = vld [vmem:[%s372 + $0x40] sm:$0xf]
      %v520 = vld [vmem:[%s372 + $0x44] sm:$0xf]
      %v521 = vld [vmem:[%s372 + $0x48] sm:$0xf]
      %v522 = vld [vmem:[%s372 + $0x4c] sm:$0xf]
      %v523 = vld [vmem:[%s372 + $0x50] sm:$0xf]
      %v524 = vld [vmem:[%s372 + $0x54] sm:$0xf]
      %v525 = vld [vmem:[%s372 + $0x58] sm:$0xf]
      %v526 = vld [vmem:[%s372 + $0x5c] sm:$0xf]
      %v527 = vld [vmem:[%s372 + $0x60] sm:$0xf]
      %v528 = vld [vmem:[%s372 + $0x64] sm:$0xf]
      %v529 = vld [vmem:[%s372 + $0x68] sm:$0xf]
      %v530 = vld [vmem:[%s372 + $0x6c] sm:$0xf]
      %v531 = vld [vmem:[%s372 + $0x70] sm:$0xf]
      %v532 = vld [vmem:[%s372 + $0x74] sm:$0xf]
      %v533 = vld [vmem:[%s372 + $0x78] sm:$0xf]
      %v534 = vld [vmem:[%s372 + $0x7c] sm:$0xf]
      %v535 = vld [vmem:[%s382] sm:$0xff]
      %v536 = vld [vmem:[%s382 + $0x8] sm:$0xff]
      %v537 = vld [vmem:[%s382 + $0x10] sm:$0xff]
      %v538 = vld [vmem:[%s382 + $0x18] sm:$0xff]
      %v539 = vld [vmem:[%s382 + $0x20] sm:$0xff]
      %v540 = vld [vmem:[%s382 + $0x28] sm:$0xff]
      %v541 = vld [vmem:[%s382 + $0x30] sm:$0xff]
      %v542 = vld [vmem:[%s382 + $0x38] sm:$0xff]
      %v543 = vld [vmem:[%s382 + $0x40] sm:$0xff]
      %v544 = vld [vmem:[%s382 + $0x48] sm:$0xff]
      %v545 = vld [vmem:[%s382 + $0x50] sm:$0xff]
      %v546 = vld [vmem:[%s382 + $0x58] sm:$0xff]
      %v547 = vld [vmem:[%s382 + $0x60] sm:$0xff]
      %v548 = vld [vmem:[%s382 + $0x68] sm:$0xff]
      %v549 = vld [vmem:[%s382 + $0x70] sm:$0xff]
      %v550 = vld [vmem:[%s382 + $0x78] sm:$0xff]
      %v551 = vld [vmem:[%s391] sm:$0xff]
      %v552 = vld [vmem:[%s391 + $0x8] sm:$0xff]
      %v553 = vld [vmem:[%s391 + $0x10] sm:$0xff]
      %v554 = vld [vmem:[%s391 + $0x18] sm:$0xff]
      %v555 = vld [vmem:[%s391 + $0x20] sm:$0xff]
      %v556 = vld [vmem:[%s391 + $0x28] sm:$0xff]
      %v557 = vld [vmem:[%s391 + $0x30] sm:$0xff]
      %v558 = vld [vmem:[%s391 + $0x38] sm:$0xff]
      %v559 = vld [vmem:[%s391 + $0x40] sm:$0xff]
      %v560 = vld [vmem:[%s391 + $0x48] sm:$0xff]
      %v561 = vld [vmem:[%s391 + $0x50] sm:$0xff]
      %v562 = vld [vmem:[%s391 + $0x58] sm:$0xff]
      %v563 = vld [vmem:[%s391 + $0x60] sm:$0xff]
      %v564 = vld [vmem:[%s391 + $0x68] sm:$0xff]
      %v565 = vld [vmem:[%s391 + $0x70] sm:$0xff]
      %v566 = vld [vmem:[%s391 + $0x78] sm:$0xff]
      %v599 = vunpack.c.l.b16 %v503
      %v600 = vunpack.c.l.b16 %v504
      %v601 = vunpack.c.l.b16 %v505
      %v602 = vunpack.c.l.b16 %v506
      %v603 = vunpack.c.l.b16 %v507
      %v604 = vunpack.c.l.b16 %v508
      %v605 = vunpack.c.l.b16 %v509
      %v606 = vunpack.c.l.b16 %v510
      %v607 = vunpack.c.l.b16 %v511
      %v608 = vunpack.c.l.b16 %v512
      %v609 = vunpack.c.l.b16 %v513
      %v610 = vunpack.c.l.b16 %v514
      %v611 = vunpack.c.l.b16 %v515
      %v612 = vunpack.c.l.b16 %v516
      %v613 = vunpack.c.l.b16 %v517
      %v614 = vunpack.c.l.b16 %v518
      %v615 = vunpack.c.l.b16 %v519
      %v616 = vunpack.c.l.b16 %v520
      %v617 = vunpack.c.l.b16 %v521
      %v618 = vunpack.c.l.b16 %v522
      %v619 = vunpack.c.l.b16 %v523
      %v620 = vunpack.c.l.b16 %v524
      %v621 = vunpack.c.l.b16 %v525
      %v622 = vunpack.c.l.b16 %v526
      %v623 = vunpack.c.l.b16 %v527
      %v624 = vunpack.c.l.b16 %v528
      %v625 = vunpack.c.l.b16 %v529
      %v626 = vunpack.c.l.b16 %v530
      %v627 = vunpack.c.l.b16 %v531
      %v628 = vunpack.c.l.b16 %v532
      %v629 = vunpack.c.l.b16 %v533
      %v630 = vunpack.c.l.b16 %v534
      %v631 = vpack.c.b16 %v600, %v599
      %v632 = vpack.c.b16 %v602, %v601
      %v633 = vpack.c.b16 %v604, %v603
      %v634 = vpack.c.b16 %v606, %v605
      %v635 = vpack.c.b16 %v608, %v607
      %v636 = vpack.c.b16 %v610, %v609
      %v637 = vpack.c.b16 %v612, %v611
      %v638 = vpack.c.b16 %v614, %v613
      %v639 = vpack.c.b16 %v616, %v615
      %v640 = vpack.c.b16 %v618, %v617
      %v641 = vpack.c.b16 %v620, %v619
      %v642 = vpack.c.b16 %v622, %v621
      %v643 = vpack.c.b16 %v624, %v623
      %v644 = vpack.c.b16 %v626, %v625
      %v645 = vpack.c.b16 %v628, %v627
      %v646 = vpack.c.b16 %v630, %v629
      %v679 = vunpack.c.l.b16 %v535
      %v680 = vunpack.c.h.b16 %v535
      %v681 = vunpack.c.l.b16 %v536
      %v682 = vunpack.c.h.b16 %v536
      %v683 = vunpack.c.l.b16 %v537
      %v684 = vunpack.c.h.b16 %v537
      %v685 = vunpack.c.l.b16 %v538
      %v686 = vunpack.c.h.b16 %v538
      %v687 = vunpack.c.l.b16 %v539
      %v688 = vunpack.c.h.b16 %v539
      %v689 = vunpack.c.l.b16 %v540
      %v690 = vunpack.c.h.b16 %v540
      %v691 = vunpack.c.l.b16 %v541
      %v692 = vunpack.c.h.b16 %v541
      %v693 = vunpack.c.l.b16 %v542
      %v694 = vunpack.c.h.b16 %v542
      %v695 = vunpack.c.l.b16 %v543
      %v696 = vunpack.c.h.b16 %v543
      %v697 = vunpack.c.l.b16 %v544
      %v698 = vunpack.c.h.b16 %v544
      %v699 = vunpack.c.l.b16 %v545
      %v700 = vunpack.c.h.b16 %v545
      %v701 = vunpack.c.l.b16 %v546
      %v702 = vunpack.c.h.b16 %v546
      %v703 = vunpack.c.l.b16 %v547
      %v704 = vunpack.c.h.b16 %v547
      %v705 = vunpack.c.l.b16 %v548
      %v706 = vunpack.c.h.b16 %v548
      %v707 = vunpack.c.l.b16 %v549
      %v708 = vunpack.c.h.b16 %v549
      %v709 = vunpack.c.l.b16 %v550
      %v710 = vunpack.c.h.b16 %v550
      %v711 = vpack.c.b16 %v681, %v679
      %v712 = vpack.c.b16 %v682, %v680
      %v713 = vpack.c.b16 %v685, %v683
      %v714 = vpack.c.b16 %v686, %v684
      %v715 = vpack.c.b16 %v689, %v687
      %v716 = vpack.c.b16 %v690, %v688
      %v717 = vpack.c.b16 %v693, %v691
      %v718 = vpack.c.b16 %v694, %v692
      %v719 = vpack.c.b16 %v697, %v695
      %v720 = vpack.c.b16 %v698, %v696
      %v721 = vpack.c.b16 %v701, %v699
      %v722 = vpack.c.b16 %v702, %v700
      %v723 = vpack.c.b16 %v705, %v703
      %v724 = vpack.c.b16 %v706, %v704
      %v725 = vpack.c.b16 %v709, %v707
      %v726 = vpack.c.b16 %v710, %v708
      %743 = vmatpush.bf16.msra.mxu0 %v725
      %744 = vmatpush.bf16.msra.mxu0 %v723
      %745 = vmatpush.bf16.msra.mxu0 %v721
      %746 = vmatpush.bf16.msra.mxu0 %v719
      %747 = vmatpush.bf16.msra.mxu0 %v717
      %748 = vmatpush.bf16.msra.mxu0 %v715
      %749 = vmatpush.bf16.msra.mxu0 %v713
      %750 = vmatpush.bf16.msra.mxu0 %v711
      %751 = vmatmul.bf16.gmra.mxu0 %v631
      %v752 = vpop.f32.mrf.mxu0
      %v753 = vadd.f32 0.0, %v752
      %v754 = vpop.f32.mrf.mxu0
      %v755 = vadd.f32 0.0, %v754
      %756 = vmatmul.bf16.gmra.mxu0 %v632
      %v757 = vpop.f32.mrf.mxu0
      %v758 = vadd.f32 0.0, %v757
      %v759 = vpop.f32.mrf.mxu0
      %v760 = vadd.f32 0.0, %v759
      %761 = vmatmul.bf16.gmra.mxu0 %v633
      %v762 = vpop.f32.mrf.mxu0
      %v763 = vadd.f32 0.0, %v762
      %v764 = vpop.f32.mrf.mxu0
      %v765 = vadd.f32 0.0, %v764
      %766 = vmatmul.bf16.gmra.mxu0 %v634
      %v767 = vpop.f32.mrf.mxu0
      %v768 = vadd.f32 0.0, %v767
      %v769 = vpop.f32.mrf.mxu0
      %v770 = vadd.f32 0.0, %v769
      %771 = vmatmul.bf16.gmra.mxu0 %v635
      %v772 = vpop.f32.mrf.mxu0
      %v773 = vadd.f32 0.0, %v772
      %v774 = vpop.f32.mrf.mxu0
      %v775 = vadd.f32 0.0, %v774
      %776 = vmatmul.bf16.gmra.mxu0 %v636
      %v777 = vpop.f32.mrf.mxu0
      %v778 = vadd.f32 0.0, %v777
      %v779 = vpop.f32.mrf.mxu0
      %v780 = vadd.f32 0.0, %v779
      %781 = vmatmul.bf16.gmra.mxu0 %v637
      %v782 = vpop.f32.mrf.mxu0
      %v783 = vadd.f32 0.0, %v782
      %v784 = vpop.f32.mrf.mxu0
      %v785 = vadd.f32 0.0, %v784
      %786 = vmatmul.bf16.gmra.mxu0 %v638
      %v787 = vpop.f32.mrf.mxu0
      %v788 = vadd.f32 0.0, %v787
      %v789 = vpop.f32.mrf.mxu0
      %v790 = vadd.f32 0.0, %v789
      %791 = vmatmul.bf16.gmra.mxu0 %v639
      %v792 = vpop.f32.mrf.mxu0
      %v793 = vadd.f32 0.0, %v792
      %v794 = vpop.f32.mrf.mxu0
      %v795 = vadd.f32 0.0, %v794
      %796 = vmatmul.bf16.gmra.mxu0 %v640
      %v797 = vpop.f32.mrf.mxu0
      %v798 = vadd.f32 0.0, %v797
      %v799 = vpop.f32.mrf.mxu0
      %v800 = vadd.f32 0.0, %v799
      %801 = vmatmul.bf16.gmra.mxu0 %v641
      %v802 = vpop.f32.mrf.mxu0
      %v803 = vadd.f32 0.0, %v802
      %v804 = vpop.f32.mrf.mxu0
      %v805 = vadd.f32 0.0, %v804
      %806 = vmatmul.bf16.gmra.mxu0 %v642
      %v807 = vpop.f32.mrf.mxu0
      %v808 = vadd.f32 0.0, %v807
      %v809 = vpop.f32.mrf.mxu0
      %v810 = vadd.f32 0.0, %v809
      %811 = vmatmul.bf16.gmra.mxu0 %v643
      %v812 = vpop.f32.mrf.mxu0
      %v813 = vadd.f32 0.0, %v812
      %v814 = vpop.f32.mrf.mxu0
      %v815 = vadd.f32 0.0, %v814
      %816 = vmatmul.bf16.gmra.mxu0 %v644
      %v817 = vpop.f32.mrf.mxu0
      %v818 = vadd.f32 0.0, %v817
      %v819 = vpop.f32.mrf.mxu0
      %v820 = vadd.f32 0.0, %v819
      %821 = vmatmul.bf16.gmra.mxu0 %v645
      %v822 = vpop.f32.mrf.mxu0
      %v823 = vadd.f32 0.0, %v822
      %v824 = vpop.f32.mrf.mxu0
      %v825 = vadd.f32 0.0, %v824
      %826 = vmatmul.bf16.gmra.mxu0 %v646
      %v827 = vpop.f32.mrf.mxu0
      %v828 = vadd.f32 0.0, %v827
      %v829 = vpop.f32.mrf.mxu0
      %v830 = vadd.f32 0.0, %v829
      %831 = vdwg.mxu0
      %832 = vmatpush.bf16.msra.mxu0 %v726
      %833 = vmatpush.bf16.msra.mxu0 %v724
      %834 = vmatpush.bf16.msra.mxu0 %v722
      %835 = vmatpush.bf16.msra.mxu0 %v720
      %836 = vmatpush.bf16.msra.mxu0 %v718
      %837 = vmatpush.bf16.msra.mxu0 %v716
      %838 = vmatpush.bf16.msra.mxu0 %v714
      %839 = vmatpush.bf16.msra.mxu0 %v712
      %840 = vmatmul.bf16.gmra.mxu0 %v631
      %v841 = vpop.f32.mrf.mxu0
      %v842 = vadd.f32 0.0, %v841
      %v843 = vpop.f32.mrf.mxu0
      %v844 = vadd.f32 0.0, %v843
      %845 = vmatmul.bf16.gmra.mxu0 %v632
      %v846 = vpop.f32.mrf.mxu0
      %v847 = vadd.f32 0.0, %v846
      %v848 = vpop.f32.mrf.mxu0
      %v849 = vadd.f32 0.0, %v848
      %850 = vmatmul.bf16.gmra.mxu0 %v633
      %v851 = vpop.f32.mrf.mxu0
      %v852 = vadd.f32 0.0, %v851
      %v853 = vpop.f32.mrf.mxu0
      %v854 = vadd.f32 0.0, %v853
      %855 = vmatmul.bf16.gmra.mxu0 %v634
      %v856 = vpop.f32.mrf.mxu0
      %v857 = vadd.f32 0.0, %v856
      %v858 = vpop.f32.mrf.mxu0
      %v859 = vadd.f32 0.0, %v858
      %860 = vmatmul.bf16.gmra.mxu0 %v635
      %v861 = vpop.f32.mrf.mxu0
      %v862 = vadd.f32 0.0, %v861
      %v863 = vpop.f32.mrf.mxu0
      %v864 = vadd.f32 0.0, %v863
      %865 = vmatmul.bf16.gmra.mxu0 %v636
      %v866 = vpop.f32.mrf.mxu0
      %v867 = vadd.f32 0.0, %v866
      %v868 = vpop.f32.mrf.mxu0
      %v869 = vadd.f32 0.0, %v868
      %870 = vmatmul.bf16.gmra.mxu0 %v637
      %v871 = vpop.f32.mrf.mxu0
      %v872 = vadd.f32 0.0, %v871
      %v873 = vpop.f32.mrf.mxu0
      %v874 = vadd.f32 0.0, %v873
      %875 = vmatmul.bf16.gmra.mxu0 %v638
      %v876 = vpop.f32.mrf.mxu0
      %v877 = vadd.f32 0.0, %v876
      %v878 = vpop.f32.mrf.mxu0
      %v879 = vadd.f32 0.0, %v878
      %880 = vmatmul.bf16.gmra.mxu0 %v639
      %v881 = vpop.f32.mrf.mxu0
      %v882 = vadd.f32 0.0, %v881
      %v883 = vpop.f32.mrf.mxu0
      %v884 = vadd.f32 0.0, %v883
      %885 = vmatmul.bf16.gmra.mxu0 %v640
      %v886 = vpop.f32.mrf.mxu0
      %v887 = vadd.f32 0.0, %v886
      %v888 = vpop.f32.mrf.mxu0
      %v889 = vadd.f32 0.0, %v888
      %890 = vmatmul.bf16.gmra.mxu0 %v641
      %v891 = vpop.f32.mrf.mxu0
      %v892 = vadd.f32 0.0, %v891
      %v893 = vpop.f32.mrf.mxu0
      %v894 = vadd.f32 0.0, %v893
      %895 = vmatmul.bf16.gmra.mxu0 %v642
      %v896 = vpop.f32.mrf.mxu0
      %v897 = vadd.f32 0.0, %v896
      %v898 = vpop.f32.mrf.mxu0
      %v899 = vadd.f32 0.0, %v898
      %900 = vmatmul.bf16.gmra.mxu0 %v643
      %v901 = vpop.f32.mrf.mxu0
      %v902 = vadd.f32 0.0, %v901
      %v903 = vpop.f32.mrf.mxu0
      %v904 = vadd.f32 0.0, %v903
      %905 = vmatmul.bf16.gmra.mxu0 %v644
      %v906 = vpop.f32.mrf.mxu0
      %v907 = vadd.f32 0.0, %v906
      %v908 = vpop.f32.mrf.mxu0
      %v909 = vadd.f32 0.0, %v908
      %910 = vmatmul.bf16.gmra.mxu0 %v645
      %v911 = vpop.f32.mrf.mxu0
      %v912 = vadd.f32 0.0, %v911
      %v913 = vpop.f32.mrf.mxu0
      %v914 = vadd.f32 0.0, %v913
      %915 = vmatmul.bf16.gmra.mxu0 %v646
      %v916 = vpop.f32.mrf.mxu0
      %v917 = vadd.f32 0.0, %v916
      %v918 = vpop.f32.mrf.mxu0
      %v919 = vadd.f32 0.0, %v918
      %920 = vdwg.mxu0
      %v921 = vld [vmem:[#allocation2] sm:$0xff]
      %v922 = vld [vmem:[#allocation2 + $0x8] sm:$0xff]
      %v923 = vld [vmem:[#allocation2 + $0x10] sm:$0xff]
      %v924 = vld [vmem:[#allocation2 + $0x18] sm:$0xff]
      %v925 = vld [vmem:[#allocation2 + $0x20] sm:$0xff]
      %v926 = vld [vmem:[#allocation2 + $0x28] sm:$0xff]
      %v927 = vld [vmem:[#allocation2 + $0x30] sm:$0xff]
      %v928 = vld [vmem:[#allocation2 + $0x38] sm:$0xff]
      %v929 = vld [vmem:[#allocation2 + $0x40] sm:$0xff]
      %v930 = vld [vmem:[#allocation2 + $0x48] sm:$0xff]
      %v931 = vld [vmem:[#allocation2 + $0x50] sm:$0xff]
      %v932 = vld [vmem:[#allocation2 + $0x58] sm:$0xff]
      %v933 = vld [vmem:[#allocation2 + $0x60] sm:$0xff]
      %v934 = vld [vmem:[#allocation2 + $0x68] sm:$0xff]
      %v935 = vld [vmem:[#allocation2 + $0x70] sm:$0xff]
      %v936 = vld [vmem:[#allocation2 + $0x78] sm:$0xff]
      %v937 = vld [vmem:[#allocation2 + $0x80] sm:$0xff]
      %v938 = vld [vmem:[#allocation2 + $0x88] sm:$0xff]
      %v939 = vld [vmem:[#allocation2 + $0x90] sm:$0xff]
      %v940 = vld [vmem:[#allocation2 + $0x98] sm:$0xff]
      %v941 = vld [vmem:[#allocation2 + $0xa0] sm:$0xff]
      %v942 = vld [vmem:[#allocation2 + $0xa8] sm:$0xff]
      %v943 = vld [vmem:[#allocation2 + $0xb0] sm:$0xff]
      %v944 = vld [vmem:[#allocation2 + $0xb8] sm:$0xff]
      %v945 = vld [vmem:[#allocation2 + $0xc0] sm:$0xff]
      %v946 = vld [vmem:[#allocation2 + $0xc8] sm:$0xff]
      %v947 = vld [vmem:[#allocation2 + $0xd0] sm:$0xff]
      %v948 = vld [vmem:[#allocation2 + $0xd8] sm:$0xff]
      %v949 = vld [vmem:[#allocation2 + $0xe0] sm:$0xff]
      %v950 = vld [vmem:[#allocation2 + $0xe8] sm:$0xff]
      %v951 = vld [vmem:[#allocation2 + $0xf0] sm:$0xff]
      %v952 = vld [vmem:[#allocation2 + $0xf8] sm:$0xff]
      %v953 = vmax.f32 %v753, %v842
      %954 = vmax.xlane.f32.xlu0 %v953
      %v955 = vpop.xlane.xlu0 %954
      %v956 = vmax.f32 %v755, %v844
      %957 = vmax.xlane.f32.xlu0 %v956
      %v958 = vpop.xlane.xlu0 %957
      %v959 = vmax.f32 %v758, %v847
      %960 = vmax.xlane.f32.xlu0 %v959
      %v961 = vpop.xlane.xlu0 %960
      %v962 = vmax.f32 %v760, %v849
      %963 = vmax.xlane.f32.xlu0 %v962
      %v964 = vpop.xlane.xlu0 %963
      %v965 = vmax.f32 %v763, %v852
      %966 = vmax.xlane.f32.xlu0 %v965
      %v967 = vpop.xlane.xlu0 %966
      %v968 = vmax.f32 %v765, %v854
      %969 = vmax.xlane.f32.xlu0 %v968
      %v970 = vpop.xlane.xlu0 %969
      %v971 = vmax.f32 %v768, %v857
      %972 = vmax.xlane.f32.xlu0 %v971
      %v973 = vpop.xlane.xlu0 %972
      %v974 = vmax.f32 %v770, %v859
      %975 = vmax.xlane.f32.xlu0 %v974
      %v976 = vpop.xlane.xlu0 %975
      %v977 = vmax.f32 %v773, %v862
      %978 = vmax.xlane.f32.xlu0 %v977
      %v979 = vpop.xlane.xlu0 %978
      %v980 = vmax.f32 %v775, %v864
      %981 = vmax.xlane.f32.xlu0 %v980
      %v982 = vpop.xlane.xlu0 %981
      %v983 = vmax.f32 %v778, %v867
      %984 = vmax.xlane.f32.xlu0 %v983
      %v985 = vpop.xlane.xlu0 %984
      %v986 = vmax.f32 %v780, %v869
      %987 = vmax.xlane.f32.xlu0 %v986
      %v988 = vpop.xlane.xlu0 %987
      %v989 = vmax.f32 %v783, %v872
      %990 = vmax.xlane.f32.xlu0 %v989
      %v991 = vpop.xlane.xlu0 %990
      %v992 = vmax.f32 %v785, %v874
      %993 = vmax.xlane.f32.xlu0 %v992
      %v994 = vpop.xlane.xlu0 %993
      %v995 = vmax.f32 %v788, %v877
      %996 = vmax.xlane.f32.xlu0 %v995
      %v997 = vpop.xlane.xlu0 %996
      %v998 = vmax.f32 %v790, %v879
      %999 = vmax.xlane.f32.xlu0 %v998
      %v1000 = vpop.xlane.xlu0 %999
      %v1001 = vmax.f32 %v793, %v882
      %1002 = vmax.xlane.f32.xlu0 %v1001
      %v1003 = vpop.xlane.xlu0 %1002
      %v1004 = vmax.f32 %v795, %v884
      %1005 = vmax.xlane.f32.xlu0 %v1004
      %v1006 = vpop.xlane.xlu0 %1005
      %v1007 = vmax.f32 %v798, %v887
      %1008 = vmax.xlane.f32.xlu0 %v1007
      %v1009 = vpop.xlane.xlu0 %1008
      %v1010 = vmax.f32 %v800, %v889
      %1011 = vmax.xlane.f32.xlu0 %v1010
      %v1012 = vpop.xlane.xlu0 %1011
      %v1013 = vmax.f32 %v803, %v892
      %1014 = vmax.xlane.f32.xlu0 %v1013
      %v1015 = vpop.xlane.xlu0 %1014
      %v1016 = vmax.f32 %v805, %v894
      %1017 = vmax.xlane.f32.xlu0 %v1016
      %v1018 = vpop.xlane.xlu0 %1017
      %v1019 = vmax.f32 %v808, %v897
      %1020 = vmax.xlane.f32.xlu0 %v1019
      %v1021 = vpop.xlane.xlu0 %1020
      %v1022 = vmax.f32 %v810, %v899
      %1023 = vmax.xlane.f32.xlu0 %v1022
      %v1024 = vpop.xlane.xlu0 %1023
      %v1025 = vmax.f32 %v813, %v902
      %1026 = vmax.xlane.f32.xlu0 %v1025
      %v1027 = vpop.xlane.xlu0 %1026
      %v1028 = vmax.f32 %v815, %v904
      %1029 = vmax.xlane.f32.xlu0 %v1028
      %v1030 = vpop.xlane.xlu0 %1029
      %v1031 = vmax.f32 %v818, %v907
      %1032 = vmax.xlane.f32.xlu0 %v1031
      %v1033 = vpop.xlane.xlu0 %1032
      %v1034 = vmax.f32 %v820, %v909
      %1035 = vmax.xlane.f32.xlu0 %v1034
      %v1036 = vpop.xlane.xlu0 %1035
      %v1037 = vmax.f32 %v823, %v912
      %1038 = vmax.xlane.f32.xlu0 %v1037
      %v1039 = vpop.xlane.xlu0 %1038
      %v1040 = vmax.f32 %v825, %v914
      %1041 = vmax.xlane.f32.xlu0 %v1040
      %v1042 = vpop.xlane.xlu0 %1041
      %v1043 = vmax.f32 %v828, %v917
      %1044 = vmax.xlane.f32.xlu0 %v1043
      %v1045 = vpop.xlane.xlu0 %1044
      %v1046 = vmax.f32 %v830, %v919
      %1047 = vmax.xlane.f32.xlu0 %v1046
      %v1048 = vpop.xlane.xlu0 %1047
      %v1049 = vmax.f32 %v921, %v955
      %v1050 = vmax.f32 %v922, %v958
      %v1051 = vmax.f32 %v923, %v961
      %v1052 = vmax.f32 %v924, %v964
      %v1053 = vmax.f32 %v925, %v967
      %v1054 = vmax.f32 %v926, %v970
      %v1055 = vmax.f32 %v927, %v973
      %v1056 = vmax.f32 %v928, %v976
      %v1057 = vmax.f32 %v929, %v979
      %v1058 = vmax.f32 %v930, %v982
      %v1059 = vmax.f32 %v931, %v985
      %v1060 = vmax.f32 %v932, %v988
      %v1061 = vmax.f32 %v933, %v991
      %v1062 = vmax.f32 %v934, %v994
      %v1063 = vmax.f32 %v935, %v997
      %v1064 = vmax.f32 %v936, %v1000
      %v1065 = vmax.f32 %v937, %v1003
      %v1066 = vmax.f32 %v938, %v1006
      %v1067 = vmax.f32 %v939, %v1009
      %v1068 = vmax.f32 %v940, %v1012
      %v1069 = vmax.f32 %v941, %v1015
      %v1070 = vmax.f32 %v942, %v1018
      %v1071 = vmax.f32 %v943, %v1021
      %v1072 = vmax.f32 %v944, %v1024
      %v1073 = vmax.f32 %v945, %v1027
      %v1074 = vmax.f32 %v946, %v1030
      %v1075 = vmax.f32 %v947, %v1033
      %v1076 = vmax.f32 %v948, %v1036
      %v1077 = vmax.f32 %v949, %v1039
      %v1078 = vmax.f32 %v950, %v1042
      %v1079 = vmax.f32 %v951, %v1045
      %v1080 = vmax.f32 %v952, %v1048
      %v1081 = vsub.f32 %v921, %v1049
      %v1082 = vsub.f32 %v922, %v1050
      %v1083 = vsub.f32 %v923, %v1051
      %v1084 = vsub.f32 %v924, %v1052
      %v1085 = vsub.f32 %v925, %v1053
      %v1086 = vsub.f32 %v926, %v1054
      %v1087 = vsub.f32 %v927, %v1055
      %v1088 = vsub.f32 %v928, %v1056
      %v1089 = vsub.f32 %v929, %v1057
      %v1090 = vsub.f32 %v930, %v1058
      %v1091 = vsub.f32 %v931, %v1059
      %v1092 = vsub.f32 %v932, %v1060
      %v1093 = vsub.f32 %v933, %v1061
      %v1094 = vsub.f32 %v934, %v1062
      %v1095 = vsub.f32 %v935, %v1063
      %v1096 = vsub.f32 %v936, %v1064
      %v1097 = vsub.f32 %v937, %v1065
      %v1098 = vsub.f32 %v938, %v1066
      %v1099 = vsub.f32 %v939, %v1067
      %v1100 = vsub.f32 %v940, %v1068
      %v1101 = vsub.f32 %v941, %v1069
      %v1102 = vsub.f32 %v942, %v1070
      %v1103 = vsub.f32 %v943, %v1071
      %v1104 = vsub.f32 %v944, %v1072
      %v1105 = vsub.f32 %v945, %v1073
      %v1106 = vsub.f32 %v946, %v1074
      %v1107 = vsub.f32 %v947, %v1075
      %v1108 = vsub.f32 %v948, %v1076
      %v1109 = vsub.f32 %v949, %v1077
      %v1110 = vsub.f32 %v950, %v1078
      %v1111 = vsub.f32 %v951, %v1079
      %v1112 = vsub.f32 %v952, %v1080
      %v1113 = vmul.f32 %v1081, 1.442695
      %v1114 = vpow.pop %v1113
      %v1115 = vmul.f32 %v1082, 1.442695
      %v1116 = vpow.pop %v1115
      %v1117 = vmul.f32 %v1083, 1.442695
      %v1118 = vpow.pop %v1117
      %v1119 = vmul.f32 %v1084, 1.442695
      %v1120 = vpow.pop %v1119
      %v1121 = vmul.f32 %v1085, 1.442695
      %v1122 = vpow.pop %v1121
      %v1123 = vmul.f32 %v1086, 1.442695
      %v1124 = vpow.pop %v1123
      %v1125 = vmul.f32 %v1087, 1.442695
      %v1126 = vpow.pop %v1125
      %v1127 = vmul.f32 %v1088, 1.442695
      %v1128 = vpow.pop %v1127
      %v1129 = vmul.f32 %v1089, 1.442695
      %v1130 = vpow.pop %v1129
      %v1131 = vmul.f32 %v1090, 1.442695
      %v1132 = vpow.pop %v1131
      %v1133 = vmul.f32 %v1091, 1.442695
      %v1134 = vpow.pop %v1133
      %v1135 = vmul.f32 %v1092, 1.442695
      %v1136 = vpow.pop %v1135
      %v1137 = vmul.f32 %v1093, 1.442695
      %v1138 = vpow.pop %v1137
      %v1139 = vmul.f32 %v1094, 1.442695
      %v1140 = vpow.pop %v1139
      %v1141 = vmul.f32 %v1095, 1.442695
      %v1142 = vpow.pop %v1141
      %v1143 = vmul.f32 %v1096, 1.442695
      %v1144 = vpow.pop %v1143
      %v1145 = vmul.f32 %v1097, 1.442695
      %v1146 = vpow.pop %v1145
      %v1147 = vmul.f32 %v1098, 1.442695
      %v1148 = vpow.pop %v1147
      %v1149 = vmul.f32 %v1099, 1.442695
      %v1150 = vpow.pop %v1149
      %v1151 = vmul.f32 %v1100, 1.442695
      %v1152 = vpow.pop %v1151
      %v1153 = vmul.f32 %v1101, 1.442695
      %v1154 = vpow.pop %v1153
      %v1155 = vmul.f32 %v1102, 1.442695
      %v1156 = vpow.pop %v1155
      %v1157 = vmul.f32 %v1103, 1.442695
      %v1158 = vpow.pop %v1157
      %v1159 = vmul.f32 %v1104, 1.442695
      %v1160 = vpow.pop %v1159
      %v1161 = vmul.f32 %v1105, 1.442695
      %v1162 = vpow.pop %v1161
      %v1163 = vmul.f32 %v1106, 1.442695
      %v1164 = vpow.pop %v1163
      %v1165 = vmul.f32 %v1107, 1.442695
      %v1166 = vpow.pop %v1165
      %v1167 = vmul.f32 %v1108, 1.442695
      %v1168 = vpow.pop %v1167
      %v1169 = vmul.f32 %v1109, 1.442695
      %v1170 = vpow.pop %v1169
      %v1171 = vmul.f32 %v1110, 1.442695
      %v1172 = vpow.pop %v1171
      %v1173 = vmul.f32 %v1111, 1.442695
      %v1174 = vpow.pop %v1173
      %v1175 = vmul.f32 %v1112, 1.442695
      %v1176 = vpow.pop %v1175
      %1178 = vset.pattern.permute.xlu0 0
      %1179 = vperm.xlu0 %1178, %v1049
      %v1180 = vpop.permute.xlu0 %1179
      %1183 = vset.pattern.permute.xlu0 0
      %1184 = vperm.xlu0 %1183, %v1050
      %v1185 = vpop.permute.xlu0 %1184
      %1188 = vset.pattern.permute.xlu0 0
      %1189 = vperm.xlu0 %1188, %v1051
      %v1190 = vpop.permute.xlu0 %1189
      %1193 = vset.pattern.permute.xlu0 0
      %1194 = vperm.xlu0 %1193, %v1052
      %v1195 = vpop.permute.xlu0 %1194
      %1198 = vset.pattern.permute.xlu0 0
      %1199 = vperm.xlu0 %1198, %v1053
      %v1200 = vpop.permute.xlu0 %1199
      %1203 = vset.pattern.permute.xlu0 0
      %1204 = vperm.xlu0 %1203, %v1054
      %v1205 = vpop.permute.xlu0 %1204
      %1208 = vset.pattern.permute.xlu0 0
      %1209 = vperm.xlu0 %1208, %v1055
      %v1210 = vpop.permute.xlu0 %1209
      %1213 = vset.pattern.permute.xlu0 0
      %1214 = vperm.xlu0 %1213, %v1056
      %v1215 = vpop.permute.xlu0 %1214
      %1218 = vset.pattern.permute.xlu0 0
      %1219 = vperm.xlu0 %1218, %v1057
      %v1220 = vpop.permute.xlu0 %1219
      %1223 = vset.pattern.permute.xlu0 0
      %1224 = vperm.xlu0 %1223, %v1058
      %v1225 = vpop.permute.xlu0 %1224
      %1228 = vset.pattern.permute.xlu0 0
      %1229 = vperm.xlu0 %1228, %v1059
      %v1230 = vpop.permute.xlu0 %1229
      %1233 = vset.pattern.permute.xlu0 0
      %1234 = vperm.xlu0 %1233, %v1060
      %v1235 = vpop.permute.xlu0 %1234
      %1238 = vset.pattern.permute.xlu0 0
      %1239 = vperm.xlu0 %1238, %v1061
      %v1240 = vpop.permute.xlu0 %1239
      %1243 = vset.pattern.permute.xlu0 0
      %1244 = vperm.xlu0 %1243, %v1062
      %v1245 = vpop.permute.xlu0 %1244
      %1248 = vset.pattern.permute.xlu0 0
      %1249 = vperm.xlu0 %1248, %v1063
      %v1250 = vpop.permute.xlu0 %1249
      %1253 = vset.pattern.permute.xlu0 0
      %1254 = vperm.xlu0 %1253, %v1064
      %v1255 = vpop.permute.xlu0 %1254
      %1258 = vset.pattern.permute.xlu0 0
      %1259 = vperm.xlu0 %1258, %v1065
      %v1260 = vpop.permute.xlu0 %1259
      %1263 = vset.pattern.permute.xlu0 0
      %1264 = vperm.xlu0 %1263, %v1066
      %v1265 = vpop.permute.xlu0 %1264
      %1268 = vset.pattern.permute.xlu0 0
      %1269 = vperm.xlu0 %1268, %v1067
      %v1270 = vpop.permute.xlu0 %1269
      %1273 = vset.pattern.permute.xlu0 0
      %1274 = vperm.xlu0 %1273, %v1068
      %v1275 = vpop.permute.xlu0 %1274
      %1278 = vset.pattern.permute.xlu0 0
      %1279 = vperm.xlu0 %1278, %v1069
      %v1280 = vpop.permute.xlu0 %1279
      %1283 = vset.pattern.permute.xlu0 0
      %1284 = vperm.xlu0 %1283, %v1070
      %v1285 = vpop.permute.xlu0 %1284
      %1288 = vset.pattern.permute.xlu0 0
      %1289 = vperm.xlu0 %1288, %v1071
      %v1290 = vpop.permute.xlu0 %1289
      %1293 = vset.pattern.permute.xlu0 0
      %1294 = vperm.xlu0 %1293, %v1072
      %v1295 = vpop.permute.xlu0 %1294
      %1298 = vset.pattern.permute.xlu0 0
      %1299 = vperm.xlu0 %1298, %v1073
      %v1300 = vpop.permute.xlu0 %1299
      %1303 = vset.pattern.permute.xlu0 0
      %1304 = vperm.xlu0 %1303, %v1074
      %v1305 = vpop.permute.xlu0 %1304
      %1308 = vset.pattern.permute.xlu0 0
      %1309 = vperm.xlu0 %1308, %v1075
      %v1310 = vpop.permute.xlu0 %1309
      %1313 = vset.pattern.permute.xlu0 0
      %1314 = vperm.xlu0 %1313, %v1076
      %v1315 = vpop.permute.xlu0 %1314
      %1318 = vset.pattern.permute.xlu0 0
      %1319 = vperm.xlu0 %1318, %v1077
      %v1320 = vpop.permute.xlu0 %1319
      %1323 = vset.pattern.permute.xlu0 0
      %1324 = vperm.xlu0 %1323, %v1078
      %v1325 = vpop.permute.xlu0 %1324
      %1328 = vset.pattern.permute.xlu0 0
      %1329 = vperm.xlu0 %1328, %v1079
      %v1330 = vpop.permute.xlu0 %1329
      %1333 = vset.pattern.permute.xlu0 0
      %1334 = vperm.xlu0 %1333, %v1080
      %v1335 = vpop.permute.xlu0 %1334
      %v1337 = vsub.f32 %v753, %v1180
      %v1338 = vsub.f32 %v842, %v1180
      %v1339 = vsub.f32 %v755, %v1185
      %v1340 = vsub.f32 %v844, %v1185
      %v1341 = vsub.f32 %v758, %v1190
      %v1342 = vsub.f32 %v847, %v1190
      %v1343 = vsub.f32 %v760, %v1195
      %v1344 = vsub.f32 %v849, %v1195
      %v1345 = vsub.f32 %v763, %v1200
      %v1346 = vsub.f32 %v852, %v1200
      %v1347 = vsub.f32 %v765, %v1205
      %v1348 = vsub.f32 %v854, %v1205
      %v1349 = vsub.f32 %v768, %v1210
      %v1350 = vsub.f32 %v857, %v1210
      %v1351 = vsub.f32 %v770, %v1215
      %v1352 = vsub.f32 %v859, %v1215
      %v1353 = vsub.f32 %v773, %v1220
      %v1354 = vsub.f32 %v862, %v1220
      %v1355 = vsub.f32 %v775, %v1225
      %v1356 = vsub.f32 %v864, %v1225
      %v1357 = vsub.f32 %v778, %v1230
      %v1358 = vsub.f32 %v867, %v1230
      %v1359 = vsub.f32 %v780, %v1235
      %v1360 = vsub.f32 %v869, %v1235
      %v1361 = vsub.f32 %v783, %v1240
      %v1362 = vsub.f32 %v872, %v1240
      %v1363 = vsub.f32 %v785, %v1245
      %v1364 = vsub.f32 %v874, %v1245
      %v1365 = vsub.f32 %v788, %v1250
      %v1366 = vsub.f32 %v877, %v1250
      %v1367 = vsub.f32 %v790, %v1255
      %v1368 = vsub.f32 %v879, %v1255
      %v1369 = vsub.f32 %v793, %v1260
      %v1370 = vsub.f32 %v882, %v1260
      %v1371 = vsub.f32 %v795, %v1265
      %v1372 = vsub.f32 %v884, %v1265
      %v1373 = vsub.f32 %v798, %v1270
      %v1374 = vsub.f32 %v887, %v1270
      %v1375 = vsub.f32 %v800, %v1275
      %v1376 = vsub.f32 %v889, %v1275
      %v1377 = vsub.f32 %v803, %v1280
      %v1378 = vsub.f32 %v892, %v1280
      %v1379 = vsub.f32 %v805, %v1285
      %v1380 = vsub.f32 %v894, %v1285
      %v1381 = vsub.f32 %v808, %v1290
      %v1382 = vsub.f32 %v897, %v1290
      %v1383 = vsub.f32 %v810, %v1295
      %v1384 = vsub.f32 %v899, %v1295
      %v1385 = vsub.f32 %v813, %v1300
      %v1386 = vsub.f32 %v902, %v1300
      %v1387 = vsub.f32 %v815, %v1305
      %v1388 = vsub.f32 %v904, %v1305
      %v1389 = vsub.f32 %v818, %v1310
      %v1390 = vsub.f32 %v907, %v1310
      %v1391 = vsub.f32 %v820, %v1315
      %v1392 = vsub.f32 %v909, %v1315
      %v1393 = vsub.f32 %v823, %v1320
      %v1394 = vsub.f32 %v912, %v1320
      %v1395 = vsub.f32 %v825, %v1325
      %v1396 = vsub.f32 %v914, %v1325
      %v1397 = vsub.f32 %v828, %v1330
      %v1398 = vsub.f32 %v917, %v1330
      %v1399 = vsub.f32 %v830, %v1335
      %v1400 = vsub.f32 %v919, %v1335
      %v1401 = vmul.f32 %v1337, 1.442695
      %v1402 = vpow.pop %v1401
      %v1403 = vmul.f32 %v1338, 1.442695
      %v1404 = vpow.pop %v1403
      %v1405 = vmul.f32 %v1339, 1.442695
      %v1406 = vpow.pop %v1405
      %v1407 = vmul.f32 %v1340, 1.442695
      %v1408 = vpow.pop %v1407
      %v1409 = vmul.f32 %v1341, 1.442695
      %v1410 = vpow.pop %v1409
      %v1411 = vmul.f32 %v1342, 1.442695
      %v1412 = vpow.pop %v1411
      %v1413 = vmul.f32 %v1343, 1.442695
      %v1414 = vpow.pop %v1413
      %v1415 = vmul.f32 %v1344, 1.442695
      %v1416 = vpow.pop %v1415
      %v1417 = vmul.f32 %v1345, 1.442695
      %v1418 = vpow.pop %v1417
      %v1419 = vmul.f32 %v1346, 1.442695
      %v1420 = vpow.pop %v1419
      %v1421 = vmul.f32 %v1347, 1.442695
      %v1422 = vpow.pop %v1421
      %v1423 = vmul.f32 %v1348, 1.442695
      %v1424 = vpow.pop %v1423
      %v1425 = vmul.f32 %v1349, 1.442695
      %v1426 = vpow.pop %v1425
      %v1427 = vmul.f32 %v1350, 1.442695
      %v1428 = vpow.pop %v1427
      %v1429 = vmul.f32 %v1351, 1.442695
      %v1430 = vpow.pop %v1429
      %v1431 = vmul.f32 %v1352, 1.442695
      %v1432 = vpow.pop %v1431
      %v1433 = vmul.f32 %v1353, 1.442695
      %v1434 = vpow.pop %v1433
      %v1435 = vmul.f32 %v1354, 1.442695
      %v1436 = vpow.pop %v1435
      %v1437 = vmul.f32 %v1355, 1.442695
      %v1438 = vpow.pop %v1437
      %v1439 = vmul.f32 %v1356, 1.442695
      %v1440 = vpow.pop %v1439
      %v1441 = vmul.f32 %v1357, 1.442695
      %v1442 = vpow.pop %v1441
      %v1443 = vmul.f32 %v1358, 1.442695
      %v1444 = vpow.pop %v1443
      %v1445 = vmul.f32 %v1359, 1.442695
      %v1446 = vpow.pop %v1445
      %v1447 = vmul.f32 %v1360, 1.442695
      %v1448 = vpow.pop %v1447
      %v1449 = vmul.f32 %v1361, 1.442695
      %v1450 = vpow.pop %v1449
      %v1451 = vmul.f32 %v1362, 1.442695
      %v1452 = vpow.pop %v1451
      %v1453 = vmul.f32 %v1363, 1.442695
      %v1454 = vpow.pop %v1453
      %v1455 = vmul.f32 %v1364, 1.442695
      %v1456 = vpow.pop %v1455
      %v1457 = vmul.f32 %v1365, 1.442695
      %v1458 = vpow.pop %v1457
      %v1459 = vmul.f32 %v1366, 1.442695
      %v1460 = vpow.pop %v1459
      %v1461 = vmul.f32 %v1367, 1.442695
      %v1462 = vpow.pop %v1461
      %v1463 = vmul.f32 %v1368, 1.442695
      %v1464 = vpow.pop %v1463
      %v1465 = vmul.f32 %v1369, 1.442695
      %v1466 = vpow.pop %v1465
      %v1467 = vmul.f32 %v1370, 1.442695
      %v1468 = vpow.pop %v1467
      %v1469 = vmul.f32 %v1371, 1.442695
      %v1470 = vpow.pop %v1469
      %v1471 = vmul.f32 %v1372, 1.442695
      %v1472 = vpow.pop %v1471
      %v1473 = vmul.f32 %v1373, 1.442695
      %v1474 = vpow.pop %v1473
      %v1475 = vmul.f32 %v1374, 1.442695
      %v1476 = vpow.pop %v1475
      %v1477 = vmul.f32 %v1375, 1.442695
      %v1478 = vpow.pop %v1477
      %v1479 = vmul.f32 %v1376, 1.442695
      %v1480 = vpow.pop %v1479
      %v1481 = vmul.f32 %v1377, 1.442695
      %v1482 = vpow.pop %v1481
      %v1483 = vmul.f32 %v1378, 1.442695
      %v1484 = vpow.pop %v1483
      %v1485 = vmul.f32 %v1379, 1.442695
      %v1486 = vpow.pop %v1485
      %v1487 = vmul.f32 %v1380, 1.442695
      %v1488 = vpow.pop %v1487
      %v1489 = vmul.f32 %v1381, 1.442695
      %v1490 = vpow.pop %v1489
      %v1491 = vmul.f32 %v1382, 1.442695
      %v1492 = vpow.pop %v1491
      %v1493 = vmul.f32 %v1383, 1.442695
      %v1494 = vpow.pop %v1493
      %v1495 = vmul.f32 %v1384, 1.442695
      %v1496 = vpow.pop %v1495
      %v1497 = vmul.f32 %v1385, 1.442695
      %v1498 = vpow.pop %v1497
      %v1499 = vmul.f32 %v1386, 1.442695
      %v1500 = vpow.pop %v1499
      %v1501 = vmul.f32 %v1387, 1.442695
      %v1502 = vpow.pop %v1501
      %v1503 = vmul.f32 %v1388, 1.442695
      %v1504 = vpow.pop %v1503
      %v1505 = vmul.f32 %v1389, 1.442695
      %v1506 = vpow.pop %v1505
      %v1507 = vmul.f32 %v1390, 1.442695
      %v1508 = vpow.pop %v1507
      %v1509 = vmul.f32 %v1391, 1.442695
      %v1510 = vpow.pop %v1509
      %v1511 = vmul.f32 %v1392, 1.442695
      %v1512 = vpow.pop %v1511
      %v1513 = vmul.f32 %v1393, 1.442695
      %v1514 = vpow.pop %v1513
      %v1515 = vmul.f32 %v1394, 1.442695
      %v1516 = vpow.pop %v1515
      %v1517 = vmul.f32 %v1395, 1.442695
      %v1518 = vpow.pop %v1517
      %v1519 = vmul.f32 %v1396, 1.442695
      %v1520 = vpow.pop %v1519
      %v1521 = vmul.f32 %v1397, 1.442695
      %v1522 = vpow.pop %v1521
      %v1523 = vmul.f32 %v1398, 1.442695
      %v1524 = vpow.pop %v1523
      %v1525 = vmul.f32 %v1399, 1.442695
      %v1526 = vpow.pop %v1525
      %v1527 = vmul.f32 %v1400, 1.442695
      %v1528 = vpow.pop %v1527
      %v1529 = vld [vmem:[#allocation3] sm:$0xff]
      %v1530 = vld [vmem:[#allocation3 + $0x8] sm:$0xff]
      %v1531 = vld [vmem:[#allocation3 + $0x10] sm:$0xff]
      %v1532 = vld [vmem:[#allocation3 + $0x18] sm:$0xff]
      %v1533 = vld [vmem:[#allocation3 + $0x20] sm:$0xff]
      %v1534 = vld [vmem:[#allocation3 + $0x28] sm:$0xff]
      %v1535 = vld [vmem:[#allocation3 + $0x30] sm:$0xff]
      %v1536 = vld [vmem:[#allocation3 + $0x38] sm:$0xff]
      %v1537 = vld [vmem:[#allocation3 + $0x40] sm:$0xff]
      %v1538 = vld [vmem:[#allocation3 + $0x48] sm:$0xff]
      %v1539 = vld [vmem:[#allocation3 + $0x50] sm:$0xff]
      %v1540 = vld [vmem:[#allocation3 + $0x58] sm:$0xff]
      %v1541 = vld [vmem:[#allocation3 + $0x60] sm:$0xff]
      %v1542 = vld [vmem:[#allocation3 + $0x68] sm:$0xff]
      %v1543 = vld [vmem:[#allocation3 + $0x70] sm:$0xff]
      %v1544 = vld [vmem:[#allocation3 + $0x78] sm:$0xff]
      %v1545 = vld [vmem:[#allocation3 + $0x80] sm:$0xff]
      %v1546 = vld [vmem:[#allocation3 + $0x88] sm:$0xff]
      %v1547 = vld [vmem:[#allocation3 + $0x90] sm:$0xff]
      %v1548 = vld [vmem:[#allocation3 + $0x98] sm:$0xff]
      %v1549 = vld [vmem:[#allocation3 + $0xa0] sm:$0xff]
      %v1550 = vld [vmem:[#allocation3 + $0xa8] sm:$0xff]
      %v1551 = vld [vmem:[#allocation3 + $0xb0] sm:$0xff]
      %v1552 = vld [vmem:[#allocation3 + $0xb8] sm:$0xff]
      %v1553 = vld [vmem:[#allocation3 + $0xc0] sm:$0xff]
      %v1554 = vld [vmem:[#allocation3 + $0xc8] sm:$0xff]
      %v1555 = vld [vmem:[#allocation3 + $0xd0] sm:$0xff]
      %v1556 = vld [vmem:[#allocation3 + $0xd8] sm:$0xff]
      %v1557 = vld [vmem:[#allocation3 + $0xe0] sm:$0xff]
      %v1558 = vld [vmem:[#allocation3 + $0xe8] sm:$0xff]
      %v1559 = vld [vmem:[#allocation3 + $0xf0] sm:$0xff]
      %v1560 = vld [vmem:[#allocation3 + $0xf8] sm:$0xff]
      %v1561 = vmul.f32 %v1114, %v1529
      %v1562 = vmul.f32 %v1116, %v1530
      %v1563 = vmul.f32 %v1118, %v1531
      %v1564 = vmul.f32 %v1120, %v1532
      %v1565 = vmul.f32 %v1122, %v1533
      %v1566 = vmul.f32 %v1124, %v1534
      %v1567 = vmul.f32 %v1126, %v1535
      %v1568 = vmul.f32 %v1128, %v1536
      %v1569 = vmul.f32 %v1130, %v1537
      %v1570 = vmul.f32 %v1132, %v1538
      %v1571 = vmul.f32 %v1134, %v1539
      %v1572 = vmul.f32 %v1136, %v1540
      %v1573 = vmul.f32 %v1138, %v1541
      %v1574 = vmul.f32 %v1140, %v1542
      %v1575 = vmul.f32 %v1142, %v1543
      %v1576 = vmul.f32 %v1144, %v1544
      %v1577 = vmul.f32 %v1146, %v1545
      %v1578 = vmul.f32 %v1148, %v1546
      %v1579 = vmul.f32 %v1150, %v1547
      %v1580 = vmul.f32 %v1152, %v1548
      %v1581 = vmul.f32 %v1154, %v1549
      %v1582 = vmul.f32 %v1156, %v1550
      %v1583 = vmul.f32 %v1158, %v1551
      %v1584 = vmul.f32 %v1160, %v1552
      %v1585 = vmul.f32 %v1162, %v1553
      %v1586 = vmul.f32 %v1164, %v1554
      %v1587 = vmul.f32 %v1166, %v1555
      %v1588 = vmul.f32 %v1168, %v1556
      %v1589 = vmul.f32 %v1170, %v1557
      %v1590 = vmul.f32 %v1172, %v1558
      %v1591 = vmul.f32 %v1174, %v1559
      %v1592 = vmul.f32 %v1176, %v1560
      %v1593 = vadd.f32 %v1402, %v1404
      %1594 = vadd.xlane.f32.xlu0 %v1593
      %v1595 = vpop.xlane.xlu0 %1594
      %v1596 = vadd.f32 %v1406, %v1408
      %1597 = vadd.xlane.f32.xlu0 %v1596
      %v1598 = vpop.xlane.xlu0 %1597
      %v1599 = vadd.f32 %v1410, %v1412
      %1600 = vadd.xlane.f32.xlu0 %v1599
      %v1601 = vpop.xlane.xlu0 %1600
      %v1602 = vadd.f32 %v1414, %v1416
      %1603 = vadd.xlane.f32.xlu0 %v1602
      %v1604 = vpop.xlane.xlu0 %1603
      %v1605 = vadd.f32 %v1418, %v1420
      %1606 = vadd.xlane.f32.xlu0 %v1605
      %v1607 = vpop.xlane.xlu0 %1606
      %v1608 = vadd.f32 %v1422, %v1424
      %1609 = vadd.xlane.f32.xlu0 %v1608
      %v1610 = vpop.xlane.xlu0 %1609
      %v1611 = vadd.f32 %v1426, %v1428
      %1612 = vadd.xlane.f32.xlu0 %v1611
      %v1613 = vpop.xlane.xlu0 %1612
      %v1614 = vadd.f32 %v1430, %v1432
      %1615 = vadd.xlane.f32.xlu0 %v1614
      %v1616 = vpop.xlane.xlu0 %1615
      %v1617 = vadd.f32 %v1434, %v1436
      %1618 = vadd.xlane.f32.xlu0 %v1617
      %v1619 = vpop.xlane.xlu0 %1618
      %v1620 = vadd.f32 %v1438, %v1440
      %1621 = vadd.xlane.f32.xlu0 %v1620
      %v1622 = vpop.xlane.xlu0 %1621
      %v1623 = vadd.f32 %v1442, %v1444
      %1624 = vadd.xlane.f32.xlu0 %v1623
      %v1625 = vpop.xlane.xlu0 %1624
      %v1626 = vadd.f32 %v1446, %v1448
      %1627 = vadd.xlane.f32.xlu0 %v1626
      %v1628 = vpop.xlane.xlu0 %1627
      %v1629 = vadd.f32 %v1450, %v1452
      %1630 = vadd.xlane.f32.xlu0 %v1629
      %v1631 = vpop.xlane.xlu0 %1630
      %v1632 = vadd.f32 %v1454, %v1456
      %1633 = vadd.xlane.f32.xlu0 %v1632
      %v1634 = vpop.xlane.xlu0 %1633
      %v1635 = vadd.f32 %v1458, %v1460
      %1636 = vadd.xlane.f32.xlu0 %v1635
      %v1637 = vpop.xlane.xlu0 %1636
      %v1638 = vadd.f32 %v1462, %v1464
      %1639 = vadd.xlane.f32.xlu0 %v1638
      %v1640 = vpop.xlane.xlu0 %1639
      %v1641 = vadd.f32 %v1466, %v1468
      %1642 = vadd.xlane.f32.xlu0 %v1641
      %v1643 = vpop.xlane.xlu0 %1642
      %v1644 = vadd.f32 %v1470, %v1472
      %1645 = vadd.xlane.f32.xlu0 %v1644
      %v1646 = vpop.xlane.xlu0 %1645
      %v1647 = vadd.f32 %v1474, %v1476
      %1648 = vadd.xlane.f32.xlu0 %v1647
      %v1649 = vpop.xlane.xlu0 %1648
      %v1650 = vadd.f32 %v1478, %v1480
      %1651 = vadd.xlane.f32.xlu0 %v1650
      %v1652 = vpop.xlane.xlu0 %1651
      %v1653 = vadd.f32 %v1482, %v1484
      %1654 = vadd.xlane.f32.xlu0 %v1653
      %v1655 = vpop.xlane.xlu0 %1654
      %v1656 = vadd.f32 %v1486, %v1488
      %1657 = vadd.xlane.f32.xlu0 %v1656
      %v1658 = vpop.xlane.xlu0 %1657
      %v1659 = vadd.f32 %v1490, %v1492
      %1660 = vadd.xlane.f32.xlu0 %v1659
      %v1661 = vpop.xlane.xlu0 %1660
      %v1662 = vadd.f32 %v1494, %v1496
      %1663 = vadd.xlane.f32.xlu0 %v1662
      %v1664 = vpop.xlane.xlu0 %1663
      %v1665 = vadd.f32 %v1498, %v1500
      %1666 = vadd.xlane.f32.xlu0 %v1665
      %v1667 = vpop.xlane.xlu0 %1666
      %v1668 = vadd.f32 %v1502, %v1504
      %1669 = vadd.xlane.f32.xlu0 %v1668
      %v1670 = vpop.xlane.xlu0 %1669
      %v1671 = vadd.f32 %v1506, %v1508
      %1672 = vadd.xlane.f32.xlu0 %v1671
      %v1673 = vpop.xlane.xlu0 %1672
      %v1674 = vadd.f32 %v1510, %v1512
      %1675 = vadd.xlane.f32.xlu0 %v1674
      %v1676 = vpop.xlane.xlu0 %1675
      %v1677 = vadd.f32 %v1514, %v1516
      %1678 = vadd.xlane.f32.xlu0 %v1677
      %v1679 = vpop.xlane.xlu0 %1678
      %v1680 = vadd.f32 %v1518, %v1520
      %1681 = vadd.xlane.f32.xlu0 %v1680
      %v1682 = vpop.xlane.xlu0 %1681
      %v1683 = vadd.f32 %v1522, %v1524
      %1684 = vadd.xlane.f32.xlu0 %v1683
      %v1685 = vpop.xlane.xlu0 %1684
      %v1686 = vadd.f32 %v1526, %v1528
      %1687 = vadd.xlane.f32.xlu0 %v1686
      %v1688 = vpop.xlane.xlu0 %1687
      %v1689 = vadd.f32 %v1561, %v1595
      %v1690 = vadd.f32 %v1562, %v1598
      %v1691 = vadd.f32 %v1563, %v1601
      %v1692 = vadd.f32 %v1564, %v1604
      %v1693 = vadd.f32 %v1565, %v1607
      %v1694 = vadd.f32 %v1566, %v1610
      %v1695 = vadd.f32 %v1567, %v1613
      %v1696 = vadd.f32 %v1568, %v1616
      %v1697 = vadd.f32 %v1569, %v1619
      %v1698 = vadd.f32 %v1570, %v1622
      %v1699 = vadd.f32 %v1571, %v1625
      %v1700 = vadd.f32 %v1572, %v1628
      %v1701 = vadd.f32 %v1573, %v1631
      %v1702 = vadd.f32 %v1574, %v1634
      %v1703 = vadd.f32 %v1575, %v1637
      %v1704 = vadd.f32 %v1576, %v1640
      %v1705 = vadd.f32 %v1577, %v1643
      %v1706 = vadd.f32 %v1578, %v1646
      %v1707 = vadd.f32 %v1579, %v1649
      %v1708 = vadd.f32 %v1580, %v1652
      %v1709 = vadd.f32 %v1581, %v1655
      %v1710 = vadd.f32 %v1582, %v1658
      %v1711 = vadd.f32 %v1583, %v1661
      %v1712 = vadd.f32 %v1584, %v1664
      %v1713 = vadd.f32 %v1585, %v1667
      %v1714 = vadd.f32 %v1586, %v1670
      %v1715 = vadd.f32 %v1587, %v1673
      %v1716 = vadd.f32 %v1588, %v1676
      %v1717 = vadd.f32 %v1589, %v1679
      %v1718 = vadd.f32 %v1590, %v1682
      %v1719 = vadd.f32 %v1591, %v1685
      %v1720 = vadd.f32 %v1592, %v1688
      %vm1721 = vcmask 7168
      %1722 = vst.msk [vmem:[#allocation3] sm:$0xff] %vm1721, %v1689
      %1723 = vst.msk [vmem:[#allocation3 + $0x8] sm:$0xff] %vm1721, %v1690
      %1724 = vst.msk [vmem:[#allocation3 + $0x10] sm:$0xff] %vm1721, %v1691
      %1725 = vst.msk [vmem:[#allocation3 + $0x18] sm:$0xff] %vm1721, %v1692
      %1726 = vst.msk [vmem:[#allocation3 + $0x20] sm:$0xff] %vm1721, %v1693
      %1727 = vst.msk [vmem:[#allocation3 + $0x28] sm:$0xff] %vm1721, %v1694
      %1728 = vst.msk [vmem:[#allocation3 + $0x30] sm:$0xff] %vm1721, %v1695
      %1729 = vst.msk [vmem:[#allocation3 + $0x38] sm:$0xff] %vm1721, %v1696
      %1730 = vst.msk [vmem:[#allocation3 + $0x40] sm:$0xff] %vm1721, %v1697
      %1731 = vst.msk [vmem:[#allocation3 + $0x48] sm:$0xff] %vm1721, %v1698
      %1732 = vst.msk [vmem:[#allocation3 + $0x50] sm:$0xff] %vm1721, %v1699
      %1733 = vst.msk [vmem:[#allocation3 + $0x58] sm:$0xff] %vm1721, %v1700
      %1734 = vst.msk [vmem:[#allocation3 + $0x60] sm:$0xff] %vm1721, %v1701
      %1735 = vst.msk [vmem:[#allocation3 + $0x68] sm:$0xff] %vm1721, %v1702
      %1736 = vst.msk [vmem:[#allocation3 + $0x70] sm:$0xff] %vm1721, %v1703
      %1737 = vst.msk [vmem:[#allocation3 + $0x78] sm:$0xff] %vm1721, %v1704
      %1738 = vst.msk [vmem:[#allocation3 + $0x80] sm:$0xff] %vm1721, %v1705
      %1739 = vst.msk [vmem:[#allocation3 + $0x88] sm:$0xff] %vm1721, %v1706
      %1740 = vst.msk [vmem:[#allocation3 + $0x90] sm:$0xff] %vm1721, %v1707
      %1741 = vst.msk [vmem:[#allocation3 + $0x98] sm:$0xff] %vm1721, %v1708
      %1742 = vst.msk [vmem:[#allocation3 + $0xa0] sm:$0xff] %vm1721, %v1709
      %1743 = vst.msk [vmem:[#allocation3 + $0xa8] sm:$0xff] %vm1721, %v1710
      %1744 = vst.msk [vmem:[#allocation3 + $0xb0] sm:$0xff] %vm1721, %v1711
      %1745 = vst.msk [vmem:[#allocation3 + $0xb8] sm:$0xff] %vm1721, %v1712
      %1746 = vst.msk [vmem:[#allocation3 + $0xc0] sm:$0xff] %vm1721, %v1713
      %1747 = vst.msk [vmem:[#allocation3 + $0xc8] sm:$0xff] %vm1721, %v1714
      %1748 = vst.msk [vmem:[#allocation3 + $0xd0] sm:$0xff] %vm1721, %v1715
      %1749 = vst.msk [vmem:[#allocation3 + $0xd8] sm:$0xff] %vm1721, %v1716
      %1750 = vst.msk [vmem:[#allocation3 + $0xe0] sm:$0xff] %vm1721, %v1717
      %1751 = vst.msk [vmem:[#allocation3 + $0xe8] sm:$0xff] %vm1721, %v1718
      %1752 = vst.msk [vmem:[#allocation3 + $0xf0] sm:$0xff] %vm1721, %v1719
      %1753 = vst.msk [vmem:[#allocation3 + $0xf8] sm:$0xff] %vm1721, %v1720
      %v1754 = vld [vmem:[#allocation4] sm:$0xff]
      %v1755 = vld [vmem:[#allocation4 + $0x8] sm:$0xff]
      %v1756 = vld [vmem:[#allocation4 + $0x10] sm:$0xff]
      %v1757 = vld [vmem:[#allocation4 + $0x18] sm:$0xff]
      %v1758 = vld [vmem:[#allocation4 + $0x20] sm:$0xff]
      %v1759 = vld [vmem:[#allocation4 + $0x28] sm:$0xff]
      %v1760 = vld [vmem:[#allocation4 + $0x30] sm:$0xff]
      %v1761 = vld [vmem:[#allocation4 + $0x38] sm:$0xff]
      %v1762 = vld [vmem:[#allocation4 + $0x40] sm:$0xff]
      %v1763 = vld [vmem:[#allocation4 + $0x48] sm:$0xff]
      %v1764 = vld [vmem:[#allocation4 + $0x50] sm:$0xff]
      %v1765 = vld [vmem:[#allocation4 + $0x58] sm:$0xff]
      %v1766 = vld [vmem:[#allocation4 + $0x60] sm:$0xff]
      %v1767 = vld [vmem:[#allocation4 + $0x68] sm:$0xff]
      %v1768 = vld [vmem:[#allocation4 + $0x70] sm:$0xff]
      %v1769 = vld [vmem:[#allocation4 + $0x78] sm:$0xff]
      %v1770 = vld [vmem:[#allocation4 + $0x80] sm:$0xff]
      %v1771 = vld [vmem:[#allocation4 + $0x88] sm:$0xff]
      %v1772 = vld [vmem:[#allocation4 + $0x90] sm:$0xff]
      %v1773 = vld [vmem:[#allocation4 + $0x98] sm:$0xff]
      %v1774 = vld [vmem:[#allocation4 + $0xa0] sm:$0xff]
      %v1775 = vld [vmem:[#allocation4 + $0xa8] sm:$0xff]
      %v1776 = vld [vmem:[#allocation4 + $0xb0] sm:$0xff]
      %v1777 = vld [vmem:[#allocation4 + $0xb8] sm:$0xff]
      %v1778 = vld [vmem:[#allocation4 + $0xc0] sm:$0xff]
      %v1779 = vld [vmem:[#allocation4 + $0xc8] sm:$0xff]
      %v1780 = vld [vmem:[#allocation4 + $0xd0] sm:$0xff]
      %v1781 = vld [vmem:[#allocation4 + $0xd8] sm:$0xff]
      %v1782 = vld [vmem:[#allocation4 + $0xe0] sm:$0xff]
      %v1783 = vld [vmem:[#allocation4 + $0xe8] sm:$0xff]
      %v1784 = vld [vmem:[#allocation4 + $0xf0] sm:$0xff]
      %v1785 = vld [vmem:[#allocation4 + $0xf8] sm:$0xff]
      %1787 = vset.pattern.permute.xlu0 0
      %1788 = vperm.xlu0 %1787, %v1114
      %v1789 = vpop.permute.xlu0 %1788
      %1792 = vset.pattern.permute.xlu0 0
      %1793 = vperm.xlu0 %1792, %v1116
      %v1794 = vpop.permute.xlu0 %1793
      %1797 = vset.pattern.permute.xlu0 0
      %1798 = vperm.xlu0 %1797, %v1118
      %v1799 = vpop.permute.xlu0 %1798
      %1802 = vset.pattern.permute.xlu0 0
      %1803 = vperm.xlu0 %1802, %v1120
      %v1804 = vpop.permute.xlu0 %1803
      %1807 = vset.pattern.permute.xlu0 0
      %1808 = vperm.xlu0 %1807, %v1122
      %v1809 = vpop.permute.xlu0 %1808
      %1812 = vset.pattern.permute.xlu0 0
      %1813 = vperm.xlu0 %1812, %v1124
      %v1814 = vpop.permute.xlu0 %1813
      %1817 = vset.pattern.permute.xlu0 0
      %1818 = vperm.xlu0 %1817, %v1126
      %v1819 = vpop.permute.xlu0 %1818
      %1822 = vset.pattern.permute.xlu0 0
      %1823 = vperm.xlu0 %1822, %v1128
      %v1824 = vpop.permute.xlu0 %1823
      %1827 = vset.pattern.permute.xlu0 0
      %1828 = vperm.xlu0 %1827, %v1130
      %v1829 = vpop.permute.xlu0 %1828
      %1832 = vset.pattern.permute.xlu0 0
      %1833 = vperm.xlu0 %1832, %v1132
      %v1834 = vpop.permute.xlu0 %1833
      %1837 = vset.pattern.permute.xlu0 0
      %1838 = vperm.xlu0 %1837, %v1134
      %v1839 = vpop.permute.xlu0 %1838
      %1842 = vset.pattern.permute.xlu0 0
      %1843 = vperm.xlu0 %1842, %v1136
      %v1844 = vpop.permute.xlu0 %1843
      %1847 = vset.pattern.permute.xlu0 0
      %1848 = vperm.xlu0 %1847, %v1138
      %v1849 = vpop.permute.xlu0 %1848
      %1852 = vset.pattern.permute.xlu0 0
      %1853 = vperm.xlu0 %1852, %v1140
      %v1854 = vpop.permute.xlu0 %1853
      %1857 = vset.pattern.permute.xlu0 0
      %1858 = vperm.xlu0 %1857, %v1142
      %v1859 = vpop.permute.xlu0 %1858
      %1862 = vset.pattern.permute.xlu0 0
      %1863 = vperm.xlu0 %1862, %v1144
      %v1864 = vpop.permute.xlu0 %1863
      %1867 = vset.pattern.permute.xlu0 0
      %1868 = vperm.xlu0 %1867, %v1146
      %v1869 = vpop.permute.xlu0 %1868
      %1872 = vset.pattern.permute.xlu0 0
      %1873 = vperm.xlu0 %1872, %v1148
      %v1874 = vpop.permute.xlu0 %1873
      %1877 = vset.pattern.permute.xlu0 0
      %1878 = vperm.xlu0 %1877, %v1150
      %v1879 = vpop.permute.xlu0 %1878
      %1882 = vset.pattern.permute.xlu0 0
      %1883 = vperm.xlu0 %1882, %v1152
      %v1884 = vpop.permute.xlu0 %1883
      %1887 = vset.pattern.permute.xlu0 0
      %1888 = vperm.xlu0 %1887, %v1154
      %v1889 = vpop.permute.xlu0 %1888
      %1892 = vset.pattern.permute.xlu0 0
      %1893 = vperm.xlu0 %1892, %v1156
      %v1894 = vpop.permute.xlu0 %1893
      %1897 = vset.pattern.permute.xlu0 0
      %1898 = vperm.xlu0 %1897, %v1158
      %v1899 = vpop.permute.xlu0 %1898
      %1902 = vset.pattern.permute.xlu0 0
      %1903 = vperm.xlu0 %1902, %v1160
      %v1904 = vpop.permute.xlu0 %1903
      %1907 = vset.pattern.permute.xlu0 0
      %1908 = vperm.xlu0 %1907, %v1162
      %v1909 = vpop.permute.xlu0 %1908
      %1912 = vset.pattern.permute.xlu0 0
      %1913 = vperm.xlu0 %1912, %v1164
      %v1914 = vpop.permute.xlu0 %1913
      %1917 = vset.pattern.permute.xlu0 0
      %1918 = vperm.xlu0 %1917, %v1166
      %v1919 = vpop.permute.xlu0 %1918
      %1922 = vset.pattern.permute.xlu0 0
      %1923 = vperm.xlu0 %1922, %v1168
      %v1924 = vpop.permute.xlu0 %1923
      %1927 = vset.pattern.permute.xlu0 0
      %1928 = vperm.xlu0 %1927, %v1170
      %v1929 = vpop.permute.xlu0 %1928
      %1932 = vset.pattern.permute.xlu0 0
      %1933 = vperm.xlu0 %1932, %v1172
      %v1934 = vpop.permute.xlu0 %1933
      %1937 = vset.pattern.permute.xlu0 0
      %1938 = vperm.xlu0 %1937, %v1174
      %v1939 = vpop.permute.xlu0 %1938
      %1942 = vset.pattern.permute.xlu0 0
      %1943 = vperm.xlu0 %1942, %v1176
      %v1944 = vpop.permute.xlu0 %1943
      %v1946 = vmul.f32 %v1789, %v1754
      %v1947 = vmul.f32 %v1794, %v1755
      %v1948 = vmul.f32 %v1799, %v1756
      %v1949 = vmul.f32 %v1804, %v1757
      %v1950 = vmul.f32 %v1809, %v1758
      %v1951 = vmul.f32 %v1814, %v1759
      %v1952 = vmul.f32 %v1819, %v1760
      %v1953 = vmul.f32 %v1824, %v1761
      %v1954 = vmul.f32 %v1829, %v1762
      %v1955 = vmul.f32 %v1834, %v1763
      %v1956 = vmul.f32 %v1839, %v1764
      %v1957 = vmul.f32 %v1844, %v1765
      %v1958 = vmul.f32 %v1849, %v1766
      %v1959 = vmul.f32 %v1854, %v1767
      %v1960 = vmul.f32 %v1859, %v1768
      %v1961 = vmul.f32 %v1864, %v1769
      %v1962 = vmul.f32 %v1869, %v1770
      %v1963 = vmul.f32 %v1874, %v1771
      %v1964 = vmul.f32 %v1879, %v1772
      %v1965 = vmul.f32 %v1884, %v1773
      %v1966 = vmul.f32 %v1889, %v1774
      %v1967 = vmul.f32 %v1894, %v1775
      %v1968 = vmul.f32 %v1899, %v1776
      %v1969 = vmul.f32 %v1904, %v1777
      %v1970 = vmul.f32 %v1909, %v1778
      %v1971 = vmul.f32 %v1914, %v1779
      %v1972 = vmul.f32 %v1919, %v1780
      %v1973 = vmul.f32 %v1924, %v1781
      %v1974 = vmul.f32 %v1929, %v1782
      %v1975 = vmul.f32 %v1934, %v1783
      %v1976 = vmul.f32 %v1939, %v1784
      %v1977 = vmul.f32 %v1944, %v1785
      %v1978 = vpack.c.bf16 %v1406, %v1402
      %v1979 = vpack.c.bf16 %v1408, %v1404
      %v1980 = vpack.c.bf16 %v1414, %v1410
      %v1981 = vpack.c.bf16 %v1416, %v1412
      %v1982 = vpack.c.bf16 %v1422, %v1418
      %v1983 = vpack.c.bf16 %v1424, %v1420
      %v1984 = vpack.c.bf16 %v1430, %v1426
      %v1985 = vpack.c.bf16 %v1432, %v1428
      %v1986 = vpack.c.bf16 %v1438, %v1434
      %v1987 = vpack.c.bf16 %v1440, %v1436
      %v1988 = vpack.c.bf16 %v1446, %v1442
      %v1989 = vpack.c.bf16 %v1448, %v1444
      %v1990 = vpack.c.bf16 %v1454, %v1450
      %v1991 = vpack.c.bf16 %v1456, %v1452
      %v1992 = vpack.c.bf16 %v1462, %v1458
      %v1993 = vpack.c.bf16 %v1464, %v1460
      %v1994 = vpack.c.bf16 %v1470, %v1466
      %v1995 = vpack.c.bf16 %v1472, %v1468
      %v1996 = vpack.c.bf16 %v1478, %v1474
      %v1997 = vpack.c.bf16 %v1480, %v1476
      %v1998 = vpack.c.bf16 %v1486, %v1482
      %v1999 = vpack.c.bf16 %v1488, %v1484
      %v2000 = vpack.c.bf16 %v1494, %v1490
      %v2001 = vpack.c.bf16 %v1496, %v1492
      %v2002 = vpack.c.bf16 %v1502, %v1498
      %v2003 = vpack.c.bf16 %v1504, %v1500
      %v2004 = vpack.c.bf16 %v1510, %v1506
      %v2005 = vpack.c.bf16 %v1512, %v1508
      %v2006 = vpack.c.bf16 %v1518, %v1514
      %v2007 = vpack.c.bf16 %v1520, %v1516
      %v2008 = vpack.c.bf16 %v1526, %v1522
      %v2009 = vpack.c.bf16 %v1528, %v1524
      %v2026 = vunpack.c.l.b16 %v551
      %v2027 = vunpack.c.h.b16 %v551
      %v2028 = vunpack.c.l.b16 %v552
      %v2029 = vunpack.c.h.b16 %v552
      %v2030 = vunpack.c.l.b16 %v553
      %v2031 = vunpack.c.h.b16 %v553
      %v2032 = vunpack.c.l.b16 %v554
      %v2033 = vunpack.c.h.b16 %v554
      %v2034 = vunpack.c.l.b16 %v555
      %v2035 = vunpack.c.h.b16 %v555
      %v2036 = vunpack.c.l.b16 %v556
      %v2037 = vunpack.c.h.b16 %v556
      %v2038 = vunpack.c.l.b16 %v557
      %v2039 = vunpack.c.h.b16 %v557
      %v2040 = vunpack.c.l.b16 %v558
      %v2041 = vunpack.c.h.b16 %v558
      %v2042 = vunpack.c.l.b16 %v559
      %v2043 = vunpack.c.h.b16 %v559
      %v2044 = vunpack.c.l.b16 %v560
      %v2045 = vunpack.c.h.b16 %v560
      %v2046 = vunpack.c.l.b16 %v561
      %v2047 = vunpack.c.h.b16 %v561
      %v2048 = vunpack.c.l.b16 %v562
      %v2049 = vunpack.c.h.b16 %v562
      %v2050 = vunpack.c.l.b16 %v563
      %v2051 = vunpack.c.h.b16 %v563
      %v2052 = vunpack.c.l.b16 %v564
      %v2053 = vunpack.c.h.b16 %v564
      %v2054 = vunpack.c.l.b16 %v565
      %v2055 = vunpack.c.h.b16 %v565
      %v2056 = vunpack.c.l.b16 %v566
      %v2057 = vunpack.c.h.b16 %v566
      %v2058 = vpack.c.b16 %v2028, %v2026
      %v2059 = vpack.c.b16 %v2029, %v2027
      %v2060 = vpack.c.b16 %v2032, %v2030
      %v2061 = vpack.c.b16 %v2033, %v2031
      %v2062 = vpack.c.b16 %v2036, %v2034
      %v2063 = vpack.c.b16 %v2037, %v2035
      %v2064 = vpack.c.b16 %v2040, %v2038
      %v2065 = vpack.c.b16 %v2041, %v2039
      %v2066 = vpack.c.b16 %v2044, %v2042
      %v2067 = vpack.c.b16 %v2045, %v2043
      %v2068 = vpack.c.b16 %v2048, %v2046
      %v2069 = vpack.c.b16 %v2049, %v2047
      %v2070 = vpack.c.b16 %v2052, %v2050
      %v2071 = vpack.c.b16 %v2053, %v2051
      %v2072 = vpack.c.b16 %v2056, %v2054
      %v2073 = vpack.c.b16 %v2057, %v2055
      %2090 = vmatpush.bf16.xpose.msra.mxu0 %v2072
      %2091 = vmatpush.bf16.xpose.msra.mxu0 %v2070
      %2092 = vmatpush.bf16.xpose.msra.mxu0 %v2068
      %2093 = vmatpush.bf16.xpose.msra.mxu0 %v2066
      %2094 = vmatpush.bf16.xpose.msra.mxu0 %v2064
      %2095 = vmatpush.bf16.xpose.msra.mxu0 %v2062
      %2096 = vmatpush.bf16.xpose.msra.mxu0 %v2060
      %2097 = vmatpush.bf16.xpose.msra.mxu0 %v2058
      %2098 = vmatmul.bf16.gmra.mxu0 %v1978
      %v2099 = vpop.f32.mrf.mxu0
      %v2100 = vadd.f32 0.0, %v2099
      %v2101 = vpop.f32.mrf.mxu0
      %v2102 = vadd.f32 0.0, %v2101
      %2103 = vmatmul.bf16.gmra.mxu0 %v1980
      %v2104 = vpop.f32.mrf.mxu0
      %v2105 = vadd.f32 0.0, %v2104
      %v2106 = vpop.f32.mrf.mxu0
      %v2107 = vadd.f32 0.0, %v2106
      %2108 = vmatmul.bf16.gmra.mxu0 %v1982
      %v2109 = vpop.f32.mrf.mxu0
      %v2110 = vadd.f32 0.0, %v2109
      %v2111 = vpop.f32.mrf.mxu0
      %v2112 = vadd.f32 0.0, %v2111
      %2113 = vmatmul.bf16.gmra.mxu0 %v1984
      %v2114 = vpop.f32.mrf.mxu0
      %v2115 = vadd.f32 0.0, %v2114
      %v2116 = vpop.f32.mrf.mxu0
      %v2117 = vadd.f32 0.0, %v2116
      %2118 = vmatmul.bf16.gmra.mxu0 %v1986
      %v2119 = vpop.f32.mrf.mxu0
      %v2120 = vadd.f32 0.0, %v2119
      %v2121 = vpop.f32.mrf.mxu0
      %v2122 = vadd.f32 0.0, %v2121
      %2123 = vmatmul.bf16.gmra.mxu0 %v1988
      %v2124 = vpop.f32.mrf.mxu0
      %v2125 = vadd.f32 0.0, %v2124
      %v2126 = vpop.f32.mrf.mxu0
      %v2127 = vadd.f32 0.0, %v2126
      %2128 = vmatmul.bf16.gmra.mxu0 %v1990
      %v2129 = vpop.f32.mrf.mxu0
      %v2130 = vadd.f32 0.0, %v2129
      %v2131 = vpop.f32.mrf.mxu0
      %v2132 = vadd.f32 0.0, %v2131
      %2133 = vmatmul.bf16.gmra.mxu0 %v1992
      %v2134 = vpop.f32.mrf.mxu0
      %v2135 = vadd.f32 0.0, %v2134
      %v2136 = vpop.f32.mrf.mxu0
      %v2137 = vadd.f32 0.0, %v2136
      %2138 = vmatmul.bf16.gmra.mxu0 %v1994
      %v2139 = vpop.f32.mrf.mxu0
      %v2140 = vadd.f32 0.0, %v2139
      %v2141 = vpop.f32.mrf.mxu0
      %v2142 = vadd.f32 0.0, %v2141
      %2143 = vmatmul.bf16.gmra.mxu0 %v1996
      %v2144 = vpop.f32.mrf.mxu0
      %v2145 = vadd.f32 0.0, %v2144
      %v2146 = vpop.f32.mrf.mxu0
      %v2147 = vadd.f32 0.0, %v2146
      %2148 = vmatmul.bf16.gmra.mxu0 %v1998
      %v2149 = vpop.f32.mrf.mxu0
      %v2150 = vadd.f32 0.0, %v2149
      %v2151 = vpop.f32.mrf.mxu0
      %v2152 = vadd.f32 0.0, %v2151
      %2153 = vmatmul.bf16.gmra.mxu0 %v2000
      %v2154 = vpop.f32.mrf.mxu0
      %v2155 = vadd.f32 0.0, %v2154
      %v2156 = vpop.f32.mrf.mxu0
      %v2157 = vadd.f32 0.0, %v2156
      %2158 = vmatmul.bf16.gmra.mxu0 %v2002
      %v2159 = vpop.f32.mrf.mxu0
      %v2160 = vadd.f32 0.0, %v2159
      %v2161 = vpop.f32.mrf.mxu0
      %v2162 = vadd.f32 0.0, %v2161
      %2163 = vmatmul.bf16.gmra.mxu0 %v2004
      %v2164 = vpop.f32.mrf.mxu0
      %v2165 = vadd.f32 0.0, %v2164
      %v2166 = vpop.f32.mrf.mxu0
      %v2167 = vadd.f32 0.0, %v2166
      %2168 = vmatmul.bf16.gmra.mxu0 %v2006
      %v2169 = vpop.f32.mrf.mxu0
      %v2170 = vadd.f32 0.0, %v2169
      %v2171 = vpop.f32.mrf.mxu0
      %v2172 = vadd.f32 0.0, %v2171
      %2173 = vmatmul.bf16.gmra.mxu0 %v2008
      %v2174 = vpop.f32.mrf.mxu0
      %v2175 = vadd.f32 0.0, %v2174
      %v2176 = vpop.f32.mrf.mxu0
      %v2177 = vadd.f32 0.0, %v2176
      %2178 = vdwg.mxu0
      %2179 = vmatpush.bf16.xpose.msra.mxu0 %v2073
      %2180 = vmatpush.bf16.xpose.msra.mxu0 %v2071
      %2181 = vmatpush.bf16.xpose.msra.mxu0 %v2069
      %2182 = vmatpush.bf16.xpose.msra.mxu0 %v2067
      %2183 = vmatpush.bf16.xpose.msra.mxu0 %v2065
      %2184 = vmatpush.bf16.xpose.msra.mxu0 %v2063
      %2185 = vmatpush.bf16.xpose.msra.mxu0 %v2061
      %2186 = vmatpush.bf16.xpose.msra.mxu0 %v2059
      %2187 = vmatmul.bf16.gmra.mxu0 %v1979
      %v2188 = vpop.f32.mrf.mxu0
      %v2189 = vadd.f32 %v2100, %v2188
      %v2190 = vpop.f32.mrf.mxu0
      %v2191 = vadd.f32 %v2102, %v2190
      %2192 = vmatmul.bf16.gmra.mxu0 %v1981
      %v2193 = vpop.f32.mrf.mxu0
      %v2194 = vadd.f32 %v2105, %v2193
      %v2195 = vpop.f32.mrf.mxu0
      %v2196 = vadd.f32 %v2107, %v2195
      %2197 = vmatmul.bf16.gmra.mxu0 %v1983
      %v2198 = vpop.f32.mrf.mxu0
      %v2199 = vadd.f32 %v2110, %v2198
      %v2200 = vpop.f32.mrf.mxu0
      %v2201 = vadd.f32 %v2112, %v2200
      %2202 = vmatmul.bf16.gmra.mxu0 %v1985
      %v2203 = vpop.f32.mrf.mxu0
      %v2204 = vadd.f32 %v2115, %v2203
      %v2205 = vpop.f32.mrf.mxu0
      %v2206 = vadd.f32 %v2117, %v2205
      %2207 = vmatmul.bf16.gmra.mxu0 %v1987
      %v2208 = vpop.f32.mrf.mxu0
      %v2209 = vadd.f32 %v2120, %v2208
      %v2210 = vpop.f32.mrf.mxu0
      %v2211 = vadd.f32 %v2122, %v2210
      %2212 = vmatmul.bf16.gmra.mxu0 %v1989
      %v2213 = vpop.f32.mrf.mxu0
      %v2214 = vadd.f32 %v2125, %v2213
      %v2215 = vpop.f32.mrf.mxu0
      %v2216 = vadd.f32 %v2127, %v2215
      %2217 = vmatmul.bf16.gmra.mxu0 %v1991
      %v2218 = vpop.f32.mrf.mxu0
      %v2219 = vadd.f32 %v2130, %v2218
      %v2220 = vpop.f32.mrf.mxu0
      %v2221 = vadd.f32 %v2132, %v2220
      %2222 = vmatmul.bf16.gmra.mxu0 %v1993
      %v2223 = vpop.f32.mrf.mxu0
      %v2224 = vadd.f32 %v2135, %v2223
      %v2225 = vpop.f32.mrf.mxu0
      %v2226 = vadd.f32 %v2137, %v2225
      %2227 = vmatmul.bf16.gmra.mxu0 %v1995
      %v2228 = vpop.f32.mrf.mxu0
      %v2229 = vadd.f32 %v2140, %v2228
      %v2230 = vpop.f32.mrf.mxu0
      %v2231 = vadd.f32 %v2142, %v2230
      %2232 = vmatmul.bf16.gmra.mxu0 %v1997
      %v2233 = vpop.f32.mrf.mxu0
      %v2234 = vadd.f32 %v2145, %v2233
      %v2235 = vpop.f32.mrf.mxu0
      %v2236 = vadd.f32 %v2147, %v2235
      %2237 = vmatmul.bf16.gmra.mxu0 %v1999
      %v2238 = vpop.f32.mrf.mxu0
      %v2239 = vadd.f32 %v2150, %v2238
      %v2240 = vpop.f32.mrf.mxu0
      %v2241 = vadd.f32 %v2152, %v2240
      %2242 = vmatmul.bf16.gmra.mxu0 %v2001
      %v2243 = vpop.f32.mrf.mxu0
      %v2244 = vadd.f32 %v2155, %v2243
      %v2245 = vpop.f32.mrf.mxu0
      %v2246 = vadd.f32 %v2157, %v2245
      %2247 = vmatmul.bf16.gmra.mxu0 %v2003
      %v2248 = vpop.f32.mrf.mxu0
      %v2249 = vadd.f32 %v2160, %v2248
      %v2250 = vpop.f32.mrf.mxu0
      %v2251 = vadd.f32 %v2162, %v2250
      %2252 = vmatmul.bf16.gmra.mxu0 %v2005
      %v2253 = vpop.f32.mrf.mxu0
      %v2254 = vadd.f32 %v2165, %v2253
      %v2255 = vpop.f32.mrf.mxu0
      %v2256 = vadd.f32 %v2167, %v2255
      %2257 = vmatmul.bf16.gmra.mxu0 %v2007
      %v2258 = vpop.f32.mrf.mxu0
      %v2259 = vadd.f32 %v2170, %v2258
      %v2260 = vpop.f32.mrf.mxu0
      %v2261 = vadd.f32 %v2172, %v2260
      %2262 = vmatmul.bf16.gmra.mxu0 %v2009
      %v2263 = vpop.f32.mrf.mxu0
      %v2264 = vadd.f32 %v2175, %v2263
      %v2265 = vpop.f32.mrf.mxu0
      %v2266 = vadd.f32 %v2177, %v2265
      %2267 = vdwg.mxu0
      %v2268 = vadd.f32 %v1946, %v2189
      %v2269 = vadd.f32 %v1947, %v2191
      %v2270 = vadd.f32 %v1948, %v2194
      %v2271 = vadd.f32 %v1949, %v2196
      %v2272 = vadd.f32 %v1950, %v2199
      %v2273 = vadd.f32 %v1951, %v2201
      %v2274 = vadd.f32 %v1952, %v2204
      %v2275 = vadd.f32 %v1953, %v2206
      %v2276 = vadd.f32 %v1954, %v2209
      %v2277 = vadd.f32 %v1955, %v2211
      %v2278 = vadd.f32 %v1956, %v2214
      %v2279 = vadd.f32 %v1957, %v2216
      %v2280 = vadd.f32 %v1958, %v2219
      %v2281 = vadd.f32 %v1959, %v2221
      %v2282 = vadd.f32 %v1960, %v2224
      %v2283 = vadd.f32 %v1961, %v2226
      %v2284 = vadd.f32 %v1962, %v2229
      %v2285 = vadd.f32 %v1963, %v2231
      %v2286 = vadd.f32 %v1964, %v2234
      %v2287 = vadd.f32 %v1965, %v2236
      %v2288 = vadd.f32 %v1966, %v2239
      %v2289 = vadd.f32 %v1967, %v2241
      %v2290 = vadd.f32 %v1968, %v2244
      %v2291 = vadd.f32 %v1969, %v2246
      %v2292 = vadd.f32 %v1970, %v2249
      %v2293 = vadd.f32 %v1971, %v2251
      %v2294 = vadd.f32 %v1972, %v2254
      %v2295 = vadd.f32 %v1973, %v2256
      %v2296 = vadd.f32 %v1974, %v2259
      %v2297 = vadd.f32 %v1975, %v2261
      %v2298 = vadd.f32 %v1976, %v2264
      %v2299 = vadd.f32 %v1977, %v2266
      %2300 = vst [vmem:[#allocation4] sm:$0xff] %v2268
      %2301 = vst [vmem:[#allocation4 + $0x8] sm:$0xff] %v2269
      %2302 = vst [vmem:[#allocation4 + $0x10] sm:$0xff] %v2270
      %2303 = vst [vmem:[#allocation4 + $0x18] sm:$0xff] %v2271
      %2304 = vst [vmem:[#allocation4 + $0x20] sm:$0xff] %v2272
      %2305 = vst [vmem:[#allocation4 + $0x28] sm:$0xff] %v2273
      %2306 = vst [vmem:[#allocation4 + $0x30] sm:$0xff] %v2274
      %2307 = vst [vmem:[#allocation4 + $0x38] sm:$0xff] %v2275
      %2308 = vst [vmem:[#allocation4 + $0x40] sm:$0xff] %v2276
      %2309 = vst [vmem:[#allocation4 + $0x48] sm:$0xff] %v2277
      %2310 = vst [vmem:[#allocation4 + $0x50] sm:$0xff] %v2278
      %2311 = vst [vmem:[#allocation4 + $0x58] sm:$0xff] %v2279
      %2312 = vst [vmem:[#allocation4 + $0x60] sm:$0xff] %v2280
      %2313 = vst [vmem:[#allocation4 + $0x68] sm:$0xff] %v2281
      %2314 = vst [vmem:[#allocation4 + $0x70] sm:$0xff] %v2282
      %2315 = vst [vmem:[#allocation4 + $0x78] sm:$0xff] %v2283
      %2316 = vst [vmem:[#allocation4 + $0x80] sm:$0xff] %v2284
      %2317 = vst [vmem:[#allocation4 + $0x88] sm:$0xff] %v2285
      %2318 = vst [vmem:[#allocation4 + $0x90] sm:$0xff] %v2286
      %2319 = vst [vmem:[#allocation4 + $0x98] sm:$0xff] %v2287
      %2320 = vst [vmem:[#allocation4 + $0xa0] sm:$0xff] %v2288
      %2321 = vst [vmem:[#allocation4 + $0xa8] sm:$0xff] %v2289
      %2322 = vst [vmem:[#allocation4 + $0xb0] sm:$0xff] %v2290
      %2323 = vst [vmem:[#allocation4 + $0xb8] sm:$0xff] %v2291
      %2324 = vst [vmem:[#allocation4 + $0xc0] sm:$0xff] %v2292
      %2325 = vst [vmem:[#allocation4 + $0xc8] sm:$0xff] %v2293
      %2326 = vst [vmem:[#allocation4 + $0xd0] sm:$0xff] %v2294
      %2327 = vst [vmem:[#allocation4 + $0xd8] sm:$0xff] %v2295
      %2328 = vst [vmem:[#allocation4 + $0xe0] sm:$0xff] %v2296
      %2329 = vst [vmem:[#allocation4 + $0xe8] sm:$0xff] %v2297
      %2330 = vst [vmem:[#allocation4 + $0xf0] sm:$0xff] %v2298
      %2331 = vst [vmem:[#allocation4 + $0xf8] sm:$0xff] %v2299
      %2332 = vst.msk [vmem:[#allocation2] sm:$0xff] %vm1721, %v1049
      %2333 = vst.msk [vmem:[#allocation2 + $0x8] sm:$0xff] %vm1721, %v1050
      %2334 = vst.msk [vmem:[#allocation2 + $0x10] sm:$0xff] %vm1721, %v1051
      %2335 = vst.msk [vmem:[#allocation2 + $0x18] sm:$0xff] %vm1721, %v1052
      %2336 = vst.msk [vmem:[#allocation2 + $0x20] sm:$0xff] %vm1721, %v1053
      %2337 = vst.msk [vmem:[#allocation2 + $0x28] sm:$0xff] %vm1721, %v1054
      %2338 = vst.msk [vmem:[#allocation2 + $0x30] sm:$0xff] %vm1721, %v1055
      %2339 = vst.msk [vmem:[#allocation2 + $0x38] sm:$0xff] %vm1721, %v1056
      %2340 = vst.msk [vmem:[#allocation2 + $0x40] sm:$0xff] %vm1721, %v1057
      %2341 = vst.msk [vmem:[#allocation2 + $0x48] sm:$0xff] %vm1721, %v1058
      %2342 = vst.msk [vmem:[#allocation2 + $0x50] sm:$0xff] %vm1721, %v1059
      %2343 = vst.msk [vmem:[#allocation2 + $0x58] sm:$0xff] %vm1721, %v1060
      %2344 = vst.msk [vmem:[#allocation2 + $0x60] sm:$0xff] %vm1721, %v1061
      %2345 = vst.msk [vmem:[#allocation2 + $0x68] sm:$0xff] %vm1721, %v1062
      %2346 = vst.msk [vmem:[#allocation2 + $0x70] sm:$0xff] %vm1721, %v1063
      %2347 = vst.msk [vmem:[#allocation2 + $0x78] sm:$0xff] %vm1721, %v1064
      %2348 = vst.msk [vmem:[#allocation2 + $0x80] sm:$0xff] %vm1721, %v1065
      %2349 = vst.msk [vmem:[#allocation2 + $0x88] sm:$0xff] %vm1721, %v1066
      %2350 = vst.msk [vmem:[#allocation2 + $0x90] sm:$0xff] %vm1721, %v1067
      %2351 = vst.msk [vmem:[#allocation2 + $0x98] sm:$0xff] %vm1721, %v1068
      %2352 = vst.msk [vmem:[#allocation2 + $0xa0] sm:$0xff] %vm1721, %v1069
      %2353 = vst.msk [vmem:[#allocation2 + $0xa8] sm:$0xff] %vm1721, %v1070
      %2354 = vst.msk [vmem:[#allocation2 + $0xb0] sm:$0xff] %vm1721, %v1071
      %2355 = vst.msk [vmem:[#allocation2 + $0xb8] sm:$0xff] %vm1721, %v1072
      %2356 = vst.msk [vmem:[#allocation2 + $0xc0] sm:$0xff] %vm1721, %v1073
      %2357 = vst.msk [vmem:[#allocation2 + $0xc8] sm:$0xff] %vm1721, %v1074
      %2358 = vst.msk [vmem:[#allocation2 + $0xd0] sm:$0xff] %vm1721, %v1075
      %2359 = vst.msk [vmem:[#allocation2 + $0xd8] sm:$0xff] %vm1721, %v1076
      %2360 = vst.msk [vmem:[#allocation2 + $0xe0] sm:$0xff] %vm1721, %v1077
      %2361 = vst.msk [vmem:[#allocation2 + $0xe8] sm:$0xff] %vm1721, %v1078
      %2362 = vst.msk [vmem:[#allocation2 + $0xf0] sm:$0xff] %vm1721, %v1079
      %2363 = vst.msk [vmem:[#allocation2 + $0xf8] sm:$0xff] %vm1721, %v1080
      // Predicated region
      $region49: #{attn_block.5} parent=43 // pred_check
        %p2364 = pneg %p402
      $region50: #{attn_block.5} parent=43 // pred_check_branch
        %2366 = sbr.rel (%p2364) target = $region52
      $region51: #{attn_block.5} parent=43 // pred_region
        %v2367 = vld [vmem:[#allocation4] sm:$0xff]
        %v2368 = vld [vmem:[#allocation4 + $0x8] sm:$0xff]
        %v2369 = vld [vmem:[#allocation4 + $0x10] sm:$0xff]
        %v2370 = vld [vmem:[#allocation4 + $0x18] sm:$0xff]
        %v2371 = vld [vmem:[#allocation4 + $0x20] sm:$0xff]
        %v2372 = vld [vmem:[#allocation4 + $0x28] sm:$0xff]
        %v2373 = vld [vmem:[#allocation4 + $0x30] sm:$0xff]
        %v2374 = vld [vmem:[#allocation4 + $0x38] sm:$0xff]
        %v2375 = vld [vmem:[#allocation4 + $0x40] sm:$0xff]
        %v2376 = vld [vmem:[#allocation4 + $0x48] sm:$0xff]
        %v2377 = vld [vmem:[#allocation4 + $0x50] sm:$0xff]
        %v2378 = vld [vmem:[#allocation4 + $0x58] sm:$0xff]
        %v2379 = vld [vmem:[#allocation4 + $0x60] sm:$0xff]
        %v2380 = vld [vmem:[#allocation4 + $0x68] sm:$0xff]
        %v2381 = vld [vmem:[#allocation4 + $0x70] sm:$0xff]
        %v2382 = vld [vmem:[#allocation4 + $0x78] sm:$0xff]
        %v2383 = vld [vmem:[#allocation4 + $0x80] sm:$0xff]
        %v2384 = vld [vmem:[#allocation4 + $0x88] sm:$0xff]
        %v2385 = vld [vmem:[#allocation4 + $0x90] sm:$0xff]
        %v2386 = vld [vmem:[#allocation4 + $0x98] sm:$0xff]
        %v2387 = vld [vmem:[#allocation4 + $0xa0] sm:$0xff]
        %v2388 = vld [vmem:[#allocation4 + $0xa8] sm:$0xff]
        %v2389 = vld [vmem:[#allocation4 + $0xb0] sm:$0xff]
        %v2390 = vld [vmem:[#allocation4 + $0xb8] sm:$0xff]
        %v2391 = vld [vmem:[#allocation4 + $0xc0] sm:$0xff]
        %v2392 = vld [vmem:[#allocation4 + $0xc8] sm:$0xff]
        %v2393 = vld [vmem:[#allocation4 + $0xd0] sm:$0xff]
        %v2394 = vld [vmem:[#allocation4 + $0xd8] sm:$0xff]
        %v2395 = vld [vmem:[#allocation4 + $0xe0] sm:$0xff]
        %v2396 = vld [vmem:[#allocation4 + $0xe8] sm:$0xff]
        %v2397 = vld [vmem:[#allocation4 + $0xf0] sm:$0xff]
        %v2398 = vld [vmem:[#allocation4 + $0xf8] sm:$0xff]
        %v2399 = vld [vmem:[#allocation3] sm:$0xff]
        %v2400 = vld [vmem:[#allocation3 + $0x8] sm:$0xff]
        %v2401 = vld [vmem:[#allocation3 + $0x10] sm:$0xff]
        %v2402 = vld [vmem:[#allocation3 + $0x18] sm:$0xff]
        %v2403 = vld [vmem:[#allocation3 + $0x20] sm:$0xff]
        %v2404 = vld [vmem:[#allocation3 + $0x28] sm:$0xff]
        %v2405 = vld [vmem:[#allocation3 + $0x30] sm:$0xff]
        %v2406 = vld [vmem:[#allocation3 + $0x38] sm:$0xff]
        %v2407 = vld [vmem:[#allocation3 + $0x40] sm:$0xff]
        %v2408 = vld [vmem:[#allocation3 + $0x48] sm:$0xff]
        %v2409 = vld [vmem:[#allocation3 + $0x50] sm:$0xff]
        %v2410 = vld [vmem:[#allocation3 + $0x58] sm:$0xff]
        %v2411 = vld [vmem:[#allocation3 + $0x60] sm:$0xff]
        %v2412 = vld [vmem:[#allocation3 + $0x68] sm:$0xff]
        %v2413 = vld [vmem:[#allocation3 + $0x70] sm:$0xff]
        %v2414 = vld [vmem:[#allocation3 + $0x78] sm:$0xff]
        %v2415 = vld [vmem:[#allocation3 + $0x80] sm:$0xff]
        %v2416 = vld [vmem:[#allocation3 + $0x88] sm:$0xff]
        %v2417 = vld [vmem:[#allocation3 + $0x90] sm:$0xff]
        %v2418 = vld [vmem:[#allocation3 + $0x98] sm:$0xff]
        %v2419 = vld [vmem:[#allocation3 + $0xa0] sm:$0xff]
        %v2420 = vld [vmem:[#allocation3 + $0xa8] sm:$0xff]
        %v2421 = vld [vmem:[#allocation3 + $0xb0] sm:$0xff]
        %v2422 = vld [vmem:[#allocation3 + $0xb8] sm:$0xff]
        %v2423 = vld [vmem:[#allocation3 + $0xc0] sm:$0xff]
        %v2424 = vld [vmem:[#allocation3 + $0xc8] sm:$0xff]
        %v2425 = vld [vmem:[#allocation3 + $0xd0] sm:$0xff]
        %v2426 = vld [vmem:[#allocation3 + $0xd8] sm:$0xff]
        %v2427 = vld [vmem:[#allocation3 + $0xe0] sm:$0xff]
        %v2428 = vld [vmem:[#allocation3 + $0xe8] sm:$0xff]
        %v2429 = vld [vmem:[#allocation3 + $0xf0] sm:$0xff]
        %v2430 = vld [vmem:[#allocation3 + $0xf8] sm:$0xff]
        %v2431 = vrcp.pop %v2399
        %v2432 = vmul.f32 %v2399, %v2431
        %v2433 = vsub.f32 1.0, %v2432
        %v2434 = vmul.f32 %v2431, %v2433
        %v2435 = vadd.f32 %v2431, %v2434
        %vm2436 = vweird.f32 %v2399
        %vm2437 = vweird.f32 %v2431
        %vm2438 = vmor %vm2436, %vm2437
        %v2439 = vsel %vm2438, %v2431, %v2435
        %v2440 = vand.u32 2147483647, %v2399
        %vm2441 = vcmp.eq.f32.partialorder %v2440, 8.507059e+37
        %v2442 = vand.u32 %v2399, 2147483648
        %v2443 = vor.u32 1.1754944e-38, %v2442
        %v2444 = vsel %vm2441, %v2443, %v2439
        %v2445 = vrcp.pop %v2400
        %v2446 = vmul.f32 %v2400, %v2445
        %v2447 = vsub.f32 1.0, %v2446
        %v2448 = vmul.f32 %v2445, %v2447
        %v2449 = vadd.f32 %v2445, %v2448
        %vm2450 = vweird.f32 %v2400
        %vm2451 = vweird.f32 %v2445
        %vm2452 = vmor %vm2450, %vm2451
        %v2453 = vsel %vm2452, %v2445, %v2449
        %v2454 = vand.u32 2147483647, %v2400
        %vm2455 = vcmp.eq.f32.partialorder %v2454, 8.507059e+37
        %v2456 = vand.u32 %v2400, 2147483648
        %v2457 = vor.u32 1.1754944e-38, %v2456
        %v2458 = vsel %vm2455, %v2457, %v2453
        %v2459 = vrcp.pop %v2401
        %v2460 = vmul.f32 %v2401, %v2459
        %v2461 = vsub.f32 1.0, %v2460
        %v2462 = vmul.f32 %v2459, %v2461
        %v2463 = vadd.f32 %v2459, %v2462
        %vm2464 = vweird.f32 %v2401
        %vm2465 = vweird.f32 %v2459
        %vm2466 = vmor %vm2464, %vm2465
        %v2467 = vsel %vm2466, %v2459, %v2463
        %v2468 = vand.u32 2147483647, %v2401
        %vm2469 = vcmp.eq.f32.partialorder %v2468, 8.507059e+37
        %v2470 = vand.u32 %v2401, 2147483648
        %v2471 = vor.u32 1.1754944e-38, %v2470
        %v2472 = vsel %vm2469, %v2471, %v2467
        %v2473 = vrcp.pop %v2402
        %v2474 = vmul.f32 %v2402, %v2473
        %v2475 = vsub.f32 1.0, %v2474
        %v2476 = vmul.f32 %v2473, %v2475
        %v2477 = vadd.f32 %v2473, %v2476
        %vm2478 = vweird.f32 %v2402
        %vm2479 = vweird.f32 %v2473
        %vm2480 = vmor %vm2478, %vm2479
        %v2481 = vsel %vm2480, %v2473, %v2477
        %v2482 = vand.u32 2147483647, %v2402
        %vm2483 = vcmp.eq.f32.partialorder %v2482, 8.507059e+37
        %v2484 = vand.u32 %v2402, 2147483648
        %v2485 = vor.u32 1.1754944e-38, %v2484
        %v2486 = vsel %vm2483, %v2485, %v2481
        %v2487 = vrcp.pop %v2403
        %v2488 = vmul.f32 %v2403, %v2487
        %v2489 = vsub.f32 1.0, %v2488
        %v2490 = vmul.f32 %v2487, %v2489
        %v2491 = vadd.f32 %v2487, %v2490
        %vm2492 = vweird.f32 %v2403
        %vm2493 = vweird.f32 %v2487
        %vm2494 = vmor %vm2492, %vm2493
        %v2495 = vsel %vm2494, %v2487, %v2491
        %v2496 = vand.u32 2147483647, %v2403
        %vm2497 = vcmp.eq.f32.partialorder %v2496, 8.507059e+37
        %v2498 = vand.u32 %v2403, 2147483648
        %v2499 = vor.u32 1.1754944e-38, %v2498
        %v2500 = vsel %vm2497, %v2499, %v2495
        %v2501 = vrcp.pop %v2404
        %v2502 = vmul.f32 %v2404, %v2501
        %v2503 = vsub.f32 1.0, %v2502
        %v2504 = vmul.f32 %v2501, %v2503
        %v2505 = vadd.f32 %v2501, %v2504
        %vm2506 = vweird.f32 %v2404
        %vm2507 = vweird.f32 %v2501
        %vm2508 = vmor %vm2506, %vm2507
        %v2509 = vsel %vm2508, %v2501, %v2505
        %v2510 = vand.u32 2147483647, %v2404
        %vm2511 = vcmp.eq.f32.partialorder %v2510, 8.507059e+37
        %v2512 = vand.u32 %v2404, 2147483648
        %v2513 = vor.u32 1.1754944e-38, %v2512
        %v2514 = vsel %vm2511, %v2513, %v2509
        %v2515 = vrcp.pop %v2405
        %v2516 = vmul.f32 %v2405, %v2515
        %v2517 = vsub.f32 1.0, %v2516
        %v2518 = vmul.f32 %v2515, %v2517
        %v2519 = vadd.f32 %v2515, %v2518
        %vm2520 = vweird.f32 %v2405
        %vm2521 = vweird.f32 %v2515
        %vm2522 = vmor %vm2520, %vm2521
        %v2523 = vsel %vm2522, %v2515, %v2519
        %v2524 = vand.u32 2147483647, %v2405
        %vm2525 = vcmp.eq.f32.partialorder %v2524, 8.507059e+37
        %v2526 = vand.u32 %v2405, 2147483648
        %v2527 = vor.u32 1.1754944e-38, %v2526
        %v2528 = vsel %vm2525, %v2527, %v2523
        %v2529 = vrcp.pop %v2406
        %v2530 = vmul.f32 %v2406, %v2529
        %v2531 = vsub.f32 1.0, %v2530
        %v2532 = vmul.f32 %v2529, %v2531
        %v2533 = vadd.f32 %v2529, %v2532
        %vm2534 = vweird.f32 %v2406
        %vm2535 = vweird.f32 %v2529
        %vm2536 = vmor %vm2534, %vm2535
        %v2537 = vsel %vm2536, %v2529, %v2533
        %v2538 = vand.u32 2147483647, %v2406
        %vm2539 = vcmp.eq.f32.partialorder %v2538, 8.507059e+37
        %v2540 = vand.u32 %v2406, 2147483648
        %v2541 = vor.u32 1.1754944e-38, %v2540
        %v2542 = vsel %vm2539, %v2541, %v2537
        %v2543 = vrcp.pop %v2407
        %v2544 = vmul.f32 %v2407, %v2543
        %v2545 = vsub.f32 1.0, %v2544
        %v2546 = vmul.f32 %v2543, %v2545
        %v2547 = vadd.f32 %v2543, %v2546
        %vm2548 = vweird.f32 %v2407
        %vm2549 = vweird.f32 %v2543
        %vm2550 = vmor %vm2548, %vm2549
        %v2551 = vsel %vm2550, %v2543, %v2547
        %v2552 = vand.u32 2147483647, %v2407
        %vm2553 = vcmp.eq.f32.partialorder %v2552, 8.507059e+37
        %v2554 = vand.u32 %v2407, 2147483648
        %v2555 = vor.u32 1.1754944e-38, %v2554
        %v2556 = vsel %vm2553, %v2555, %v2551
        %v2557 = vrcp.pop %v2408
        %v2558 = vmul.f32 %v2408, %v2557
        %v2559 = vsub.f32 1.0, %v2558
        %v2560 = vmul.f32 %v2557, %v2559
        %v2561 = vadd.f32 %v2557, %v2560
        %vm2562 = vweird.f32 %v2408
        %vm2563 = vweird.f32 %v2557
        %vm2564 = vmor %vm2562, %vm2563
        %v2565 = vsel %vm2564, %v2557, %v2561
        %v2566 = vand.u32 2147483647, %v2408
        %vm2567 = vcmp.eq.f32.partialorder %v2566, 8.507059e+37
        %v2568 = vand.u32 %v2408, 2147483648
        %v2569 = vor.u32 1.1754944e-38, %v2568
        %v2570 = vsel %vm2567, %v2569, %v2565
        %v2571 = vrcp.pop %v2409
        %v2572 = vmul.f32 %v2409, %v2571
        %v2573 = vsub.f32 1.0, %v2572
        %v2574 = vmul.f32 %v2571, %v2573
        %v2575 = vadd.f32 %v2571, %v2574
        %vm2576 = vweird.f32 %v2409
        %vm2577 = vweird.f32 %v2571
        %vm2578 = vmor %vm2576, %vm2577
        %v2579 = vsel %vm2578, %v2571, %v2575
        %v2580 = vand.u32 2147483647, %v2409
        %vm2581 = vcmp.eq.f32.partialorder %v2580, 8.507059e+37
        %v2582 = vand.u32 %v2409, 2147483648
        %v2583 = vor.u32 1.1754944e-38, %v2582
        %v2584 = vsel %vm2581, %v2583, %v2579
        %v2585 = vrcp.pop %v2410
        %v2586 = vmul.f32 %v2410, %v2585
        %v2587 = vsub.f32 1.0, %v2586
        %v2588 = vmul.f32 %v2585, %v2587
        %v2589 = vadd.f32 %v2585, %v2588
        %vm2590 = vweird.f32 %v2410
        %vm2591 = vweird.f32 %v2585
        %vm2592 = vmor %vm2590, %vm2591
        %v2593 = vsel %vm2592, %v2585, %v2589
        %v2594 = vand.u32 2147483647, %v2410
        %vm2595 = vcmp.eq.f32.partialorder %v2594, 8.507059e+37
        %v2596 = vand.u32 %v2410, 2147483648
        %v2597 = vor.u32 1.1754944e-38, %v2596
        %v2598 = vsel %vm2595, %v2597, %v2593
        %v2599 = vrcp.pop %v2411
        %v2600 = vmul.f32 %v2411, %v2599
        %v2601 = vsub.f32 1.0, %v2600
        %v2602 = vmul.f32 %v2599, %v2601
        %v2603 = vadd.f32 %v2599, %v2602
        %vm2604 = vweird.f32 %v2411
        %vm2605 = vweird.f32 %v2599
        %vm2606 = vmor %vm2604, %vm2605
        %v2607 = vsel %vm2606, %v2599, %v2603
        %v2608 = vand.u32 2147483647, %v2411
        %vm2609 = vcmp.eq.f32.partialorder %v2608, 8.507059e+37
        %v2610 = vand.u32 %v2411, 2147483648
        %v2611 = vor.u32 1.1754944e-38, %v2610
        %v2612 = vsel %vm2609, %v2611, %v2607
        %v2613 = vrcp.pop %v2412
        %v2614 = vmul.f32 %v2412, %v2613
        %v2615 = vsub.f32 1.0, %v2614
        %v2616 = vmul.f32 %v2613, %v2615
        %v2617 = vadd.f32 %v2613, %v2616
        %vm2618 = vweird.f32 %v2412
        %vm2619 = vweird.f32 %v2613
        %vm2620 = vmor %vm2618, %vm2619
        %v2621 = vsel %vm2620, %v2613, %v2617
        %v2622 = vand.u32 2147483647, %v2412
        %vm2623 = vcmp.eq.f32.partialorder %v2622, 8.507059e+37
        %v2624 = vand.u32 %v2412, 2147483648
        %v2625 = vor.u32 1.1754944e-38, %v2624
        %v2626 = vsel %vm2623, %v2625, %v2621
        %v2627 = vrcp.pop %v2413
        %v2628 = vmul.f32 %v2413, %v2627
        %v2629 = vsub.f32 1.0, %v2628
        %v2630 = vmul.f32 %v2627, %v2629
        %v2631 = vadd.f32 %v2627, %v2630
        %vm2632 = vweird.f32 %v2413
        %vm2633 = vweird.f32 %v2627
        %vm2634 = vmor %vm2632, %vm2633
        %v2635 = vsel %vm2634, %v2627, %v2631
        %v2636 = vand.u32 2147483647, %v2413
        %vm2637 = vcmp.eq.f32.partialorder %v2636, 8.507059e+37
        %v2638 = vand.u32 %v2413, 2147483648
        %v2639 = vor.u32 1.1754944e-38, %v2638
        %v2640 = vsel %vm2637, %v2639, %v2635
        %v2641 = vrcp.pop %v2414
        %v2642 = vmul.f32 %v2414, %v2641
        %v2643 = vsub.f32 1.0, %v2642
        %v2644 = vmul.f32 %v2641, %v2643
        %v2645 = vadd.f32 %v2641, %v2644
        %vm2646 = vweird.f32 %v2414
        %vm2647 = vweird.f32 %v2641
        %vm2648 = vmor %vm2646, %vm2647
        %v2649 = vsel %vm2648, %v2641, %v2645
        %v2650 = vand.u32 2147483647, %v2414
        %vm2651 = vcmp.eq.f32.partialorder %v2650, 8.507059e+37
        %v2652 = vand.u32 %v2414, 2147483648
        %v2653 = vor.u32 1.1754944e-38, %v2652
        %v2654 = vsel %vm2651, %v2653, %v2649
        %v2655 = vrcp.pop %v2415
        %v2656 = vmul.f32 %v2415, %v2655
        %v2657 = vsub.f32 1.0, %v2656
        %v2658 = vmul.f32 %v2655, %v2657
        %v2659 = vadd.f32 %v2655, %v2658
        %vm2660 = vweird.f32 %v2415
        %vm2661 = vweird.f32 %v2655
        %vm2662 = vmor %vm2660, %vm2661
        %v2663 = vsel %vm2662, %v2655, %v2659
        %v2664 = vand.u32 2147483647, %v2415
        %vm2665 = vcmp.eq.f32.partialorder %v2664, 8.507059e+37
        %v2666 = vand.u32 %v2415, 2147483648
        %v2667 = vor.u32 1.1754944e-38, %v2666
        %v2668 = vsel %vm2665, %v2667, %v2663
        %v2669 = vrcp.pop %v2416
        %v2670 = vmul.f32 %v2416, %v2669
        %v2671 = vsub.f32 1.0, %v2670
        %v2672 = vmul.f32 %v2669, %v2671
        %v2673 = vadd.f32 %v2669, %v2672
        %vm2674 = vweird.f32 %v2416
        %vm2675 = vweird.f32 %v2669
        %vm2676 = vmor %vm2674, %vm2675
        %v2677 = vsel %vm2676, %v2669, %v2673
        %v2678 = vand.u32 2147483647, %v2416
        %vm2679 = vcmp.eq.f32.partialorder %v2678, 8.507059e+37
        %v2680 = vand.u32 %v2416, 2147483648
        %v2681 = vor.u32 1.1754944e-38, %v2680
        %v2682 = vsel %vm2679, %v2681, %v2677
        %v2683 = vrcp.pop %v2417
        %v2684 = vmul.f32 %v2417, %v2683
        %v2685 = vsub.f32 1.0, %v2684
        %v2686 = vmul.f32 %v2683, %v2685
        %v2687 = vadd.f32 %v2683, %v2686
        %vm2688 = vweird.f32 %v2417
        %vm2689 = vweird.f32 %v2683
        %vm2690 = vmor %vm2688, %vm2689
        %v2691 = vsel %vm2690, %v2683, %v2687
        %v2692 = vand.u32 2147483647, %v2417
        %vm2693 = vcmp.eq.f32.partialorder %v2692, 8.507059e+37
        %v2694 = vand.u32 %v2417, 2147483648
        %v2695 = vor.u32 1.1754944e-38, %v2694
        %v2696 = vsel %vm2693, %v2695, %v2691
        %v2697 = vrcp.pop %v2418
        %v2698 = vmul.f32 %v2418, %v2697
        %v2699 = vsub.f32 1.0, %v2698
        %v2700 = vmul.f32 %v2697, %v2699
        %v2701 = vadd.f32 %v2697, %v2700
        %vm2702 = vweird.f32 %v2418
        %vm2703 = vweird.f32 %v2697
        %vm2704 = vmor %vm2702, %vm2703
        %v2705 = vsel %vm2704, %v2697, %v2701
        %v2706 = vand.u32 2147483647, %v2418
        %vm2707 = vcmp.eq.f32.partialorder %v2706, 8.507059e+37
        %v2708 = vand.u32 %v2418, 2147483648
        %v2709 = vor.u32 1.1754944e-38, %v2708
        %v2710 = vsel %vm2707, %v2709, %v2705
        %v2711 = vrcp.pop %v2419
        %v2712 = vmul.f32 %v2419, %v2711
        %v2713 = vsub.f32 1.0, %v2712
        %v2714 = vmul.f32 %v2711, %v2713
        %v2715 = vadd.f32 %v2711, %v2714
        %vm2716 = vweird.f32 %v2419
        %vm2717 = vweird.f32 %v2711
        %vm2718 = vmor %vm2716, %vm2717
        %v2719 = vsel %vm2718, %v2711, %v2715
        %v2720 = vand.u32 2147483647, %v2419
        %vm2721 = vcmp.eq.f32.partialorder %v2720, 8.507059e+37
        %v2722 = vand.u32 %v2419, 2147483648
        %v2723 = vor.u32 1.1754944e-38, %v2722
        %v2724 = vsel %vm2721, %v2723, %v2719
        %v2725 = vrcp.pop %v2420
        %v2726 = vmul.f32 %v2420, %v2725
        %v2727 = vsub.f32 1.0, %v2726
        %v2728 = vmul.f32 %v2725, %v2727
        %v2729 = vadd.f32 %v2725, %v2728
        %vm2730 = vweird.f32 %v2420
        %vm2731 = vweird.f32 %v2725
        %vm2732 = vmor %vm2730, %vm2731
        %v2733 = vsel %vm2732, %v2725, %v2729
        %v2734 = vand.u32 2147483647, %v2420
        %vm2735 = vcmp.eq.f32.partialorder %v2734, 8.507059e+37
        %v2736 = vand.u32 %v2420, 2147483648
        %v2737 = vor.u32 1.1754944e-38, %v2736
        %v2738 = vsel %vm2735, %v2737, %v2733
        %v2739 = vrcp.pop %v2421
        %v2740 = vmul.f32 %v2421, %v2739
        %v2741 = vsub.f32 1.0, %v2740
        %v2742 = vmul.f32 %v2739, %v2741
        %v2743 = vadd.f32 %v2739, %v2742
        %vm2744 = vweird.f32 %v2421
        %vm2745 = vweird.f32 %v2739
        %vm2746 = vmor %vm2744, %vm2745
        %v2747 = vsel %vm2746, %v2739, %v2743
        %v2748 = vand.u32 2147483647, %v2421
        %vm2749 = vcmp.eq.f32.partialorder %v2748, 8.507059e+37
        %v2750 = vand.u32 %v2421, 2147483648
        %v2751 = vor.u32 1.1754944e-38, %v2750
        %v2752 = vsel %vm2749, %v2751, %v2747
        %v2753 = vrcp.pop %v2422
        %v2754 = vmul.f32 %v2422, %v2753
        %v2755 = vsub.f32 1.0, %v2754
        %v2756 = vmul.f32 %v2753, %v2755
        %v2757 = vadd.f32 %v2753, %v2756
        %vm2758 = vweird.f32 %v2422
        %vm2759 = vweird.f32 %v2753
        %vm2760 = vmor %vm2758, %vm2759
        %v2761 = vsel %vm2760, %v2753, %v2757
        %v2762 = vand.u32 2147483647, %v2422
        %vm2763 = vcmp.eq.f32.partialorder %v2762, 8.507059e+37
        %v2764 = vand.u32 %v2422, 2147483648
        %v2765 = vor.u32 1.1754944e-38, %v2764
        %v2766 = vsel %vm2763, %v2765, %v2761
        %v2767 = vrcp.pop %v2423
        %v2768 = vmul.f32 %v2423, %v2767
        %v2769 = vsub.f32 1.0, %v2768
        %v2770 = vmul.f32 %v2767, %v2769
        %v2771 = vadd.f32 %v2767, %v2770
        %vm2772 = vweird.f32 %v2423
        %vm2773 = vweird.f32 %v2767
        %vm2774 = vmor %vm2772, %vm2773
        %v2775 = vsel %vm2774, %v2767, %v2771
        %v2776 = vand.u32 2147483647, %v2423
        %vm2777 = vcmp.eq.f32.partialorder %v2776, 8.507059e+37
        %v2778 = vand.u32 %v2423, 2147483648
        %v2779 = vor.u32 1.1754944e-38, %v2778
        %v2780 = vsel %vm2777, %v2779, %v2775
        %v2781 = vrcp.pop %v2424
        %v2782 = vmul.f32 %v2424, %v2781
        %v2783 = vsub.f32 1.0, %v2782
        %v2784 = vmul.f32 %v2781, %v2783
        %v2785 = vadd.f32 %v2781, %v2784
        %vm2786 = vweird.f32 %v2424
        %vm2787 = vweird.f32 %v2781
        %vm2788 = vmor %vm2786, %vm2787
        %v2789 = vsel %vm2788, %v2781, %v2785
        %v2790 = vand.u32 2147483647, %v2424
        %vm2791 = vcmp.eq.f32.partialorder %v2790, 8.507059e+37
        %v2792 = vand.u32 %v2424, 2147483648
        %v2793 = vor.u32 1.1754944e-38, %v2792
        %v2794 = vsel %vm2791, %v2793, %v2789
        %v2795 = vrcp.pop %v2425
        %v2796 = vmul.f32 %v2425, %v2795
        %v2797 = vsub.f32 1.0, %v2796
        %v2798 = vmul.f32 %v2795, %v2797
        %v2799 = vadd.f32 %v2795, %v2798
        %vm2800 = vweird.f32 %v2425
        %vm2801 = vweird.f32 %v2795
        %vm2802 = vmor %vm2800, %vm2801
        %v2803 = vsel %vm2802, %v2795, %v2799
        %v2804 = vand.u32 2147483647, %v2425
        %vm2805 = vcmp.eq.f32.partialorder %v2804, 8.507059e+37
        %v2806 = vand.u32 %v2425, 2147483648
        %v2807 = vor.u32 1.1754944e-38, %v2806
        %v2808 = vsel %vm2805, %v2807, %v2803
        %v2809 = vrcp.pop %v2426
        %v2810 = vmul.f32 %v2426, %v2809
        %v2811 = vsub.f32 1.0, %v2810
        %v2812 = vmul.f32 %v2809, %v2811
        %v2813 = vadd.f32 %v2809, %v2812
        %vm2814 = vweird.f32 %v2426
        %vm2815 = vweird.f32 %v2809
        %vm2816 = vmor %vm2814, %vm2815
        %v2817 = vsel %vm2816, %v2809, %v2813
        %v2818 = vand.u32 2147483647, %v2426
        %vm2819 = vcmp.eq.f32.partialorder %v2818, 8.507059e+37
        %v2820 = vand.u32 %v2426, 2147483648
        %v2821 = vor.u32 1.1754944e-38, %v2820
        %v2822 = vsel %vm2819, %v2821, %v2817
        %v2823 = vrcp.pop %v2427
        %v2824 = vmul.f32 %v2427, %v2823
        %v2825 = vsub.f32 1.0, %v2824
        %v2826 = vmul.f32 %v2823, %v2825
        %v2827 = vadd.f32 %v2823, %v2826
        %vm2828 = vweird.f32 %v2427
        %vm2829 = vweird.f32 %v2823
        %vm2830 = vmor %vm2828, %vm2829
        %v2831 = vsel %vm2830, %v2823, %v2827
        %v2832 = vand.u32 2147483647, %v2427
        %vm2833 = vcmp.eq.f32.partialorder %v2832, 8.507059e+37
        %v2834 = vand.u32 %v2427, 2147483648
        %v2835 = vor.u32 1.1754944e-38, %v2834
        %v2836 = vsel %vm2833, %v2835, %v2831
        %v2837 = vrcp.pop %v2428
        %v2838 = vmul.f32 %v2428, %v2837
        %v2839 = vsub.f32 1.0, %v2838
        %v2840 = vmul.f32 %v2837, %v2839
        %v2841 = vadd.f32 %v2837, %v2840
        %vm2842 = vweird.f32 %v2428
        %vm2843 = vweird.f32 %v2837
        %vm2844 = vmor %vm2842, %vm2843
        %v2845 = vsel %vm2844, %v2837, %v2841
        %v2846 = vand.u32 2147483647, %v2428
        %vm2847 = vcmp.eq.f32.partialorder %v2846, 8.507059e+37
        %v2848 = vand.u32 %v2428, 2147483648
        %v2849 = vor.u32 1.1754944e-38, %v2848
        %v2850 = vsel %vm2847, %v2849, %v2845
        %v2851 = vrcp.pop %v2429
        %v2852 = vmul.f32 %v2429, %v2851
        %v2853 = vsub.f32 1.0, %v2852
        %v2854 = vmul.f32 %v2851, %v2853
        %v2855 = vadd.f32 %v2851, %v2854
        %vm2856 = vweird.f32 %v2429
        %vm2857 = vweird.f32 %v2851
        %vm2858 = vmor %vm2856, %vm2857
        %v2859 = vsel %vm2858, %v2851, %v2855
        %v2860 = vand.u32 2147483647, %v2429
        %vm2861 = vcmp.eq.f32.partialorder %v2860, 8.507059e+37
        %v2862 = vand.u32 %v2429, 2147483648
        %v2863 = vor.u32 1.1754944e-38, %v2862
        %v2864 = vsel %vm2861, %v2863, %v2859
        %v2865 = vrcp.pop %v2430
        %v2866 = vmul.f32 %v2430, %v2865
        %v2867 = vsub.f32 1.0, %v2866
        %v2868 = vmul.f32 %v2865, %v2867
        %v2869 = vadd.f32 %v2865, %v2868
        %vm2870 = vweird.f32 %v2430
        %vm2871 = vweird.f32 %v2865
        %vm2872 = vmor %vm2870, %vm2871
        %v2873 = vsel %vm2872, %v2865, %v2869
        %v2874 = vand.u32 2147483647, %v2430
        %vm2875 = vcmp.eq.f32.partialorder %v2874, 8.507059e+37
        %v2876 = vand.u32 %v2430, 2147483648
        %v2877 = vor.u32 1.1754944e-38, %v2876
        %v2878 = vsel %vm2875, %v2877, %v2873
        %2880 = vset.pattern.permute.xlu0 0
        %2881 = vperm.xlu0 %2880, %v2444
        %v2882 = vpop.permute.xlu0 %2881
        %2885 = vset.pattern.permute.xlu0 0
        %2886 = vperm.xlu0 %2885, %v2458
        %v2887 = vpop.permute.xlu0 %2886
        %2890 = vset.pattern.permute.xlu0 0
        %2891 = vperm.xlu0 %2890, %v2472
        %v2892 = vpop.permute.xlu0 %2891
        %2895 = vset.pattern.permute.xlu0 0
        %2896 = vperm.xlu0 %2895, %v2486
        %v2897 = vpop.permute.xlu0 %2896
        %2900 = vset.pattern.permute.xlu0 0
        %2901 = vperm.xlu0 %2900, %v2500
        %v2902 = vpop.permute.xlu0 %2901
        %2905 = vset.pattern.permute.xlu0 0
        %2906 = vperm.xlu0 %2905, %v2514
        %v2907 = vpop.permute.xlu0 %2906
        %2910 = vset.pattern.permute.xlu0 0
        %2911 = vperm.xlu0 %2910, %v2528
        %v2912 = vpop.permute.xlu0 %2911
        %2915 = vset.pattern.permute.xlu0 0
        %2916 = vperm.xlu0 %2915, %v2542
        %v2917 = vpop.permute.xlu0 %2916
        %2920 = vset.pattern.permute.xlu0 0
        %2921 = vperm.xlu0 %2920, %v2556
        %v2922 = vpop.permute.xlu0 %2921
        %2925 = vset.pattern.permute.xlu0 0
        %2926 = vperm.xlu0 %2925, %v2570
        %v2927 = vpop.permute.xlu0 %2926
        %2930 = vset.pattern.permute.xlu0 0
        %2931 = vperm.xlu0 %2930, %v2584
        %v2932 = vpop.permute.xlu0 %2931
        %2935 = vset.pattern.permute.xlu0 0
        %2936 = vperm.xlu0 %2935, %v2598
        %v2937 = vpop.permute.xlu0 %2936
        %2940 = vset.pattern.permute.xlu0 0
        %2941 = vperm.xlu0 %2940, %v2612
        %v2942 = vpop.permute.xlu0 %2941
        %2945 = vset.pattern.permute.xlu0 0
        %2946 = vperm.xlu0 %2945, %v2626
        %v2947 = vpop.permute.xlu0 %2946
        %2950 = vset.pattern.permute.xlu0 0
        %2951 = vperm.xlu0 %2950, %v2640
        %v2952 = vpop.permute.xlu0 %2951
        %2955 = vset.pattern.permute.xlu0 0
        %2956 = vperm.xlu0 %2955, %v2654
        %v2957 = vpop.permute.xlu0 %2956
        %2960 = vset.pattern.permute.xlu0 0
        %2961 = vperm.xlu0 %2960, %v2668
        %v2962 = vpop.permute.xlu0 %2961
        %2965 = vset.pattern.permute.xlu0 0
        %2966 = vperm.xlu0 %2965, %v2682
        %v2967 = vpop.permute.xlu0 %2966
        %2970 = vset.pattern.permute.xlu0 0
        %2971 = vperm.xlu0 %2970, %v2696
        %v2972 = vpop.permute.xlu0 %2971
        %2975 = vset.pattern.permute.xlu0 0
        %2976 = vperm.xlu0 %2975, %v2710
        %v2977 = vpop.permute.xlu0 %2976
        %2980 = vset.pattern.permute.xlu0 0
        %2981 = vperm.xlu0 %2980, %v2724
        %v2982 = vpop.permute.xlu0 %2981
        %2985 = vset.pattern.permute.xlu0 0
        %2986 = vperm.xlu0 %2985, %v2738
        %v2987 = vpop.permute.xlu0 %2986
        %2990 = vset.pattern.permute.xlu0 0
        %2991 = vperm.xlu0 %2990, %v2752
        %v2992 = vpop.permute.xlu0 %2991
        %2995 = vset.pattern.permute.xlu0 0
        %2996 = vperm.xlu0 %2995, %v2766
        %v2997 = vpop.permute.xlu0 %2996
        %3000 = vset.pattern.permute.xlu0 0
        %3001 = vperm.xlu0 %3000, %v2780
        %v3002 = vpop.permute.xlu0 %3001
        %3005 = vset.pattern.permute.xlu0 0
        %3006 = vperm.xlu0 %3005, %v2794
        %v3007 = vpop.permute.xlu0 %3006
        %3010 = vset.pattern.permute.xlu0 0
        %3011 = vperm.xlu0 %3010, %v2808
        %v3012 = vpop.permute.xlu0 %3011
        %3015 = vset.pattern.permute.xlu0 0
        %3016 = vperm.xlu0 %3015, %v2822
        %v3017 = vpop.permute.xlu0 %3016
        %3020 = vset.pattern.permute.xlu0 0
        %3021 = vperm.xlu0 %3020, %v2836
        %v3022 = vpop.permute.xlu0 %3021
        %3025 = vset.pattern.permute.xlu0 0
        %3026 = vperm.xlu0 %3025, %v2850
        %v3027 = vpop.permute.xlu0 %3026
        %3030 = vset.pattern.permute.xlu0 0
        %3031 = vperm.xlu0 %3030, %v2864
        %v3032 = vpop.permute.xlu0 %3031
        %3035 = vset.pattern.permute.xlu0 0
        %3036 = vperm.xlu0 %3035, %v2878
        %v3037 = vpop.permute.xlu0 %3036
        %v3039 = vmul.f32 %v2367, %v2882
        %v3040 = vmul.f32 %v2368, %v2887
        %v3041 = vmul.f32 %v2369, %v2892
        %v3042 = vmul.f32 %v2370, %v2897
        %v3043 = vmul.f32 %v2371, %v2902
        %v3044 = vmul.f32 %v2372, %v2907
        %v3045 = vmul.f32 %v2373, %v2912
        %v3046 = vmul.f32 %v2374, %v2917
        %v3047 = vmul.f32 %v2375, %v2922
        %v3048 = vmul.f32 %v2376, %v2927
        %v3049 = vmul.f32 %v2377, %v2932
        %v3050 = vmul.f32 %v2378, %v2937
        %v3051 = vmul.f32 %v2379, %v2942
        %v3052 = vmul.f32 %v2380, %v2947
        %v3053 = vmul.f32 %v2381, %v2952
        %v3054 = vmul.f32 %v2382, %v2957
        %v3055 = vmul.f32 %v2383, %v2962
        %v3056 = vmul.f32 %v2384, %v2967
        %v3057 = vmul.f32 %v2385, %v2972
        %v3058 = vmul.f32 %v2386, %v2977
        %v3059 = vmul.f32 %v2387, %v2982
        %v3060 = vmul.f32 %v2388, %v2987
        %v3061 = vmul.f32 %v2389, %v2992
        %v3062 = vmul.f32 %v2390, %v2997
        %v3063 = vmul.f32 %v2391, %v3002
        %v3064 = vmul.f32 %v2392, %v3007
        %v3065 = vmul.f32 %v2393, %v3012
        %v3066 = vmul.f32 %v2394, %v3017
        %v3067 = vmul.f32 %v2395, %v3022
        %v3068 = vmul.f32 %v2396, %v3027
        %v3069 = vmul.f32 %v2397, %v3032
        %v3070 = vmul.f32 %v2398, %v3037
        %v3071 = vpack.c.bf16 %v3040, %v3039
        %v3072 = vpack.c.bf16 %v3042, %v3041
        %v3073 = vpack.c.bf16 %v3044, %v3043
        %v3074 = vpack.c.bf16 %v3046, %v3045
        %v3075 = vpack.c.bf16 %v3048, %v3047
        %v3076 = vpack.c.bf16 %v3050, %v3049
        %v3077 = vpack.c.bf16 %v3052, %v3051
        %v3078 = vpack.c.bf16 %v3054, %v3053
        %v3079 = vpack.c.bf16 %v3056, %v3055
        %v3080 = vpack.c.bf16 %v3058, %v3057
        %v3081 = vpack.c.bf16 %v3060, %v3059
        %v3082 = vpack.c.bf16 %v3062, %v3061
        %v3083 = vpack.c.bf16 %v3064, %v3063
        %v3084 = vpack.c.bf16 %v3066, %v3065
        %v3085 = vpack.c.bf16 %v3068, %v3067
        %v3086 = vpack.c.bf16 %v3070, %v3069
        %v3087 = vld [vmem:[%s4] sm:$0xf]
        %v3088 = vld [vmem:[%s4 + $0x4] sm:$0xf]
        %v3089 = vld [vmem:[%s4 + $0x8] sm:$0xf]
        %v3090 = vld [vmem:[%s4 + $0xc] sm:$0xf]
        %v3091 = vld [vmem:[%s4 + $0x10] sm:$0xf]
        %v3092 = vld [vmem:[%s4 + $0x14] sm:$0xf]
        %v3093 = vld [vmem:[%s4 + $0x18] sm:$0xf]
        %v3094 = vld [vmem:[%s4 + $0x1c] sm:$0xf]
        %v3095 = vld [vmem:[%s4 + $0x20] sm:$0xf]
        %v3096 = vld [vmem:[%s4 + $0x24] sm:$0xf]
        %v3097 = vld [vmem:[%s4 + $0x28] sm:$0xf]
        %v3098 = vld [vmem:[%s4 + $0x2c] sm:$0xf]
        %v3099 = vld [vmem:[%s4 + $0x30] sm:$0xf]
        %v3100 = vld [vmem:[%s4 + $0x34] sm:$0xf]
        %v3101 = vld [vmem:[%s4 + $0x38] sm:$0xf]
        %v3102 = vld [vmem:[%s4 + $0x3c] sm:$0xf]
        %v3103 = vld [vmem:[%s5] sm:$0xff]
        %v3104 = vld [vmem:[%s5 + $0x8] sm:$0xff]
        %v3105 = vld [vmem:[%s5 + $0x10] sm:$0xff]
        %v3106 = vld [vmem:[%s5 + $0x18] sm:$0xff]
        %v3107 = vld [vmem:[%s5 + $0x20] sm:$0xff]
        %v3108 = vld [vmem:[%s5 + $0x28] sm:$0xff]
        %v3109 = vld [vmem:[%s5 + $0x30] sm:$0xff]
        %v3110 = vld [vmem:[%s5 + $0x38] sm:$0xff]
        %v3111 = vld [vmem:[%s5 + $0x40] sm:$0xff]
        %v3112 = vld [vmem:[%s5 + $0x48] sm:$0xff]
        %v3113 = vld [vmem:[%s5 + $0x50] sm:$0xff]
        %v3114 = vld [vmem:[%s5 + $0x58] sm:$0xff]
        %v3115 = vld [vmem:[%s5 + $0x60] sm:$0xff]
        %v3116 = vld [vmem:[%s5 + $0x68] sm:$0xff]
        %v3117 = vld [vmem:[%s5 + $0x70] sm:$0xff]
        %v3118 = vld [vmem:[%s5 + $0x78] sm:$0xff]
        %3120 = vset.pattern.permute.xlu0 0
        %3121 = vperm.xlu0 %3120, %v3103
        %v3122 = vpop.permute.xlu0 %3121
        %3125 = vset.pattern.permute.xlu0 0
        %3126 = vperm.xlu0 %3125, %v3104
        %v3127 = vpop.permute.xlu0 %3126
        %3130 = vset.pattern.permute.xlu0 0
        %3131 = vperm.xlu0 %3130, %v3105
        %v3132 = vpop.permute.xlu0 %3131
        %3135 = vset.pattern.permute.xlu0 0
        %3136 = vperm.xlu0 %3135, %v3106
        %v3137 = vpop.permute.xlu0 %3136
        %3140 = vset.pattern.permute.xlu0 0
        %3141 = vperm.xlu0 %3140, %v3107
        %v3142 = vpop.permute.xlu0 %3141
        %3145 = vset.pattern.permute.xlu0 0
        %3146 = vperm.xlu0 %3145, %v3108
        %v3147 = vpop.permute.xlu0 %3146
        %3150 = vset.pattern.permute.xlu0 0
        %3151 = vperm.xlu0 %3150, %v3109
        %v3152 = vpop.permute.xlu0 %3151
        %3155 = vset.pattern.permute.xlu0 0
        %3156 = vperm.xlu0 %3155, %v3110
        %v3157 = vpop.permute.xlu0 %3156
        %3160 = vset.pattern.permute.xlu0 0
        %3161 = vperm.xlu0 %3160, %v3111
        %v3162 = vpop.permute.xlu0 %3161
        %3165 = vset.pattern.permute.xlu0 0
        %3166 = vperm.xlu0 %3165, %v3112
        %v3167 = vpop.permute.xlu0 %3166
        %3170 = vset.pattern.permute.xlu0 0
        %3171 = vperm.xlu0 %3170, %v3113
        %v3172 = vpop.permute.xlu0 %3171
        %3175 = vset.pattern.permute.xlu0 0
        %3176 = vperm.xlu0 %3175, %v3114
        %v3177 = vpop.permute.xlu0 %3176
        %3180 = vset.pattern.permute.xlu0 0
        %3181 = vperm.xlu0 %3180, %v3115
        %v3182 = vpop.permute.xlu0 %3181
        %3185 = vset.pattern.permute.xlu0 0
        %3186 = vperm.xlu0 %3185, %v3116
        %v3187 = vpop.permute.xlu0 %3186
        %3190 = vset.pattern.permute.xlu0 0
        %3191 = vperm.xlu0 %3190, %v3117
        %v3192 = vpop.permute.xlu0 %3191
        %3195 = vset.pattern.permute.xlu0 0
        %3196 = vperm.xlu0 %3195, %v3118
        %v3197 = vpop.permute.xlu0 %3196
        %v3215 = vunpack.c.l.b16 %v3087
        %v3216 = vunpack.c.l.b16 %v3088
        %v3217 = vunpack.c.l.b16 %v3089
        %v3218 = vunpack.c.l.b16 %v3090
        %v3219 = vunpack.c.l.b16 %v3091
        %v3220 = vunpack.c.l.b16 %v3092
        %v3221 = vunpack.c.l.b16 %v3093
        %v3222 = vunpack.c.l.b16 %v3094
        %v3223 = vunpack.c.l.b16 %v3095
        %v3224 = vunpack.c.l.b16 %v3096
        %v3225 = vunpack.c.l.b16 %v3097
        %v3226 = vunpack.c.l.b16 %v3098
        %v3227 = vunpack.c.l.b16 %v3099
        %v3228 = vunpack.c.l.b16 %v3100
        %v3229 = vunpack.c.l.b16 %v3101
        %v3230 = vunpack.c.l.b16 %v3102
        %v3231 = vpack.c.b16 %v3216, %v3215
        %v3232 = vpack.c.b16 %v3218, %v3217
        %v3233 = vpack.c.b16 %v3220, %v3219
        %v3234 = vpack.c.b16 %v3222, %v3221
        %v3235 = vpack.c.b16 %v3224, %v3223
        %v3236 = vpack.c.b16 %v3226, %v3225
        %v3237 = vpack.c.b16 %v3228, %v3227
        %v3238 = vpack.c.b16 %v3230, %v3229
        %3247 = vmatpush.bf16.xpose.msra.mxu0 %v3078
        %3248 = vmatpush.bf16.xpose.msra.mxu0 %v3077
        %3249 = vmatpush.bf16.xpose.msra.mxu0 %v3076
        %3250 = vmatpush.bf16.xpose.msra.mxu0 %v3075
        %3251 = vmatpush.bf16.xpose.msra.mxu0 %v3074
        %3252 = vmatpush.bf16.xpose.msra.mxu0 %v3073
        %3253 = vmatpush.bf16.xpose.msra.mxu0 %v3072
        %3254 = vmatpush.bf16.xpose.msra.mxu0 %v3071
        %3255 = vmatmul.bf16.gmra.mxu0 %v3231
        %v3256 = vpop.f32.mrf.mxu0
        %v3257 = vadd.f32 %v3122, %v3256
        %v3258 = vpop.f32.mrf.mxu0
        %v3259 = vadd.f32 %v3127, %v3258
        %3260 = vmatmul.bf16.gmra.mxu0 %v3232
        %v3261 = vpop.f32.mrf.mxu0
        %v3262 = vadd.f32 %v3132, %v3261
        %v3263 = vpop.f32.mrf.mxu0
        %v3264 = vadd.f32 %v3137, %v3263
        %3265 = vmatmul.bf16.gmra.mxu0 %v3233
        %v3266 = vpop.f32.mrf.mxu0
        %v3267 = vadd.f32 %v3142, %v3266
        %v3268 = vpop.f32.mrf.mxu0
        %v3269 = vadd.f32 %v3147, %v3268
        %3270 = vmatmul.bf16.gmra.mxu0 %v3234
        %v3271 = vpop.f32.mrf.mxu0
        %v3272 = vadd.f32 %v3152, %v3271
        %v3273 = vpop.f32.mrf.mxu0
        %v3274 = vadd.f32 %v3157, %v3273
        %3275 = vmatmul.bf16.gmra.mxu0 %v3235
        %v3276 = vpop.f32.mrf.mxu0
        %v3277 = vadd.f32 %v3162, %v3276
        %v3278 = vpop.f32.mrf.mxu0
        %v3279 = vadd.f32 %v3167, %v3278
        %3280 = vmatmul.bf16.gmra.mxu0 %v3236
        %v3281 = vpop.f32.mrf.mxu0
        %v3282 = vadd.f32 %v3172, %v3281
        %v3283 = vpop.f32.mrf.mxu0
        %v3284 = vadd.f32 %v3177, %v3283
        %3285 = vmatmul.bf16.gmra.mxu0 %v3237
        %v3286 = vpop.f32.mrf.mxu0
        %v3287 = vadd.f32 %v3182, %v3286
        %v3288 = vpop.f32.mrf.mxu0
        %v3289 = vadd.f32 %v3187, %v3288
        %3290 = vmatmul.bf16.gmra.mxu0 %v3238
        %v3291 = vpop.f32.mrf.mxu0
        %v3292 = vadd.f32 %v3192, %v3291
        %v3293 = vpop.f32.mrf.mxu0
        %v3294 = vadd.f32 %v3197, %v3293
        %3295 = vdwg.mxu0
        %3296 = vmatpush.bf16.xpose.msra.mxu0 %v3086
        %3297 = vmatpush.bf16.xpose.msra.mxu0 %v3085
        %3298 = vmatpush.bf16.xpose.msra.mxu0 %v3084
        %3299 = vmatpush.bf16.xpose.msra.mxu0 %v3083
        %3300 = vmatpush.bf16.xpose.msra.mxu0 %v3082
        %3301 = vmatpush.bf16.xpose.msra.mxu0 %v3081
        %3302 = vmatpush.bf16.xpose.msra.mxu0 %v3080
        %3303 = vmatpush.bf16.xpose.msra.mxu0 %v3079
        %3304 = vmatmul.bf16.gmra.mxu0 %v3231
        %v3305 = vpop.f32.mrf.mxu0
        %v3306 = vadd.f32 %v3122, %v3305
        %v3307 = vpop.f32.mrf.mxu0
        %v3308 = vadd.f32 %v3127, %v3307
        %3309 = vmatmul.bf16.gmra.mxu0 %v3232
        %v3310 = vpop.f32.mrf.mxu0
        %v3311 = vadd.f32 %v3132, %v3310
        %v3312 = vpop.f32.mrf.mxu0
        %v3313 = vadd.f32 %v3137, %v3312
        %3314 = vmatmul.bf16.gmra.mxu0 %v3233
        %v3315 = vpop.f32.mrf.mxu0
        %v3316 = vadd.f32 %v3142, %v3315
        %v3317 = vpop.f32.mrf.mxu0
        %v3318 = vadd.f32 %v3147, %v3317
        %3319 = vmatmul.bf16.gmra.mxu0 %v3234
        %v3320 = vpop.f32.mrf.mxu0
        %v3321 = vadd.f32 %v3152, %v3320
        %v3322 = vpop.f32.mrf.mxu0
        %v3323 = vadd.f32 %v3157, %v3322
        %3324 = vmatmul.bf16.gmra.mxu0 %v3235
        %v3325 = vpop.f32.mrf.mxu0
        %v3326 = vadd.f32 %v3162, %v3325
        %v3327 = vpop.f32.mrf.mxu0
        %v3328 = vadd.f32 %v3167, %v3327
        %3329 = vmatmul.bf16.gmra.mxu0 %v3236
        %v3330 = vpop.f32.mrf.mxu0
        %v3331 = vadd.f32 %v3172, %v3330
        %v3332 = vpop.f32.mrf.mxu0
        %v3333 = vadd.f32 %v3177, %v3332
        %3334 = vmatmul.bf16.gmra.mxu0 %v3237
        %v3335 = vpop.f32.mrf.mxu0
        %v3336 = vadd.f32 %v3182, %v3335
        %v3337 = vpop.f32.mrf.mxu0
        %v3338 = vadd.f32 %v3187, %v3337
        %3339 = vmatmul.bf16.gmra.mxu0 %v3238
        %v3340 = vpop.f32.mrf.mxu0
        %v3341 = vadd.f32 %v3192, %v3340
        %v3342 = vpop.f32.mrf.mxu0
        %v3343 = vadd.f32 %v3197, %v3342
        %3344 = vdwg.mxu0
        %v3345 = vld [vmem:[%s362] sm:$0xff]
        %v3346 = vld [vmem:[%s362 + $0x8] sm:$0xff]
        %v3347 = vld [vmem:[%s362 + $0x10] sm:$0xff]
        %v3348 = vld [vmem:[%s362 + $0x18] sm:$0xff]
        %v3349 = vld [vmem:[%s362 + $0x20] sm:$0xff]
        %v3350 = vld [vmem:[%s362 + $0x28] sm:$0xff]
        %v3351 = vld [vmem:[%s362 + $0x30] sm:$0xff]
        %v3352 = vld [vmem:[%s362 + $0x38] sm:$0xff]
        %v3353 = vld [vmem:[%s362 + $0x40] sm:$0xff]
        %v3354 = vld [vmem:[%s362 + $0x48] sm:$0xff]
        %v3355 = vld [vmem:[%s362 + $0x50] sm:$0xff]
        %v3356 = vld [vmem:[%s362 + $0x58] sm:$0xff]
        %v3357 = vld [vmem:[%s362 + $0x60] sm:$0xff]
        %v3358 = vld [vmem:[%s362 + $0x68] sm:$0xff]
        %v3359 = vld [vmem:[%s362 + $0x70] sm:$0xff]
        %v3360 = vld [vmem:[%s362 + $0x78] sm:$0xff]
        %v3361 = vld [vmem:[%s362 + $0x80] sm:$0xff]
        %v3362 = vld [vmem:[%s362 + $0x88] sm:$0xff]
        %v3363 = vld [vmem:[%s362 + $0x90] sm:$0xff]
        %v3364 = vld [vmem:[%s362 + $0x98] sm:$0xff]
        %v3365 = vld [vmem:[%s362 + $0xa0] sm:$0xff]
        %v3366 = vld [vmem:[%s362 + $0xa8] sm:$0xff]
        %v3367 = vld [vmem:[%s362 + $0xb0] sm:$0xff]
        %v3368 = vld [vmem:[%s362 + $0xb8] sm:$0xff]
        %v3369 = vld [vmem:[%s362 + $0xc0] sm:$0xff]
        %v3370 = vld [vmem:[%s362 + $0xc8] sm:$0xff]
        %v3371 = vld [vmem:[%s362 + $0xd0] sm:$0xff]
        %v3372 = vld [vmem:[%s362 + $0xd8] sm:$0xff]
        %v3373 = vld [vmem:[%s362 + $0xe0] sm:$0xff]
        %v3374 = vld [vmem:[%s362 + $0xe8] sm:$0xff]
        %v3375 = vld [vmem:[%s362 + $0xf0] sm:$0xff]
        %v3376 = vld [vmem:[%s362 + $0xf8] sm:$0xff]
        %v3377 = vadd.f32 %v3345, %v3257
        %v3378 = vadd.f32 %v3346, %v3306
        %v3379 = vadd.f32 %v3347, %v3259
        %v3380 = vadd.f32 %v3348, %v3308
        %v3381 = vadd.f32 %v3349, %v3262
        %v3382 = vadd.f32 %v3350, %v3311
        %v3383 = vadd.f32 %v3351, %v3264
        %v3384 = vadd.f32 %v3352, %v3313
        %v3385 = vadd.f32 %v3353, %v3267
        %v3386 = vadd.f32 %v3354, %v3316
        %v3387 = vadd.f32 %v3355, %v3269
        %v3388 = vadd.f32 %v3356, %v3318
        %v3389 = vadd.f32 %v3357, %v3272
        %v3390 = vadd.f32 %v3358, %v3321
        %v3391 = vadd.f32 %v3359, %v3274
        %v3392 = vadd.f32 %v3360, %v3323
        %v3393 = vadd.f32 %v3361, %v3277
        %v3394 = vadd.f32 %v3362, %v3326
        %v3395 = vadd.f32 %v3363, %v3279
        %v3396 = vadd.f32 %v3364, %v3328
        %v3397 = vadd.f32 %v3365, %v3282
        %v3398 = vadd.f32 %v3366, %v3331
        %v3399 = vadd.f32 %v3367, %v3284
        %v3400 = vadd.f32 %v3368, %v3333
        %v3401 = vadd.f32 %v3369, %v3287
        %v3402 = vadd.f32 %v3370, %v3336
        %v3403 = vadd.f32 %v3371, %v3289
        %v3404 = vadd.f32 %v3372, %v3338
        %v3405 = vadd.f32 %v3373, %v3292
        %v3406 = vadd.f32 %v3374, %v3341
        %v3407 = vadd.f32 %v3375, %v3294
        %v3408 = vadd.f32 %v3376, %v3343
        %3409 = vst [vmem:[%s400] sm:$0xff] %v3377
        %3410 = vst [vmem:[%s400 + $0x8] sm:$0xff] %v3378
        %3411 = vst [vmem:[%s400 + $0x10] sm:$0xff] %v3379
        %3412 = vst [vmem:[%s400 + $0x18] sm:$0xff] %v3380
        %3413 = vst [vmem:[%s400 + $0x20] sm:$0xff] %v3381
        %3414 = vst [vmem:[%s400 + $0x28] sm:$0xff] %v3382
        %3415 = vst [vmem:[%s400 + $0x30] sm:$0xff] %v3383
        %3416 = vst [vmem:[%s400 + $0x38] sm:$0xff] %v3384
        %3417 = vst [vmem:[%s400 + $0x40] sm:$0xff] %v3385
        %3418 = vst [vmem:[%s400 + $0x48] sm:$0xff] %v3386
        %3419 = vst [vmem:[%s400 + $0x50] sm:$0xff] %v3387
        %3420 = vst [vmem:[%s400 + $0x58] sm:$0xff] %v3388
        %3421 = vst [vmem:[%s400 + $0x60] sm:$0xff] %v3389
        %3422 = vst [vmem:[%s400 + $0x68] sm:$0xff] %v3390
        %3423 = vst [vmem:[%s400 + $0x70] sm:$0xff] %v3391
        %3424 = vst [vmem:[%s400 + $0x78] sm:$0xff] %v3392
        %3425 = vst [vmem:[%s400 + $0x80] sm:$0xff] %v3393
        %3426 = vst [vmem:[%s400 + $0x88] sm:$0xff] %v3394
        %3427 = vst [vmem:[%s400 + $0x90] sm:$0xff] %v3395
        %3428 = vst [vmem:[%s400 + $0x98] sm:$0xff] %v3396
        %3429 = vst [vmem:[%s400 + $0xa0] sm:$0xff] %v3397
        %3430 = vst [vmem:[%s400 + $0xa8] sm:$0xff] %v3398
        %3431 = vst [vmem:[%s400 + $0xb0] sm:$0xff] %v3399
        %3432 = vst [vmem:[%s400 + $0xb8] sm:$0xff] %v3400
        %3433 = vst [vmem:[%s400 + $0xc0] sm:$0xff] %v3401
        %3434 = vst [vmem:[%s400 + $0xc8] sm:$0xff] %v3402
        %3435 = vst [vmem:[%s400 + $0xd0] sm:$0xff] %v3403
        %3436 = vst [vmem:[%s400 + $0xd8] sm:$0xff] %v3404
        %3437 = vst [vmem:[%s400 + $0xe0] sm:$0xff] %v3405
        %3438 = vst [vmem:[%s400 + $0xe8] sm:$0xff] %v3406
        %3439 = vst [vmem:[%s400 + $0xf0] sm:$0xff] %v3407
        %3440 = vst [vmem:[%s400 + $0xf8] sm:$0xff] %v3408
      $region52: #{attn_block.5} parent=43 // pred_fallthru
        _
      %s3441 = smul.u32 2, %s23
      %p3442 = scmp.lt.s32.totalorder %s22, 1
      %s3443 = scalar_select %p3442, %s22, 1
      %p3444 = scmp.lt.s32.totalorder %s3441, 1
      %s3445 = scalar_select %p3444, %s3441, 1
      %s3446 = smul.addr %s3443, 32
      %s3447 = sadd.s32 %s3445, %s3446
      %s3448 = smul.addr %s3447, 8
      %s3449 = scalar_lea.vmem %s6, %s3448
      // Predicated region
      $region53: #{attn_block.5} parent=43 // pred_check
        %p3450 = pneg %p210
      $region54: #{attn_block.5} parent=43 // pred_check_branch
        %3452 = sbr.rel (%p3450) target = $region56
      $region55: #{attn_block.5} parent=43 // pred_region
        %s3453 = smul.u32 2, %s23
      $region56: #{attn_block.5} parent=43 // pred_fallthru
        _
    $region44: #{attn_block.5} parent=5 // pred_fallthru
      _
    %p3454 = scmp.le.s32.totalorder 2, %s12
    // Predicated region
    $region57: #{attn_block.5} parent=5 // pred_check
      %p3455 = pneg %p3454
    $region58: #{attn_block.5} parent=5 // pred_check_branch
      %3457 = sbr.rel (%p3455) target = $region60
    $region59: #{attn_block.5} parent=5 // pred_region
      %s3458 = ssub.s32 %s12, 2
      // Predicated region
      $region61: #{attn_block.5} parent=59 // pred_check
        %p3459 = pneg %p216
      $region62: #{attn_block.5} parent=59 // pred_check_branch
        %3461 = sbr.rel (%p3459) target = $region64
      $region63: #{attn_block.5} parent=59 // pred_region
        %s3462 = smul.u32 2, %s26
        %p3463 = scmp.lt.s32.totalorder %s25, 1
        %s3464 = scalar_select %p3463, %s25, 1
        %p3465 = scmp.lt.s32.totalorder %s3462, 1
        %s3466 = scalar_select %p3465, %s3462, 1
        %s3467 = smul.addr %s3464, 32
        %s3468 = sadd.s32 %s3466, %s3467
        %s3469 = smul.addr %s3468, 8
        %s3470 = scalar_lea.vmem %s6, %s3469
      $region64: #{attn_block.5} parent=59 // pred_fallthru
        _
    $region60: #{attn_block.5} parent=5 // pred_fallthru
      _
  $region6: #{attn_block.5} parent=0 // loop_footer
    %s16 = sadd.s32 1, %s12
  $region7: #{attn_block.5} parent=0 // loop_footer_branch
    %11 = sbr.rel target = $region3
  $region8: #{attn_block.5} parent=0 // loop_exit
    _

</llo_original>
